<compile_context>
chip_gen: v6e
topology: v6e:2x2x1
jax: 0.10.0
libtpu: 0.0.40
codegen_flags: <defaults>
</compile_context>

<pallas_src>
import jax
import jax.numpy as jnp
from jax.experimental import pallas as pl
from jax.experimental.pallas import tpu as pltpu

EPS = 1e-5


def _downblock_kernel(x_ref, w1_ref, w2_ref, w3_ref, gamma_ref, beta_ref,
                      y_ref, pad1_ref, pad2_ref):
    # x_ref     : (N, H, W, Cin)          f32
    # w1_ref    : (9*Cin, C)              mxu dtype, rows ordered (kh, kw, ci)
    # w2/w3_ref : (9*C,   C)              mxu dtype
    # gamma_ref : (3, C) f32   beta_ref : (3, C) f32   (BN affine per stage)
    # y_ref     : (C, N*Ho*Wo)            f32  (lane-dense, transposed output)
    # pad1_ref  : (N, H+2,  W+2,  Cin)    f32 scratch (conv1 input)
    # pad2_ref  : (N, Ho+2, Wo+2, C)      f32 scratch (conv2/conv3 input, reused)
    N, H, W, Cin = x_ref.shape
    _, Hop2, Wop2, C = pad2_ref.shape
    Ho, Wo = Hop2 - 2, Wop2 - 2
    M = N * Ho * Wo
    inv_m = 1.0 / M
    mxu_dtype = w1_ref.dtype

    # Zero the padded scratch buffers ONCE; interiors are overwritten before
    # each use, so only the 1-pixel border ever needs to be zero.
    pad1_ref[...] = jnp.zeros_like(pad1_ref)
    pad2_ref[...] = jnp.zeros_like(pad2_ref)
    pad1_ref[:, 1:H + 1, 1:W + 1, :] = x_ref[...]

    def conv_im2col(tap_read, cin, w_ref):
        # Build the (M, 9*cin) im2col patch from 9 shifted ref windows and do
        # a single MXU matmul (K = 9*cin) with f32 accumulation.
        cols = [tap_read(kh, kw).reshape(M, cin).astype(mxu_dtype)
                for kh in range(3) for kw in range(3)]
        patch = jnp.concatenate(cols, axis=-1)                    # (M, 9*cin)
        return jnp.dot(patch, w_ref[...],
                       preferred_element_type=jnp.float32)        # (M, C) f32

    def bn_relu(y, stage):
        # Training-mode BatchNorm (biased variance) with one-pass statistics
        # (sum & sum-of-squares), learnable affine, then ReLU -- all in f32.
        s1 = jnp.sum(y, axis=0, keepdims=True)
        s2 = jnp.sum(y * y, axis=0, keepdims=True)
        mean = s1 * inv_m
        var = jnp.maximum(s2 * inv_m - mean * mean, 0.0)
        gamma = gamma_ref[stage:stage + 1, :]
        beta = beta_ref[stage:stage + 1, :]
        scale = gamma * jax.lax.rsqrt(var + EPS)
        return jnp.maximum(y * scale + (beta - mean * scale), 0.0)

    # --- conv1: 3x3, stride 2, Cin -> C (strided window reads off pad1) ---
    def tap1(kh, kw):
        return pad1_ref[:, pl.ds(kh, Ho, stride=2), pl.ds(kw, Wo, stride=2), :]

    y1 = bn_relu(conv_im2col(tap1, Cin, w1_ref), 0)

    # --- CvBlock conv2: 3x3, stride 1, C -> C ---
    pad2_ref[:, 1:Ho + 1, 1:Wo + 1, :] = y1.reshape(N, Ho, Wo, C)

    def tap2(kh, kw):
        return pad2_ref[:, kh:kh + Ho, kw:kw + Wo, :]

    y2 = bn_relu(conv_im2col(tap2, C, w2_ref), 1)

    # --- CvBlock conv3: 3x3, stride 1, C -> C (pad2 scratch reused) ---
    pad2_ref[:, 1:Ho + 1, 1:Wo + 1, :] = y2.reshape(N, Ho, Wo, C)
    y3 = bn_relu(conv_im2col(tap2, C, w3_ref), 2)

    # Lane-dense store: (C, M) puts M = N*Ho*Wo on lanes.
    y_ref[...] = y3.T


def _torch_conv_w_to_mat(w):
    # PyTorch OIHW (Cout, Cin, 3, 3) -> (9*Cin, Cout), row order (kh, kw, cin)
    cout, cin = w.shape[0], w.shape[1]
    return jnp.transpose(w, (2, 3, 1, 0)).reshape(9 * cin, cout)


def downblock_forward(x_nchw, w1, w2, w3, gammas, betas,
                      mxu_dtype=jnp.bfloat16):
    """DownBlock forward.

    x_nchw : (N, in_ch, H, W) f32 (H, W even)
    w1     : (out_ch, in_ch, 3, 3)   stride-2 conv weight (OIHW, no bias)
    w2, w3 : (out_ch, out_ch, 3, 3)  CvBlock conv weights
    gammas, betas : (3, out_ch) BatchNorm affine params for the three BNs
    """
    N, Cin, H, W = x_nchw.shape
    C = w1.shape[0]
    assert H % 2 == 0 and W % 2 == 0, "even spatial dims expected"
    Ho, Wo = H // 2, W // 2
    M = N * Ho * Wo

    x = jnp.transpose(x_nchw, (0, 2, 3, 1)).astype(jnp.float32)      # NHWC
    w1m = _torch_conv_w_to_mat(w1).astype(mxu_dtype)
    w2m = _torch_conv_w_to_mat(w2).astype(mxu_dtype)
    w3m = _torch_conv_w_to_mat(w3).astype(mxu_dtype)
    gam = jnp.asarray(gammas, jnp.float32).reshape(3, C)
    bet = jnp.asarray(betas, jnp.float32).reshape(3, C)

    itemsize = jnp.dtype(mxu_dtype).itemsize
    flops = 2 * M * (9 * Cin) * C + 2 * (2 * M * (9 * C) * C)
    bytes_accessed = ((x.size + C * M + gam.size + bet.size) * 4
                      + (w1m.size + w2m.size + w3m.size) * itemsize)

    vmem = pl.BlockSpec(memory_space=pltpu.MemorySpace.VMEM)
    y = pl.pallas_call(
        _downblock_kernel,
        out_shape=jax.ShapeDtypeStruct((C, M), jnp.float32),
        in_specs=[vmem] * 6,
        out_specs=vmem,
        scratch_shapes=[
            pltpu.VMEM((N, H + 2, W + 2, Cin), jnp.float32),
            pltpu.VMEM((N, Ho + 2, Wo + 2, C), jnp.float32),
        ],
        compiler_params=pltpu.CompilerParams(
            vmem_limit_bytes=32 * 1024 * 1024),
        cost_estimate=pl.CostEstimate(flops=int(flops),
                                      transcendentals=3 * C,
                                      bytes_accessed=int(bytes_accessed)),
    )(x, w1m, w2m, w3m, gam, bet)

    # (C, N*Ho*Wo) -> (N, C, Ho, Wo): pure permutation glue
    return jnp.transpose(y.reshape(C, N, Ho, Wo), (1, 0, 2, 3))


def _reference_downblock(x, w1, w2, w3, gammas, betas, conv_in_dtype):
    """Pure-JAX reference of DownBlock. `conv_in_dtype` lets us build a
    reference whose matmul-input rounding matches the kernel's MXU dtype."""

    def conv(a, w, stride):
        return jax.lax.conv_general_dilated(
            a.astype(conv_in_dtype), w.astype(conv_in_dtype),
            window_strides=(stride, stride),
            padding=[(1, 1), (1, 1)],
            dimension_numbers=('NCHW', 'OIHW', 'NCHW'),
            preferred_element_type=jnp.float32,
            precision=jax.lax.Precision.HIGHEST)

    def bn_relu(y, g, b):
        mean = jnp.mean(y, axis=(0, 2, 3), keepdims=True)
        var = jnp.mean((y - mean) ** 2, axis=(0, 2, 3), keepdims=True)
        yn = (y - mean) * jax.lax.rsqrt(var + EPS)
        yn = yn * g.reshape(1, -1, 1, 1) + b.reshape(1, -1, 1, 1)
        return jnp.maximum(yn, 0.0)

    y = bn_relu(conv(x, w1, 2), gammas[0], betas[0])    # stride-2 conv + BN + ReLU
    y = bn_relu(conv(y, w2, 1), gammas[1], betas[1])    # CvBlock conv1
    y = bn_relu(conv(y, w3, 1), gammas[2], betas[2])    # CvBlock conv2
    return y


if __name__ == "__main__":
    key = jax.random.PRNGKey(0)
    kx, k1, k2, k3, kg, kb = jax.random.split(key, 6)

    N, in_ch, out_ch, H, W = 2, 4, 8, 16, 16
    x = jax.random.normal(kx, (N, in_ch, H, W), dtype=jnp.float32)
    # Deterministic synthetic parameters (PyTorch OIHW conv weights, BN affine).
    w1 = 0.2 * jax.random.normal(k1, (out_ch, in_ch, 3, 3), dtype=jnp.float32)
    w2 = 0.2 * jax.random.normal(k2, (out_ch, out_ch, 3, 3), dtype=jnp.float32)
    w3 = 0.2 * jax.random.normal(k3, (out_ch, out_ch, 3, 3), dtype=jnp.float32)
    gammas = 1.0 + 0.1 * jax.random.normal(kg, (3, out_ch), dtype=jnp.float32)
    betas = 0.1 * jax.random.normal(kb, (3, out_ch), dtype=jnp.float32)

    out = downblock_forward(x, w1, w2, w3, gammas, betas,
                            mxu_dtype=jnp.bfloat16)
    out = jax.block_until_ready(out)
    Ho, Wo = H // 2, W // 2
    assert out.shape == (N, out_ch, Ho, Wo), out.shape

    # Tight check vs a reference with identical bf16 MXU-input rounding
    # (validates conv/stride/padding/BN/ReLU semantics; only accumulation
    #  order and the BN variance formulation differ, both in f32).
    ref_bf16 = jax.block_until_ready(
        _reference_downblock(x, w1, w2, w3, gammas, betas,
                             conv_in_dtype=jnp.bfloat16))
    err_m = float(jnp.max(jnp.abs(out - ref_bf16)))
    assert jnp.allclose(out, ref_bf16, atol=2e-3, rtol=2e-3), err_m

    # Smoke check vs the exact-f32 module semantics: the only deviation is the
    # deliberate bf16 rounding of the MXU inputs.
    ref_f32 = jax.block_until_ready(
        _reference_downblock(x, w1, w2, w3, gammas, betas,
                             conv_in_dtype=jnp.float32))
    err_f = float(jnp.max(jnp.abs(out - ref_f32)))
    assert jnp.allclose(out, ref_f32, atol=1e-1, rtol=1e-1), err_f

    print("KERNEL_OK")
</pallas_src>

<mosaic_0001>
module attributes {stable_mosaic.version = 11 : i64} {
  func.func @_downblock_kernel(%arg0: memref<2x16x16x4xf32, #tpu.memory_space<vmem>>, %arg1: memref<36x8xbf16, #tpu.memory_space<vmem>>, %arg2: memref<72x8xbf16, #tpu.memory_space<vmem>>, %arg3: memref<72x8xbf16, #tpu.memory_space<vmem>>, %arg4: memref<3x8xf32, #tpu.memory_space<vmem>>, %arg5: memref<3x8xf32, #tpu.memory_space<vmem>>, %arg6: memref<8x128xf32, #tpu.memory_space<vmem>>, %arg7: memref<2x18x18x4xf32, #tpu.memory_space<vmem>>, %arg8: memref<2x10x10x8xf32, #tpu.memory_space<vmem>>) attributes {dimension_semantics = [], scalar_prefetch = 0 : i64, scratch_operands = 2 : i64, tpu.core_type = #tpu.core_type<tc>} {
    %cst = arith.constant 0.000000e+00 : f32
    %0 = vector.broadcast %cst : f32 to vector<2x18x18x4xf32>
    %c0 = arith.constant 0 : index
    %c0_0 = arith.constant 0 : index
    %c0_1 = arith.constant 0 : index
    %c0_2 = arith.constant 0 : index
    %1 = vector.load %arg7[%c0, %c0_0, %c0_1, %c0_2] : memref<2x18x18x4xf32, #tpu.memory_space<vmem>>, vector<2x18x18x4xf32>
    tpu.vector_store %arg7[%c0, %c0_0, %c0_1, %c0_2], %0 {strides = array<i32>} : memref<2x18x18x4xf32, #tpu.memory_space<vmem>>, vector<2x18x18x4xf32>,
    %cst_3 = arith.constant 0.000000e+00 : f32
    %2 = vector.broadcast %cst_3 : f32 to vector<2x10x10x8xf32>
    %c0_4 = arith.constant 0 : index
    %c0_5 = arith.constant 0 : index
    %c0_6 = arith.constant 0 : index
    %c0_7 = arith.constant 0 : index
    %3 = vector.load %arg8[%c0_4, %c0_5, %c0_6, %c0_7] : memref<2x10x10x8xf32, #tpu.memory_space<vmem>>, vector<2x10x10x8xf32>
    tpu.vector_store %arg8[%c0_4, %c0_5, %c0_6, %c0_7], %2 {strides = array<i32>} : memref<2x10x10x8xf32, #tpu.memory_space<vmem>>, vector<2x10x10x8xf32>,
    %c0_8 = arith.constant 0 : index
    %c0_9 = arith.constant 0 : index
    %c0_10 = arith.constant 0 : index
    %c0_11 = arith.constant 0 : index
    %4 = vector.load %arg0[%c0_8, %c0_9, %c0_10, %c0_11] : memref<2x16x16x4xf32, #tpu.memory_space<vmem>>, vector<2x16x16x4xf32>
    %c0_12 = arith.constant 0 : index
    %c1 = arith.constant 1 : index
    %c1_13 = arith.constant 1 : index
    %c0_14 = arith.constant 0 : index
    %5 = vector.load %arg7[%c0_12, %c1, %c1_13, %c0_14] : memref<2x18x18x4xf32, #tpu.memory_space<vmem>>, vector<2x16x16x4xf32>
    tpu.vector_store %arg7[%c0_12, %c1, %c1_13, %c0_14], %4 {strides = array<i32>} : memref<2x18x18x4xf32, #tpu.memory_space<vmem>>, vector<2x16x16x4xf32>,
    %c0_15 = arith.constant 0 : index
    %c0_16 = arith.constant 0 : index
    %c0_17 = arith.constant 0 : index
    %c0_18 = arith.constant 0 : index
    %6 = tpu.strided_load %arg7[%c0_15, %c0_16, %c0_17, %c0_18] {strides = array<i32: 1, 2, 2, 1>} : memref<2x18x18x4xf32, #tpu.memory_space<vmem>>, vector<2x8x8x4xf32>
    %7 = vector.shape_cast %6 : vector<2x8x8x4xf32> to vector<128x4xf32>
    %8 = arith.truncf %7 : vector<128x4xf32> to vector<128x4xbf16>
    %c0_19 = arith.constant 0 : index
    %c0_20 = arith.constant 0 : index
    %c1_21 = arith.constant 1 : index
    %c0_22 = arith.constant 0 : index
    %9 = tpu.strided_load %arg7[%c0_19, %c0_20, %c1_21, %c0_22] {strides = array<i32: 1, 2, 2, 1>} : memref<2x18x18x4xf32, #tpu.memory_space<vmem>>, vector<2x8x8x4xf32>
    %10 = vector.shape_cast %9 : vector<2x8x8x4xf32> to vector<128x4xf32>
    %11 = arith.truncf %10 : vector<128x4xf32> to vector<128x4xbf16>
    %c0_23 = arith.constant 0 : index
    %c0_24 = arith.constant 0 : index
    %c2 = arith.constant 2 : index
    %c0_25 = arith.constant 0 : index
    %12 = tpu.strided_load %arg7[%c0_23, %c0_24, %c2, %c0_25] {strides = array<i32: 1, 2, 2, 1>} : memref<2x18x18x4xf32, #tpu.memory_space<vmem>>, vector<2x8x8x4xf32>
    %13 = vector.shape_cast %12 : vector<2x8x8x4xf32> to vector<128x4xf32>
    %14 = arith.truncf %13 : vector<128x4xf32> to vector<128x4xbf16>
    %c0_26 = arith.constant 0 : index
    %c1_27 = arith.constant 1 : index
    %c0_28 = arith.constant 0 : index
    %c0_29 = arith.constant 0 : index
    %15 = tpu.strided_load %arg7[%c0_26, %c1_27, %c0_28, %c0_29] {strides = array<i32: 1, 2, 2, 1>} : memref<2x18x18x4xf32, #tpu.memory_space<vmem>>, vector<2x8x8x4xf32>
    %16 = vector.shape_cast %15 : vector<2x8x8x4xf32> to vector<128x4xf32>
    %17 = arith.truncf %16 : vector<128x4xf32> to vector<128x4xbf16>
    %c0_30 = arith.constant 0 : index
    %c1_31 = arith.constant 1 : index
    %c1_32 = arith.constant 1 : index
    %c0_33 = arith.constant 0 : index
    %18 = tpu.strided_load %arg7[%c0_30, %c1_31, %c1_32, %c0_33] {strides = array<i32: 1, 2, 2, 1>} : memref<2x18x18x4xf32, #tpu.memory_space<vmem>>, vector<2x8x8x4xf32>
    %19 = vector.shape_cast %18 : vector<2x8x8x4xf32> to vector<128x4xf32>
    %20 = arith.truncf %19 : vector<128x4xf32> to vector<128x4xbf16>
    %c0_34 = arith.constant 0 : index
    %c1_35 = arith.constant 1 : index
    %c2_36 = arith.constant 2 : index
    %c0_37 = arith.constant 0 : index
    %21 = tpu.strided_load %arg7[%c0_34, %c1_35, %c2_36, %c0_37] {strides = array<i32: 1, 2, 2, 1>} : memref<2x18x18x4xf32, #tpu.memory_space<vmem>>, vector<2x8x8x4xf32>
    %22 = vector.shape_cast %21 : vector<2x8x8x4xf32> to vector<128x4xf32>
    %23 = arith.truncf %22 : vector<128x4xf32> to vector<128x4xbf16>
    %c0_38 = arith.constant 0 : index
    %c2_39 = arith.constant 2 : index
    %c0_40 = arith.constant 0 : index
    %c0_41 = arith.constant 0 : index
    %24 = tpu.strided_load %arg7[%c0_38, %c2_39, %c0_40, %c0_41] {strides = array<i32: 1, 2, 2, 1>} : memref<2x18x18x4xf32, #tpu.memory_space<vmem>>, vector<2x8x8x4xf32>
    %25 = vector.shape_cast %24 : vector<2x8x8x4xf32> to vector<128x4xf32>
    %26 = arith.truncf %25 : vector<128x4xf32> to vector<128x4xbf16>
    %c0_42 = arith.constant 0 : index
    %c2_43 = arith.constant 2 : index
    %c1_44 = arith.constant 1 : index
    %c0_45 = arith.constant 0 : index
    %27 = tpu.strided_load %arg7[%c0_42, %c2_43, %c1_44, %c0_45] {strides = array<i32: 1, 2, 2, 1>} : memref<2x18x18x4xf32, #tpu.memory_space<vmem>>, vector<2x8x8x4xf32>
    %28 = vector.shape_cast %27 : vector<2x8x8x4xf32> to vector<128x4xf32>
    %29 = arith.truncf %28 : vector<128x4xf32> to vector<128x4xbf16>
    %c0_46 = arith.constant 0 : index
    %c2_47 = arith.constant 2 : index
    %c2_48 = arith.constant 2 : index
    %c0_49 = arith.constant 0 : index
    %30 = tpu.strided_load %arg7[%c0_46, %c2_47, %c2_48, %c0_49] {strides = array<i32: 1, 2, 2, 1>} : memref<2x18x18x4xf32, #tpu.memory_space<vmem>>, vector<2x8x8x4xf32>
    %31 = vector.shape_cast %30 : vector<2x8x8x4xf32> to vector<128x4xf32>
    %32 = arith.truncf %31 : vector<128x4xf32> to vector<128x4xbf16>
    %33 = tpu.concatenate %8, %11, %14, %17, %20, %23, %26, %29, %32 in 1 : vector<128x4xbf16>, vector<128x4xbf16>, vector<128x4xbf16>, vector<128x4xbf16>, vector<128x4xbf16>, vector<128x4xbf16>, vector<128x4xbf16>, vector<128x4xbf16>, vector<128x4xbf16> -> vector<128x36xbf16>
    %c0_50 = arith.constant 0 : index
    %c0_51 = arith.constant 0 : index
    %34 = vector.load %arg1[%c0_50, %c0_51] : memref<36x8xbf16, #tpu.memory_space<vmem>>, vector<36x8xbf16>
    %cst_52 = arith.constant dense<0.000000e+00> : vector<128x8xf32>
    %35 = tpu.matmul %33, %34, %cst_52 {dimension_numbers = #tpu.dot_dimension_numbers<[1], [0], [0], [1], [0, 0, 1, 1], [], []>} : vector<128x36xbf16>, vector<36x8xbf16>, vector<128x8xf32> -> vector<128x8xf32>
    %cst_53 = arith.constant dense<0.000000e+00> : vector<8xf32>
    %36 = vector.multi_reduction <add>, %35, %cst_53 [0] : vector<128x8xf32> to vector<8xf32>
    %37 = vector.shape_cast %36 : vector<8xf32> to vector<1x8xf32>
    %38 = arith.mulf %35, %35 : vector<128x8xf32>
    %cst_54 = arith.constant dense<0.000000e+00> : vector<8xf32>
    %39 = vector.multi_reduction <add>, %38, %cst_54 [0] : vector<128x8xf32> to vector<8xf32>
    %40 = vector.shape_cast %39 : vector<8xf32> to vector<1x8xf32>
    %cst_55 = arith.constant 7.812500e-03 : f32
    %41 = vector.broadcast %cst_55 : f32 to vector<1x8xf32>
    %42 = arith.mulf %37, %41 : vector<1x8xf32>
    %cst_56 = arith.constant 7.812500e-03 : f32
    %43 = vector.broadcast %cst_56 : f32 to vector<1x8xf32>
    %44 = arith.mulf %40, %43 : vector<1x8xf32>
    %45 = arith.mulf %42, %42 : vector<1x8xf32>
    %46 = arith.subf %44, %45 : vector<1x8xf32>
    %cst_57 = arith.constant 0.000000e+00 : f32
    %47 = vector.broadcast %cst_57 : f32 to vector<1x8xf32>
    %48 = arith.maximumf %46, %47 : vector<1x8xf32>
    %c0_58 = arith.constant 0 : index
    %c0_59 = arith.constant 0 : index
    %49 = vector.load %arg4[%c0_58, %c0_59] : memref<3x8xf32, #tpu.memory_space<vmem>>, vector<1x8xf32>
    %c0_60 = arith.constant 0 : index
    %c0_61 = arith.constant 0 : index
    %50 = vector.load %arg5[%c0_60, %c0_61] : memref<3x8xf32, #tpu.memory_space<vmem>>, vector<1x8xf32>
    %cst_62 = arith.constant 9.99999974E-6 : f32
    %51 = vector.broadcast %cst_62 : f32 to vector<1x8xf32>
    %52 = arith.addf %48, %51 : vector<1x8xf32>
    %53 = math.rsqrt %52 : vector<1x8xf32>
    %54 = arith.mulf %49, %53 : vector<1x8xf32>
    %55 = vector.broadcast %54 : vector<1x8xf32> to vector<128x8xf32>
    %56 = arith.mulf %35, %55 : vector<128x8xf32>
    %57 = arith.mulf %42, %54 : vector<1x8xf32>
    %58 = arith.subf %50, %57 : vector<1x8xf32>
    %59 = vector.broadcast %58 : vector<1x8xf32> to vector<128x8xf32>
    %60 = arith.addf %56, %59 : vector<128x8xf32>
    %cst_63 = arith.constant 0.000000e+00 : f32
    %61 = vector.broadcast %cst_63 : f32 to vector<128x8xf32>
    %62 = arith.maximumf %60, %61 : vector<128x8xf32>
    %63 = vector.shape_cast %62 : vector<128x8xf32> to vector<2x8x8x8xf32>
    %c0_64 = arith.constant 0 : index
    %c1_65 = arith.constant 1 : index
    %c1_66 = arith.constant 1 : index
    %c0_67 = arith.constant 0 : index
    %64 = vector.load %arg8[%c0_64, %c1_65, %c1_66, %c0_67] : memref<2x10x10x8xf32, #tpu.memory_space<vmem>>, vector<2x8x8x8xf32>
    tpu.vector_store %arg8[%c0_64, %c1_65, %c1_66, %c0_67], %63 {strides = array<i32>} : memref<2x10x10x8xf32, #tpu.memory_space<vmem>>, vector<2x8x8x8xf32>,
    %c0_68 = arith.constant 0 : index
    %c0_69 = arith.constant 0 : index
    %c0_70 = arith.constant 0 : index
    %c0_71 = arith.constant 0 : index
    %65 = vector.load %arg8[%c0_68, %c0_69, %c0_70, %c0_71] : memref<2x10x10x8xf32, #tpu.memory_space<vmem>>, vector<2x8x8x8xf32>
    %66 = vector.shape_cast %65 : vector<2x8x8x8xf32> to vector<128x8xf32>
    %67 = arith.truncf %66 : vector<128x8xf32> to vector<128x8xbf16>
    %c0_72 = arith.constant 0 : index
    %c0_73 = arith.constant 0 : index
    %c1_74 = arith.constant 1 : index
    %c0_75 = arith.constant 0 : index
    %68 = vector.load %arg8[%c0_72, %c0_73, %c1_74, %c0_75] : memref<2x10x10x8xf32, #tpu.memory_space<vmem>>, vector<2x8x8x8xf32>
    %69 = vector.shape_cast %68 : vector<2x8x8x8xf32> to vector<128x8xf32>
    %70 = arith.truncf %69 : vector<128x8xf32> to vector<128x8xbf16>
    %c0_76 = arith.constant 0 : index
    %c0_77 = arith.constant 0 : index
    %c2_78 = arith.constant 2 : index
    %c0_79 = arith.constant 0 : index
    %71 = vector.load %arg8[%c0_76, %c0_77, %c2_78, %c0_79] : memref<2x10x10x8xf32, #tpu.memory_space<vmem>>, vector<2x8x8x8xf32>
    %72 = vector.shape_cast %71 : vector<2x8x8x8xf32> to vector<128x8xf32>
    %73 = arith.truncf %72 : vector<128x8xf32> to vector<128x8xbf16>
    %c0_80 = arith.constant 0 : index
    %c1_81 = arith.constant 1 : index
    %c0_82 = arith.constant 0 : index
    %c0_83 = arith.constant 0 : index
    %74 = vector.load %arg8[%c0_80, %c1_81, %c0_82, %c0_83] : memref<2x10x10x8xf32, #tpu.memory_space<vmem>>, vector<2x8x8x8xf32>
    %75 = vector.shape_cast %74 : vector<2x8x8x8xf32> to vector<128x8xf32>
    %76 = arith.truncf %75 : vector<128x8xf32> to vector<128x8xbf16>
    %c0_84 = arith.constant 0 : index
    %c1_85 = arith.constant 1 : index
    %c1_86 = arith.constant 1 : index
    %c0_87 = arith.constant 0 : index
    %77 = vector.load %arg8[%c0_84, %c1_85, %c1_86, %c0_87] : memref<2x10x10x8xf32, #tpu.memory_space<vmem>>, vector<2x8x8x8xf32>
    %78 = vector.shape_cast %77 : vector<2x8x8x8xf32> to vector<128x8xf32>
    %79 = arith.truncf %78 : vector<128x8xf32> to vector<128x8xbf16>
    %c0_88 = arith.constant 0 : index
    %c1_89 = arith.constant 1 : index
    %c2_90 = arith.constant 2 : index
    %c0_91 = arith.constant 0 : index
    %80 = vector.load %arg8[%c0_88, %c1_89, %c2_90, %c0_91] : memref<2x10x10x8xf32, #tpu.memory_space<vmem>>, vector<2x8x8x8xf32>
    %81 = vector.shape_cast %80 : vector<2x8x8x8xf32> to vector<128x8xf32>
    %82 = arith.truncf %81 : vector<128x8xf32> to vector<128x8xbf16>
    %c0_92 = arith.constant 0 : index
    %c2_93 = arith.constant 2 : index
    %c0_94 = arith.constant 0 : index
    %c0_95 = arith.constant 0 : index
    %83 = vector.load %arg8[%c0_92, %c2_93, %c0_94, %c0_95] : memref<2x10x10x8xf32, #tpu.memory_space<vmem>>, vector<2x8x8x8xf32>
    %84 = vector.shape_cast %83 : vector<2x8x8x8xf32> to vector<128x8xf32>
    %85 = arith.truncf %84 : vector<128x8xf32> to vector<128x8xbf16>
    %c0_96 = arith.constant 0 : index
    %c2_97 = arith.constant 2 : index
    %c1_98 = arith.constant 1 : index
    %c0_99 = arith.constant 0 : index
    %86 = vector.load %arg8[%c0_96, %c2_97, %c1_98, %c0_99] : memref<2x10x10x8xf32, #tpu.memory_space<vmem>>, vector<2x8x8x8xf32>
    %87 = vector.shape_cast %86 : vector<2x8x8x8xf32> to vector<128x8xf32>
    %88 = arith.truncf %87 : vector<128x8xf32> to vector<128x8xbf16>
    %c0_100 = arith.constant 0 : index
    %c2_101 = arith.constant 2 : index
    %c2_102 = arith.constant 2 : index
    %c0_103 = arith.constant 0 : index
    %89 = vector.load %arg8[%c0_100, %c2_101, %c2_102, %c0_103] : memref<2x10x10x8xf32, #tpu.memory_space<vmem>>, vector<2x8x8x8xf32>
    %90 = vector.shape_cast %89 : vector<2x8x8x8xf32> to vector<128x8xf32>
    %91 = arith.truncf %90 : vector<128x8xf32> to vector<128x8xbf16>
    %92 = tpu.concatenate %67, %70, %73, %76, %79, %82, %85, %88, %91 in 1 : vector<128x8xbf16>, vector<128x8xbf16>, vector<128x8xbf16>, vector<128x8xbf16>, vector<128x8xbf16>, vector<128x8xbf16>, vector<128x8xbf16>, vector<128x8xbf16>, vector<128x8xbf16> -> vector<128x72xbf16>
    %c0_104 = arith.constant 0 : index
    %c0_105 = arith.constant 0 : index
    %93 = vector.load %arg2[%c0_104, %c0_105] : memref<72x8xbf16, #tpu.memory_space<vmem>>, vector<72x8xbf16>
    %cst_106 = arith.constant dense<0.000000e+00> : vector<128x8xf32>
    %94 = tpu.matmul %92, %93, %cst_106 {dimension_numbers = #tpu.dot_dimension_numbers<[1], [0], [0], [1], [0, 0, 1, 1], [], []>} : vector<128x72xbf16>, vector<72x8xbf16>, vector<128x8xf32> -> vector<128x8xf32>
    %cst_107 = arith.constant dense<0.000000e+00> : vector<8xf32>
    %95 = vector.multi_reduction <add>, %94, %cst_107 [0] : vector<128x8xf32> to vector<8xf32>
    %96 = vector.shape_cast %95 : vector<8xf32> to vector<1x8xf32>
    %97 = arith.mulf %94, %94 : vector<128x8xf32>
    %cst_108 = arith.constant dense<0.000000e+00> : vector<8xf32>
    %98 = vector.multi_reduction <add>, %97, %cst_108 [0] : vector<128x8xf32> to vector<8xf32>
    %99 = vector.shape_cast %98 : vector<8xf32> to vector<1x8xf32>
    %cst_109 = arith.constant 7.812500e-03 : f32
    %100 = vector.broadcast %cst_109 : f32 to vector<1x8xf32>
    %101 = arith.mulf %96, %100 : vector<1x8xf32>
    %cst_110 = arith.constant 7.812500e-03 : f32
    %102 = vector.broadcast %cst_110 : f32 to vector<1x8xf32>
    %103 = arith.mulf %99, %102 : vector<1x8xf32>
    %104 = arith.mulf %101, %101 : vector<1x8xf32>
    %105 = arith.subf %103, %104 : vector<1x8xf32>
    %cst_111 = arith.constant 0.000000e+00 : f32
    %106 = vector.broadcast %cst_111 : f32 to vector<1x8xf32>
    %107 = arith.maximumf %105, %106 : vector<1x8xf32>
    %c1_112 = arith.constant 1 : index
    %c0_113 = arith.constant 0 : index
    %108 = vector.load %arg4[%c1_112, %c0_113] : memref<3x8xf32, #tpu.memory_space<vmem>>, vector<1x8xf32>
    %c1_114 = arith.constant 1 : index
    %c0_115 = arith.constant 0 : index
    %109 = vector.load %arg5[%c1_114, %c0_115] : memref<3x8xf32, #tpu.memory_space<vmem>>, vector<1x8xf32>
    %cst_116 = arith.constant 9.99999974E-6 : f32
    %110 = vector.broadcast %cst_116 : f32 to vector<1x8xf32>
    %111 = arith.addf %107, %110 : vector<1x8xf32>
    %112 = math.rsqrt %111 : vector<1x8xf32>
    %113 = arith.mulf %108, %112 : vector<1x8xf32>
    %114 = vector.broadcast %113 : vector<1x8xf32> to vector<128x8xf32>
    %115 = arith.mulf %94, %114 : vector<128x8xf32>
    %116 = arith.mulf %101, %113 : vector<1x8xf32>
    %117 = arith.subf %109, %116 : vector<1x8xf32>
    %118 = vector.broadcast %117 : vector<1x8xf32> to vector<128x8xf32>
    %119 = arith.addf %115, %118 : vector<128x8xf32>
    %cst_117 = arith.constant 0.000000e+00 : f32
    %120 = vector.broadcast %cst_117 : f32 to vector<128x8xf32>
    %121 = arith.maximumf %119, %120 : vector<128x8xf32>
    %122 = vector.shape_cast %121 : vector<128x8xf32> to vector<2x8x8x8xf32>
    %c0_118 = arith.constant 0 : index
    %c1_119 = arith.constant 1 : index
    %c1_120 = arith.constant 1 : index
    %c0_121 = arith.constant 0 : index
    %123 = vector.load %arg8[%c0_118, %c1_119, %c1_120, %c0_121] : memref<2x10x10x8xf32, #tpu.memory_space<vmem>>, vector<2x8x8x8xf32>
    tpu.vector_store %arg8[%c0_118, %c1_119, %c1_120, %c0_121], %122 {strides = array<i32>} : memref<2x10x10x8xf32, #tpu.memory_space<vmem>>, vector<2x8x8x8xf32>,
    %c0_122 = arith.constant 0 : index
    %c0_123 = arith.constant 0 : index
    %c0_124 = arith.constant 0 : index
    %c0_125 = arith.constant 0 : index
    %124 = vector.load %arg8[%c0_122, %c0_123, %c0_124, %c0_125] : memref<2x10x10x8xf32, #tpu.memory_space<vmem>>, vector<2x8x8x8xf32>
    %125 = vector.shape_cast %124 : vector<2x8x8x8xf32> to vector<128x8xf32>
    %126 = arith.truncf %125 : vector<128x8xf32> to vector<128x8xbf16>
    %c0_126 = arith.constant 0 : index
    %c0_127 = arith.constant 0 : index
    %c1_128 = arith.constant 1 : index
    %c0_129 = arith.constant 0 : index
    %127 = vector.load %arg8[%c0_126, %c0_127, %c1_128, %c0_129] : memref<2x10x10x8xf32, #tpu.memory_space<vmem>>, vector<2x8x8x8xf32>
    %128 = vector.shape_cast %127 : vector<2x8x8x8xf32> to vector<128x8xf32>
    %129 = arith.truncf %128 : vector<128x8xf32> to vector<128x8xbf16>
    %c0_130 = arith.constant 0 : index
    %c0_131 = arith.constant 0 : index
    %c2_132 = arith.constant 2 : index
    %c0_133 = arith.constant 0 : index
    %130 = vector.load %arg8[%c0_130, %c0_131, %c2_132, %c0_133] : memref<2x10x10x8xf32, #tpu.memory_space<vmem>>, vector<2x8x8x8xf32>
    %131 = vector.shape_cast %130 : vector<2x8x8x8xf32> to vector<128x8xf32>
    %132 = arith.truncf %131 : vector<128x8xf32> to vector<128x8xbf16>
    %c0_134 = arith.constant 0 : index
    %c1_135 = arith.constant 1 : index
    %c0_136 = arith.constant 0 : index
    %c0_137 = arith.constant 0 : index
    %133 = vector.load %arg8[%c0_134, %c1_135, %c0_136, %c0_137] : memref<2x10x10x8xf32, #tpu.memory_space<vmem>>, vector<2x8x8x8xf32>
    %134 = vector.shape_cast %133 : vector<2x8x8x8xf32> to vector<128x8xf32>
    %135 = arith.truncf %134 : vector<128x8xf32> to vector<128x8xbf16>
    %c0_138 = arith.constant 0 : index
    %c1_139 = arith.constant 1 : index
    %c1_140 = arith.constant 1 : index
    %c0_141 = arith.constant 0 : index
    %136 = vector.load %arg8[%c0_138, %c1_139, %c1_140, %c0_141] : memref<2x10x10x8xf32, #tpu.memory_space<vmem>>, vector<2x8x8x8xf32>
    %137 = vector.shape_cast %136 : vector<2x8x8x8xf32> to vector<128x8xf32>
    %138 = arith.truncf %137 : vector<128x8xf32> to vector<128x8xbf16>
    %c0_142 = arith.constant 0 : index
    %c1_143 = arith.constant 1 : index
    %c2_144 = arith.constant 2 : index
    %c0_145 = arith.constant 0 : index
    %139 = vector.load %arg8[%c0_142, %c1_143, %c2_144, %c0_145] : memref<2x10x10x8xf32, #tpu.memory_space<vmem>>, vector<2x8x8x8xf32>
    %140 = vector.shape_cast %139 : vector<2x8x8x8xf32> to vector<128x8xf32>
    %141 = arith.truncf %140 : vector<128x8xf32> to vector<128x8xbf16>
    %c0_146 = arith.constant 0 : index
    %c2_147 = arith.constant 2 : index
    %c0_148 = arith.constant 0 : index
    %c0_149 = arith.constant 0 : index
    %142 = vector.load %arg8[%c0_146, %c2_147, %c0_148, %c0_149] : memref<2x10x10x8xf32, #tpu.memory_space<vmem>>, vector<2x8x8x8xf32>
    %143 = vector.shape_cast %142 : vector<2x8x8x8xf32> to vector<128x8xf32>
    %144 = arith.truncf %143 : vector<128x8xf32> to vector<128x8xbf16>
    %c0_150 = arith.constant 0 : index
    %c2_151 = arith.constant 2 : index
    %c1_152 = arith.constant 1 : index
    %c0_153 = arith.constant 0 : index
    %145 = vector.load %arg8[%c0_150, %c2_151, %c1_152, %c0_153] : memref<2x10x10x8xf32, #tpu.memory_space<vmem>>, vector<2x8x8x8xf32>
    %146 = vector.shape_cast %145 : vector<2x8x8x8xf32> to vector<128x8xf32>
    %147 = arith.truncf %146 : vector<128x8xf32> to vector<128x8xbf16>
    %c0_154 = arith.constant 0 : index
    %c2_155 = arith.constant 2 : index
    %c2_156 = arith.constant 2 : index
    %c0_157 = arith.constant 0 : index
    %148 = vector.load %arg8[%c0_154, %c2_155, %c2_156, %c0_157] : memref<2x10x10x8xf32, #tpu.memory_space<vmem>>, vector<2x8x8x8xf32>
    %149 = vector.shape_cast %148 : vector<2x8x8x8xf32> to vector<128x8xf32>
    %150 = arith.truncf %149 : vector<128x8xf32> to vector<128x8xbf16>
    %151 = tpu.concatenate %126, %129, %132, %135, %138, %141, %144, %147, %150 in 1 : vector<128x8xbf16>, vector<128x8xbf16>, vector<128x8xbf16>, vector<128x8xbf16>, vector<128x8xbf16>, vector<128x8xbf16>, vector<128x8xbf16>, vector<128x8xbf16>, vector<128x8xbf16> -> vector<128x72xbf16>
    %c0_158 = arith.constant 0 : index
    %c0_159 = arith.constant 0 : index
    %152 = vector.load %arg3[%c0_158, %c0_159] : memref<72x8xbf16, #tpu.memory_space<vmem>>, vector<72x8xbf16>
    %cst_160 = arith.constant dense<0.000000e+00> : vector<128x8xf32>
    %153 = tpu.matmul %151, %152, %cst_160 {dimension_numbers = #tpu.dot_dimension_numbers<[1], [0], [0], [1], [0, 0, 1, 1], [], []>} : vector<128x72xbf16>, vector<72x8xbf16>, vector<128x8xf32> -> vector<128x8xf32>
    %cst_161 = arith.constant dense<0.000000e+00> : vector<8xf32>
    %154 = vector.multi_reduction <add>, %153, %cst_161 [0] : vector<128x8xf32> to vector<8xf32>
    %155 = vector.shape_cast %154 : vector<8xf32> to vector<1x8xf32>
    %156 = arith.mulf %153, %153 : vector<128x8xf32>
    %cst_162 = arith.constant dense<0.000000e+00> : vector<8xf32>
    %157 = vector.multi_reduction <add>, %156, %cst_162 [0] : vector<128x8xf32> to vector<8xf32>
    %158 = vector.shape_cast %157 : vector<8xf32> to vector<1x8xf32>
    %cst_163 = arith.constant 7.812500e-03 : f32
    %159 = vector.broadcast %cst_163 : f32 to vector<1x8xf32>
    %160 = arith.mulf %155, %159 : vector<1x8xf32>
    %cst_164 = arith.constant 7.812500e-03 : f32
    %161 = vector.broadcast %cst_164 : f32 to vector<1x8xf32>
    %162 = arith.mulf %158, %161 : vector<1x8xf32>
    %163 = arith.mulf %160, %160 : vector<1x8xf32>
    %164 = arith.subf %162, %163 : vector<1x8xf32>
    %cst_165 = arith.constant 0.000000e+00 : f32
    %165 = vector.broadcast %cst_165 : f32 to vector<1x8xf32>
    %166 = arith.maximumf %164, %165 : vector<1x8xf32>
    %c2_166 = arith.constant 2 : index
    %c0_167 = arith.constant 0 : index
    %167 = vector.load %arg4[%c2_166, %c0_167] : memref<3x8xf32, #tpu.memory_space<vmem>>, vector<1x8xf32>
    %c2_168 = arith.constant 2 : index
    %c0_169 = arith.constant 0 : index
    %168 = vector.load %arg5[%c2_168, %c0_169] : memref<3x8xf32, #tpu.memory_space<vmem>>, vector<1x8xf32>
    %cst_170 = arith.constant 9.99999974E-6 : f32
    %169 = vector.broadcast %cst_170 : f32 to vector<1x8xf32>
    %170 = arith.addf %166, %169 : vector<1x8xf32>
    %171 = math.rsqrt %170 : vector<1x8xf32>
    %172 = arith.mulf %167, %171 : vector<1x8xf32>
    %173 = vector.broadcast %172 : vector<1x8xf32> to vector<128x8xf32>
    %174 = arith.mulf %153, %173 : vector<128x8xf32>
    %175 = arith.mulf %160, %172 : vector<1x8xf32>
    %176 = arith.subf %168, %175 : vector<1x8xf32>
    %177 = vector.broadcast %176 : vector<1x8xf32> to vector<128x8xf32>
    %178 = arith.addf %174, %177 : vector<128x8xf32>
    %cst_171 = arith.constant 0.000000e+00 : f32
    %179 = vector.broadcast %cst_171 : f32 to vector<128x8xf32>
    %180 = arith.maximumf %178, %179 : vector<128x8xf32>
    %181 = tpu.transpose %180, [1, 0] : vector<128x8xf32> -> vector<8x128xf32>
    %c0_172 = arith.constant 0 : index
    %c0_173 = arith.constant 0 : index
    %182 = vector.load %arg6[%c0_172, %c0_173] : memref<8x128xf32, #tpu.memory_space<vmem>>, vector<8x128xf32>
    tpu.vector_store %arg6[%c0_172, %c0_173], %181 {strides = array<i32>} : memref<8x128xf32, #tpu.memory_space<vmem>>, vector<8x128xf32>,
    return
  }
}

</mosaic_0001>

<llo_original>
// kernel: tpu_custom_call.1
$region0: #{tpu_custom_call.1}
  #allocation0 [shape = 'u32[]', space=smem, size = 0x4, offset = 0x4, fixed_abs, tag = 'smem constant byte address 0x4 - core index']
  #allocation1 [shape = 'u32[144,128]{1,0:T(1,128)}', space=vmem, size = 0x12000, scoped, tag = 'internal scratch']
  #allocation2 [shape = 'f32[2,18,18,4]{3,2,1,0:T(8,128)}', space=vmem, size = 0x6c000, scoped, tag = 'scratch operand']
  #allocation3 [shape = 'f32[2,10,10,8]{3,2,1,0:T(8,128)}', space=vmem, size = 0x28000, scoped, tag = 'scratch operand']
  %s0 = inlined_call_operand.vmem [shape: f32[2,16,16,4], index: 0, kind: input, shape index: {}]
  %s1 = inlined_call_operand.vmem [shape: bf16[36,8], index: 1, kind: input, shape index: {}]
  %s2 = inlined_call_operand.vmem [shape: bf16[72,8], index: 2, kind: input, shape index: {}]
  %s3 = inlined_call_operand.vmem [shape: bf16[72,8], index: 3, kind: input, shape index: {}]
  %s4 = inlined_call_operand.vmem [shape: f32[3,8], index: 4, kind: input, shape index: {}]
  %s5 = inlined_call_operand.vmem [shape: f32[3,8], index: 5, kind: input, shape index: {}]
  %s6 = inlined_call_operand.hbm [shape: f32[8,128], index: 6, kind: output, shape index: {}]
  %s7 = sld [smem:[#allocation0]]
  $region34: #{tpu_custom_call.1} parent=0
    _
  %s9 = ssub.s32 1, %s7
  %s10 = scalar_select 0, %s9, %s7
  $region1: #{tpu_custom_call.1} parent=0
    #allocation4 [shape = 'u8[4096]{0}', space=vmem, size = 0x1000, scoped, tag = 'output window, operand 0, single buffered']
    #allocation5 [shape = 's32[1]{0}', space=sflag, size = 0x4, scoped, tag = 'scoped memory for tpu_custom_call.1']
    %11 = vsyncpa [#allocation5], 0
    // Predicated region
    $region2: #{tpu_custom_call.1} parent=1 // pred_check
      _
    $region3: #{tpu_custom_call.1} parent=1 // pred_check_branch
      %13 = sbr.rel (0) target = $region5
    $region4: #{tpu_custom_call.1} parent=1 // pred_region
      _
    $region5: #{tpu_custom_call.1} parent=1 // pred_fallthru
      _
    // Predicated region
    $region6: #{tpu_custom_call.1} parent=1 // pred_check
      _
    $region7: #{tpu_custom_call.1} parent=1 // pred_check_branch
      %15 = sbr.rel (0) target = $region9
    $region8: #{tpu_custom_call.1} parent=1 // pred_region
      _
    $region9: #{tpu_custom_call.1} parent=1 // pred_fallthru
      _
    // Predicated region
    $region10: #{tpu_custom_call.1} parent=1 // pred_check
      _
    $region11: #{tpu_custom_call.1} parent=1 // pred_check_branch
      %17 = sbr.rel (0) target = $region13
    $region12: #{tpu_custom_call.1} parent=1 // pred_region
      _
    $region13: #{tpu_custom_call.1} parent=1 // pred_fallthru
      _
    // Predicated region
    $region14: #{tpu_custom_call.1} parent=1 // pred_check
      _
    $region15: #{tpu_custom_call.1} parent=1 // pred_check_branch
      %19 = sbr.rel (0) target = $region17
    $region16: #{tpu_custom_call.1} parent=1 // pred_region
      _
    $region17: #{tpu_custom_call.1} parent=1 // pred_fallthru
      _
    // Predicated region
    $region18: #{tpu_custom_call.1} parent=1 // pred_check
      _
    $region19: #{tpu_custom_call.1} parent=1 // pred_check_branch
      %21 = sbr.rel (0) target = $region21
    $region20: #{tpu_custom_call.1} parent=1 // pred_region
      _
    $region21: #{tpu_custom_call.1} parent=1 // pred_fallthru
      _
    // Predicated region
    $region22: #{tpu_custom_call.1} parent=1 // pred_check
      _
    $region23: #{tpu_custom_call.1} parent=1 // pred_check_branch
      %23 = sbr.rel (0) target = $region25
    $region24: #{tpu_custom_call.1} parent=1 // pred_region
      _
    $region25: #{tpu_custom_call.1} parent=1 // pred_fallthru
      _
    %vm25 = vcmask 31744
    %26 = vst.msk [vmem:[#allocation2] sm:$0xff] %vm25, 0.0
    %27 = vst.msk [vmem:[#allocation2 + $0x8] sm:$0xff] %vm25, 0.0
    %vm28 = vcmask 25600
    %29 = vst.msk [vmem:[#allocation2 + $0x10] sm:$0x3] %vm28, 0.0
    %30 = vst.msk [vmem:[#allocation2 + $0x18] sm:$0xff] %vm25, 0.0
    %31 = vst.msk [vmem:[#allocation2 + $0x20] sm:$0xff] %vm25, 0.0
    %32 = vst.msk [vmem:[#allocation2 + $0x28] sm:$0x3] %vm28, 0.0
    %33 = vst.msk [vmem:[#allocation2 + $0x30] sm:$0xff] %vm25, 0.0
    %34 = vst.msk [vmem:[#allocation2 + $0x38] sm:$0xff] %vm25, 0.0
    %35 = vst.msk [vmem:[#allocation2 + $0x40] sm:$0x3] %vm28, 0.0
    %36 = vst.msk [vmem:[#allocation2 + $0x48] sm:$0xff] %vm25, 0.0
    %37 = vst.msk [vmem:[#allocation2 + $0x50] sm:$0xff] %vm25, 0.0
    %38 = vst.msk [vmem:[#allocation2 + $0x58] sm:$0x3] %vm28, 0.0
    %39 = vst.msk [vmem:[#allocation2 + $0x60] sm:$0xff] %vm25, 0.0
    %40 = vst.msk [vmem:[#allocation2 + $0x68] sm:$0xff] %vm25, 0.0
    %41 = vst.msk [vmem:[#allocation2 + $0x70] sm:$0x3] %vm28, 0.0
    %42 = vst.msk [vmem:[#allocation2 + $0x78] sm:$0xff] %vm25, 0.0
    %43 = vst.msk [vmem:[#allocation2 + $0x80] sm:$0xff] %vm25, 0.0
    %44 = vst.msk [vmem:[#allocation2 + $0x88] sm:$0x3] %vm28, 0.0
    %45 = vst.msk [vmem:[#allocation2 + $0x90] sm:$0xff] %vm25, 0.0
    %46 = vst.msk [vmem:[#allocation2 + $0x98] sm:$0xff] %vm25, 0.0
    %47 = vst.msk [vmem:[#allocation2 + $0xa0] sm:$0x3] %vm28, 0.0
    %48 = vst.msk [vmem:[#allocation2 + $0xa8] sm:$0xff] %vm25, 0.0
    %49 = vst.msk [vmem:[#allocation2 + $0xb0] sm:$0xff] %vm25, 0.0
    %50 = vst.msk [vmem:[#allocation2 + $0xb8] sm:$0x3] %vm28, 0.0
    %51 = vst.msk [vmem:[#allocation2 + $0xc0] sm:$0xff] %vm25, 0.0
    %52 = vst.msk [vmem:[#allocation2 + $0xc8] sm:$0xff] %vm25, 0.0
    %53 = vst.msk [vmem:[#allocation2 + $0xd0] sm:$0x3] %vm28, 0.0
    %54 = vst.msk [vmem:[#allocation2 + $0xd8] sm:$0xff] %vm25, 0.0
    %55 = vst.msk [vmem:[#allocation2 + $0xe0] sm:$0xff] %vm25, 0.0
    %56 = vst.msk [vmem:[#allocation2 + $0xe8] sm:$0x3] %vm28, 0.0
    %57 = vst.msk [vmem:[#allocation2 + $0xf0] sm:$0xff] %vm25, 0.0
    %58 = vst.msk [vmem:[#allocation2 + $0xf8] sm:$0xff] %vm25, 0.0
    %59 = vst.msk [vmem:[#allocation2 + $0x100] sm:$0x3] %vm28, 0.0
    %60 = vst.msk [vmem:[#allocation2 + $0x108] sm:$0xff] %vm25, 0.0
    %61 = vst.msk [vmem:[#allocation2 + $0x110] sm:$0xff] %vm25, 0.0
    %62 = vst.msk [vmem:[#allocation2 + $0x118] sm:$0x3] %vm28, 0.0
    %63 = vst.msk [vmem:[#allocation2 + $0x120] sm:$0xff] %vm25, 0.0
    %64 = vst.msk [vmem:[#allocation2 + $0x128] sm:$0xff] %vm25, 0.0
    %65 = vst.msk [vmem:[#allocation2 + $0x130] sm:$0x3] %vm28, 0.0
    %66 = vst.msk [vmem:[#allocation2 + $0x138] sm:$0xff] %vm25, 0.0
    %67 = vst.msk [vmem:[#allocation2 + $0x140] sm:$0xff] %vm25, 0.0
    %68 = vst.msk [vmem:[#allocation2 + $0x148] sm:$0x3] %vm28, 0.0
    %69 = vst.msk [vmem:[#allocation2 + $0x150] sm:$0xff] %vm25, 0.0
    %70 = vst.msk [vmem:[#allocation2 + $0x158] sm:$0xff] %vm25, 0.0
    %71 = vst.msk [vmem:[#allocation2 + $0x160] sm:$0x3] %vm28, 0.0
    %72 = vst.msk [vmem:[#allocation2 + $0x168] sm:$0xff] %vm25, 0.0
    %73 = vst.msk [vmem:[#allocation2 + $0x170] sm:$0xff] %vm25, 0.0
    %74 = vst.msk [vmem:[#allocation2 + $0x178] sm:$0x3] %vm28, 0.0
    %75 = vst.msk [vmem:[#allocation2 + $0x180] sm:$0xff] %vm25, 0.0
    %76 = vst.msk [vmem:[#allocation2 + $0x188] sm:$0xff] %vm25, 0.0
    %77 = vst.msk [vmem:[#allocation2 + $0x190] sm:$0x3] %vm28, 0.0
    %78 = vst.msk [vmem:[#allocation2 + $0x198] sm:$0xff] %vm25, 0.0
    %79 = vst.msk [vmem:[#allocation2 + $0x1a0] sm:$0xff] %vm25, 0.0
    %80 = vst.msk [vmem:[#allocation2 + $0x1a8] sm:$0x3] %vm28, 0.0
    %81 = vst.msk [vmem:[#allocation2 + $0x1b0] sm:$0xff] %vm25, 0.0
    %82 = vst.msk [vmem:[#allocation2 + $0x1b8] sm:$0xff] %vm25, 0.0
    %83 = vst.msk [vmem:[#allocation2 + $0x1c0] sm:$0x3] %vm28, 0.0
    %84 = vst.msk [vmem:[#allocation2 + $0x1c8] sm:$0xff] %vm25, 0.0
    %85 = vst.msk [vmem:[#allocation2 + $0x1d0] sm:$0xff] %vm25, 0.0
    %86 = vst.msk [vmem:[#allocation2 + $0x1d8] sm:$0x3] %vm28, 0.0
    %87 = vst.msk [vmem:[#allocation2 + $0x1e0] sm:$0xff] %vm25, 0.0
    %88 = vst.msk [vmem:[#allocation2 + $0x1e8] sm:$0xff] %vm25, 0.0
    %89 = vst.msk [vmem:[#allocation2 + $0x1f0] sm:$0x3] %vm28, 0.0
    %90 = vst.msk [vmem:[#allocation2 + $0x1f8] sm:$0xff] %vm25, 0.0
    %91 = vst.msk [vmem:[#allocation2 + $0x200] sm:$0xff] %vm25, 0.0
    %92 = vst.msk [vmem:[#allocation2 + $0x208] sm:$0x3] %vm28, 0.0
    %93 = vst.msk [vmem:[#allocation2 + $0x210] sm:$0xff] %vm25, 0.0
    %94 = vst.msk [vmem:[#allocation2 + $0x218] sm:$0xff] %vm25, 0.0
    %95 = vst.msk [vmem:[#allocation2 + $0x220] sm:$0x3] %vm28, 0.0
    %96 = vst.msk [vmem:[#allocation2 + $0x228] sm:$0xff] %vm25, 0.0
    %97 = vst.msk [vmem:[#allocation2 + $0x230] sm:$0xff] %vm25, 0.0
    %98 = vst.msk [vmem:[#allocation2 + $0x238] sm:$0x3] %vm28, 0.0
    %99 = vst.msk [vmem:[#allocation2 + $0x240] sm:$0xff] %vm25, 0.0
    %100 = vst.msk [vmem:[#allocation2 + $0x248] sm:$0xff] %vm25, 0.0
    %101 = vst.msk [vmem:[#allocation2 + $0x250] sm:$0x3] %vm28, 0.0
    %102 = vst.msk [vmem:[#allocation2 + $0x258] sm:$0xff] %vm25, 0.0
    %103 = vst.msk [vmem:[#allocation2 + $0x260] sm:$0xff] %vm25, 0.0
    %104 = vst.msk [vmem:[#allocation2 + $0x268] sm:$0x3] %vm28, 0.0
    %105 = vst.msk [vmem:[#allocation2 + $0x270] sm:$0xff] %vm25, 0.0
    %106 = vst.msk [vmem:[#allocation2 + $0x278] sm:$0xff] %vm25, 0.0
    %107 = vst.msk [vmem:[#allocation2 + $0x280] sm:$0x3] %vm28, 0.0
    %108 = vst.msk [vmem:[#allocation2 + $0x288] sm:$0xff] %vm25, 0.0
    %109 = vst.msk [vmem:[#allocation2 + $0x290] sm:$0xff] %vm25, 0.0
    %110 = vst.msk [vmem:[#allocation2 + $0x298] sm:$0x3] %vm28, 0.0
    %111 = vst.msk [vmem:[#allocation2 + $0x2a0] sm:$0xff] %vm25, 0.0
    %112 = vst.msk [vmem:[#allocation2 + $0x2a8] sm:$0xff] %vm25, 0.0
    %113 = vst.msk [vmem:[#allocation2 + $0x2b0] sm:$0x3] %vm28, 0.0
    %114 = vst.msk [vmem:[#allocation2 + $0x2b8] sm:$0xff] %vm25, 0.0
    %115 = vst.msk [vmem:[#allocation2 + $0x2c0] sm:$0xff] %vm25, 0.0
    %116 = vst.msk [vmem:[#allocation2 + $0x2c8] sm:$0x3] %vm28, 0.0
    %117 = vst.msk [vmem:[#allocation2 + $0x2d0] sm:$0xff] %vm25, 0.0
    %118 = vst.msk [vmem:[#allocation2 + $0x2d8] sm:$0xff] %vm25, 0.0
    %119 = vst.msk [vmem:[#allocation2 + $0x2e0] sm:$0x3] %vm28, 0.0
    %120 = vst.msk [vmem:[#allocation2 + $0x2e8] sm:$0xff] %vm25, 0.0
    %121 = vst.msk [vmem:[#allocation2 + $0x2f0] sm:$0xff] %vm25, 0.0
    %122 = vst.msk [vmem:[#allocation2 + $0x2f8] sm:$0x3] %vm28, 0.0
    %123 = vst.msk [vmem:[#allocation2 + $0x300] sm:$0xff] %vm25, 0.0
    %124 = vst.msk [vmem:[#allocation2 + $0x308] sm:$0xff] %vm25, 0.0
    %125 = vst.msk [vmem:[#allocation2 + $0x310] sm:$0x3] %vm28, 0.0
    %126 = vst.msk [vmem:[#allocation2 + $0x318] sm:$0xff] %vm25, 0.0
    %127 = vst.msk [vmem:[#allocation2 + $0x320] sm:$0xff] %vm25, 0.0
    %128 = vst.msk [vmem:[#allocation2 + $0x328] sm:$0x3] %vm28, 0.0
    %129 = vst.msk [vmem:[#allocation2 + $0x330] sm:$0xff] %vm25, 0.0
    %130 = vst.msk [vmem:[#allocation2 + $0x338] sm:$0xff] %vm25, 0.0
    %131 = vst.msk [vmem:[#allocation2 + $0x340] sm:$0x3] %vm28, 0.0
    %132 = vst.msk [vmem:[#allocation2 + $0x348] sm:$0xff] %vm25, 0.0
    %133 = vst.msk [vmem:[#allocation2 + $0x350] sm:$0xff] %vm25, 0.0
    %134 = vst.msk [vmem:[#allocation2 + $0x358] sm:$0x3] %vm28, 0.0
    %vm135 = vcmask 64512
    %136 = vst.msk [vmem:[#allocation3] sm:$0xff] %vm135, 0.0
    %vm137 = vcmask 58368
    %138 = vst.msk [vmem:[#allocation3 + $0x8] sm:$0x3] %vm137, 0.0
    %139 = vst.msk [vmem:[#allocation3 + $0x10] sm:$0xff] %vm135, 0.0
    %140 = vst.msk [vmem:[#allocation3 + $0x18] sm:$0x3] %vm137, 0.0
    %141 = vst.msk [vmem:[#allocation3 + $0x20] sm:$0xff] %vm135, 0.0
    %142 = vst.msk [vmem:[#allocation3 + $0x28] sm:$0x3] %vm137, 0.0
    %143 = vst.msk [vmem:[#allocation3 + $0x30] sm:$0xff] %vm135, 0.0
    %144 = vst.msk [vmem:[#allocation3 + $0x38] sm:$0x3] %vm137, 0.0
    %145 = vst.msk [vmem:[#allocation3 + $0x40] sm:$0xff] %vm135, 0.0
    %146 = vst.msk [vmem:[#allocation3 + $0x48] sm:$0x3] %vm137, 0.0
    %147 = vst.msk [vmem:[#allocation3 + $0x50] sm:$0xff] %vm135, 0.0
    %148 = vst.msk [vmem:[#allocation3 + $0x58] sm:$0x3] %vm137, 0.0
    %149 = vst.msk [vmem:[#allocation3 + $0x60] sm:$0xff] %vm135, 0.0
    %150 = vst.msk [vmem:[#allocation3 + $0x68] sm:$0x3] %vm137, 0.0
    %151 = vst.msk [vmem:[#allocation3 + $0x70] sm:$0xff] %vm135, 0.0
    %152 = vst.msk [vmem:[#allocation3 + $0x78] sm:$0x3] %vm137, 0.0
    %153 = vst.msk [vmem:[#allocation3 + $0x80] sm:$0xff] %vm135, 0.0
    %154 = vst.msk [vmem:[#allocation3 + $0x88] sm:$0x3] %vm137, 0.0
    %155 = vst.msk [vmem:[#allocation3 + $0x90] sm:$0xff] %vm135, 0.0
    %156 = vst.msk [vmem:[#allocation3 + $0x98] sm:$0x3] %vm137, 0.0
    %157 = vst.msk [vmem:[#allocation3 + $0xa0] sm:$0xff] %vm135, 0.0
    %158 = vst.msk [vmem:[#allocation3 + $0xa8] sm:$0x3] %vm137, 0.0
    %159 = vst.msk [vmem:[#allocation3 + $0xb0] sm:$0xff] %vm135, 0.0
    %160 = vst.msk [vmem:[#allocation3 + $0xb8] sm:$0x3] %vm137, 0.0
    %161 = vst.msk [vmem:[#allocation3 + $0xc0] sm:$0xff] %vm135, 0.0
    %162 = vst.msk [vmem:[#allocation3 + $0xc8] sm:$0x3] %vm137, 0.0
    %163 = vst.msk [vmem:[#allocation3 + $0xd0] sm:$0xff] %vm135, 0.0
    %164 = vst.msk [vmem:[#allocation3 + $0xd8] sm:$0x3] %vm137, 0.0
    %165 = vst.msk [vmem:[#allocation3 + $0xe0] sm:$0xff] %vm135, 0.0
    %166 = vst.msk [vmem:[#allocation3 + $0xe8] sm:$0x3] %vm137, 0.0
    %167 = vst.msk [vmem:[#allocation3 + $0xf0] sm:$0xff] %vm135, 0.0
    %168 = vst.msk [vmem:[#allocation3 + $0xf8] sm:$0x3] %vm137, 0.0
    %169 = vst.msk [vmem:[#allocation3 + $0x100] sm:$0xff] %vm135, 0.0
    %170 = vst.msk [vmem:[#allocation3 + $0x108] sm:$0x3] %vm137, 0.0
    %171 = vst.msk [vmem:[#allocation3 + $0x110] sm:$0xff] %vm135, 0.0
    %172 = vst.msk [vmem:[#allocation3 + $0x118] sm:$0x3] %vm137, 0.0
    %173 = vst.msk [vmem:[#allocation3 + $0x120] sm:$0xff] %vm135, 0.0
    %174 = vst.msk [vmem:[#allocation3 + $0x128] sm:$0x3] %vm137, 0.0
    %175 = vst.msk [vmem:[#allocation3 + $0x130] sm:$0xff] %vm135, 0.0
    %176 = vst.msk [vmem:[#allocation3 + $0x138] sm:$0x3] %vm137, 0.0
    %v177 = vld [vmem:[%s0] sm:$0xff]
    %v178 = vld [vmem:[%s0 + $0x8] sm:$0xff]
    %v179 = vld [vmem:[%s0 + $0x10] sm:$0xff]
    %v180 = vld [vmem:[%s0 + $0x18] sm:$0xff]
    %v181 = vld [vmem:[%s0 + $0x20] sm:$0xff]
    %v182 = vld [vmem:[%s0 + $0x28] sm:$0xff]
    %v183 = vld [vmem:[%s0 + $0x30] sm:$0xff]
    %v184 = vld [vmem:[%s0 + $0x38] sm:$0xff]
    %v185 = vld [vmem:[%s0 + $0x40] sm:$0xff]
    %v186 = vld [vmem:[%s0 + $0x48] sm:$0xff]
    %v187 = vld [vmem:[%s0 + $0x50] sm:$0xff]
    %v188 = vld [vmem:[%s0 + $0x58] sm:$0xff]
    %v189 = vld [vmem:[%s0 + $0x60] sm:$0xff]
    %v190 = vld [vmem:[%s0 + $0x68] sm:$0xff]
    %v191 = vld [vmem:[%s0 + $0x70] sm:$0xff]
    %v192 = vld [vmem:[%s0 + $0x78] sm:$0xff]
    %v193 = vld [vmem:[%s0 + $0x80] sm:$0xff]
    %v194 = vld [vmem:[%s0 + $0x88] sm:$0xff]
    %v195 = vld [vmem:[%s0 + $0x90] sm:$0xff]
    %v196 = vld [vmem:[%s0 + $0x98] sm:$0xff]
    %v197 = vld [vmem:[%s0 + $0xa0] sm:$0xff]
    %v198 = vld [vmem:[%s0 + $0xa8] sm:$0xff]
    %v199 = vld [vmem:[%s0 + $0xb0] sm:$0xff]
    %v200 = vld [vmem:[%s0 + $0xb8] sm:$0xff]
    %v201 = vld [vmem:[%s0 + $0xc0] sm:$0xff]
    %v202 = vld [vmem:[%s0 + $0xc8] sm:$0xff]
    %v203 = vld [vmem:[%s0 + $0xd0] sm:$0xff]
    %v204 = vld [vmem:[%s0 + $0xd8] sm:$0xff]
    %v205 = vld [vmem:[%s0 + $0xe0] sm:$0xff]
    %v206 = vld [vmem:[%s0 + $0xe8] sm:$0xff]
    %v207 = vld [vmem:[%s0 + $0xf0] sm:$0xff]
    %v208 = vld [vmem:[%s0 + $0xf8] sm:$0xff]
    %v209 = vld [vmem:[%s0 + $0x100] sm:$0xff]
    %v210 = vld [vmem:[%s0 + $0x108] sm:$0xff]
    %v211 = vld [vmem:[%s0 + $0x110] sm:$0xff]
    %v212 = vld [vmem:[%s0 + $0x118] sm:$0xff]
    %v213 = vld [vmem:[%s0 + $0x120] sm:$0xff]
    %v214 = vld [vmem:[%s0 + $0x128] sm:$0xff]
    %v215 = vld [vmem:[%s0 + $0x130] sm:$0xff]
    %v216 = vld [vmem:[%s0 + $0x138] sm:$0xff]
    %v217 = vld [vmem:[%s0 + $0x140] sm:$0xff]
    %v218 = vld [vmem:[%s0 + $0x148] sm:$0xff]
    %v219 = vld [vmem:[%s0 + $0x150] sm:$0xff]
    %v220 = vld [vmem:[%s0 + $0x158] sm:$0xff]
    %v221 = vld [vmem:[%s0 + $0x160] sm:$0xff]
    %v222 = vld [vmem:[%s0 + $0x168] sm:$0xff]
    %v223 = vld [vmem:[%s0 + $0x170] sm:$0xff]
    %v224 = vld [vmem:[%s0 + $0x178] sm:$0xff]
    %v225 = vld [vmem:[%s0 + $0x180] sm:$0xff]
    %v226 = vld [vmem:[%s0 + $0x188] sm:$0xff]
    %v227 = vld [vmem:[%s0 + $0x190] sm:$0xff]
    %v228 = vld [vmem:[%s0 + $0x198] sm:$0xff]
    %v229 = vld [vmem:[%s0 + $0x1a0] sm:$0xff]
    %v230 = vld [vmem:[%s0 + $0x1a8] sm:$0xff]
    %v231 = vld [vmem:[%s0 + $0x1b0] sm:$0xff]
    %v232 = vld [vmem:[%s0 + $0x1b8] sm:$0xff]
    %v233 = vld [vmem:[%s0 + $0x1c0] sm:$0xff]
    %v234 = vld [vmem:[%s0 + $0x1c8] sm:$0xff]
    %v235 = vld [vmem:[%s0 + $0x1d0] sm:$0xff]
    %v236 = vld [vmem:[%s0 + $0x1d8] sm:$0xff]
    %v237 = vld [vmem:[%s0 + $0x1e0] sm:$0xff]
    %v238 = vld [vmem:[%s0 + $0x1e8] sm:$0xff]
    %v239 = vld [vmem:[%s0 + $0x1f0] sm:$0xff]
    %v240 = vld [vmem:[%s0 + $0x1f8] sm:$0xff]
    %s241 = scalar_lea.vmem [#allocation2], 24
    %242 = vst.msk [vmem:[%s241 + $0x1] sm:$0xff] %vm25, %v177
    %243 = vst.msk [vmem:[%s241 + $0x9] sm:$0xff] %vm25, %v178
    %244 = vst.msk [vmem:[%s241 + $0x19] sm:$0xff] %vm25, %v179
    %245 = vst.msk [vmem:[%s241 + $0x21] sm:$0xff] %vm25, %v180
    %246 = vst.msk [vmem:[%s241 + $0x31] sm:$0xff] %vm25, %v181
    %247 = vst.msk [vmem:[%s241 + $0x39] sm:$0xff] %vm25, %v182
    %248 = vst.msk [vmem:[%s241 + $0x49] sm:$0xff] %vm25, %v183
    %249 = vst.msk [vmem:[%s241 + $0x51] sm:$0xff] %vm25, %v184
    %250 = vst.msk [vmem:[%s241 + $0x61] sm:$0xff] %vm25, %v185
    %251 = vst.msk [vmem:[%s241 + $0x69] sm:$0xff] %vm25, %v186
    %252 = vst.msk [vmem:[%s241 + $0x79] sm:$0xff] %vm25, %v187
    %253 = vst.msk [vmem:[%s241 + $0x81] sm:$0xff] %vm25, %v188
    %254 = vst.msk [vmem:[%s241 + $0x91] sm:$0xff] %vm25, %v189
    %255 = vst.msk [vmem:[%s241 + $0x99] sm:$0xff] %vm25, %v190
    %256 = vst.msk [vmem:[%s241 + $0xa9] sm:$0xff] %vm25, %v191
    %257 = vst.msk [vmem:[%s241 + $0xb1] sm:$0xff] %vm25, %v192
    %258 = vst.msk [vmem:[%s241 + $0xc1] sm:$0xff] %vm25, %v193
    %259 = vst.msk [vmem:[%s241 + $0xc9] sm:$0xff] %vm25, %v194
    %260 = vst.msk [vmem:[%s241 + $0xd9] sm:$0xff] %vm25, %v195
    %261 = vst.msk [vmem:[%s241 + $0xe1] sm:$0xff] %vm25, %v196
    %262 = vst.msk [vmem:[%s241 + $0xf1] sm:$0xff] %vm25, %v197
    %263 = vst.msk [vmem:[%s241 + $0xf9] sm:$0xff] %vm25, %v198
    %264 = vst.msk [vmem:[%s241 + $0x109] sm:$0xff] %vm25, %v199
    %265 = vst.msk [vmem:[%s241 + $0x111] sm:$0xff] %vm25, %v200
    %266 = vst.msk [vmem:[%s241 + $0x121] sm:$0xff] %vm25, %v201
    %267 = vst.msk [vmem:[%s241 + $0x129] sm:$0xff] %vm25, %v202
    %268 = vst.msk [vmem:[%s241 + $0x139] sm:$0xff] %vm25, %v203
    %269 = vst.msk [vmem:[%s241 + $0x141] sm:$0xff] %vm25, %v204
    %270 = vst.msk [vmem:[%s241 + $0x151] sm:$0xff] %vm25, %v205
    %271 = vst.msk [vmem:[%s241 + $0x159] sm:$0xff] %vm25, %v206
    %272 = vst.msk [vmem:[%s241 + $0x169] sm:$0xff] %vm25, %v207
    %273 = vst.msk [vmem:[%s241 + $0x171] sm:$0xff] %vm25, %v208
    %274 = vst.msk [vmem:[%s241 + $0x1b1] sm:$0xff] %vm25, %v209
    %275 = vst.msk [vmem:[%s241 + $0x1b9] sm:$0xff] %vm25, %v210
    %276 = vst.msk [vmem:[%s241 + $0x1c9] sm:$0xff] %vm25, %v211
    %277 = vst.msk [vmem:[%s241 + $0x1d1] sm:$0xff] %vm25, %v212
    %278 = vst.msk [vmem:[%s241 + $0x1e1] sm:$0xff] %vm25, %v213
    %279 = vst.msk [vmem:[%s241 + $0x1e9] sm:$0xff] %vm25, %v214
    %280 = vst.msk [vmem:[%s241 + $0x1f9] sm:$0xff] %vm25, %v215
    %281 = vst.msk [vmem:[%s241 + $0x201] sm:$0xff] %vm25, %v216
    %282 = vst.msk [vmem:[%s241 + $0x211] sm:$0xff] %vm25, %v217
    %283 = vst.msk [vmem:[%s241 + $0x219] sm:$0xff] %vm25, %v218
    %284 = vst.msk [vmem:[%s241 + $0x229] sm:$0xff] %vm25, %v219
    %285 = vst.msk [vmem:[%s241 + $0x231] sm:$0xff] %vm25, %v220
    %286 = vst.msk [vmem:[%s241 + $0x241] sm:$0xff] %vm25, %v221
    %287 = vst.msk [vmem:[%s241 + $0x249] sm:$0xff] %vm25, %v222
    %288 = vst.msk [vmem:[%s241 + $0x259] sm:$0xff] %vm25, %v223
    %289 = vst.msk [vmem:[%s241 + $0x261] sm:$0xff] %vm25, %v224
    %290 = vst.msk [vmem:[%s241 + $0x271] sm:$0xff] %vm25, %v225
    %291 = vst.msk [vmem:[%s241 + $0x279] sm:$0xff] %vm25, %v226
    %292 = vst.msk [vmem:[%s241 + $0x289] sm:$0xff] %vm25, %v227
    %293 = vst.msk [vmem:[%s241 + $0x291] sm:$0xff] %vm25, %v228
    %294 = vst.msk [vmem:[%s241 + $0x2a1] sm:$0xff] %vm25, %v229
    %295 = vst.msk [vmem:[%s241 + $0x2a9] sm:$0xff] %vm25, %v230
    %296 = vst.msk [vmem:[%s241 + $0x2b9] sm:$0xff] %vm25, %v231
    %297 = vst.msk [vmem:[%s241 + $0x2c1] sm:$0xff] %vm25, %v232
    %298 = vst.msk [vmem:[%s241 + $0x2d1] sm:$0xff] %vm25, %v233
    %299 = vst.msk [vmem:[%s241 + $0x2d9] sm:$0xff] %vm25, %v234
    %300 = vst.msk [vmem:[%s241 + $0x2e9] sm:$0xff] %vm25, %v235
    %301 = vst.msk [vmem:[%s241 + $0x2f1] sm:$0xff] %vm25, %v236
    %302 = vst.msk [vmem:[%s241 + $0x301] sm:$0xff] %vm25, %v237
    %303 = vst.msk [vmem:[%s241 + $0x309] sm:$0xff] %vm25, %v238
    %304 = vst.msk [vmem:[%s241 + $0x319] sm:$0xff] %vm25, %v239
    %305 = vst.msk [vmem:[%s241 + $0x321] sm:$0xff] %vm25, %v240
    %v306 = vld [vmem:[#allocation2] ss:$2 sm:$0xff]
    %s307 = scalar_lea.vmem [#allocation2], 48
    %v308 = vld [vmem:[%s307] ss:$2 sm:$0xff]
    %s309 = scalar_lea.vmem [#allocation2], 96
    %v310 = vld [vmem:[%s309] ss:$2 sm:$0xff]
    %s311 = scalar_lea.vmem [#allocation2], 144
    %v312 = vld [vmem:[%s311] ss:$2 sm:$0xff]
    %s313 = scalar_lea.vmem [#allocation2], 192
    %v314 = vld [vmem:[%s313] ss:$2 sm:$0xff]
    %s315 = scalar_lea.vmem [#allocation2], 240
    %v316 = vld [vmem:[%s315] ss:$2 sm:$0xff]
    %s317 = scalar_lea.vmem [#allocation2], 288
    %v318 = vld [vmem:[%s317] ss:$2 sm:$0xff]
    %s319 = scalar_lea.vmem [#allocation2], 336
    %v320 = vld [vmem:[%s319] ss:$2 sm:$0xff]
    %s321 = scalar_lea.vmem [#allocation2], 432
    %v322 = vld [vmem:[%s321] ss:$2 sm:$0xff]
    %s323 = scalar_lea.vmem [#allocation2], 480
    %v324 = vld [vmem:[%s323] ss:$2 sm:$0xff]
    %s325 = scalar_lea.vmem [#allocation2], 528
    %v326 = vld [vmem:[%s325] ss:$2 sm:$0xff]
    %s327 = scalar_lea.vmem [#allocation2], 576
    %v328 = vld [vmem:[%s327] ss:$2 sm:$0xff]
    %s329 = scalar_lea.vmem [#allocation2], 624
    %v330 = vld [vmem:[%s329] ss:$2 sm:$0xff]
    %s331 = scalar_lea.vmem [#allocation2], 672
    %v332 = vld [vmem:[%s331] ss:$2 sm:$0xff]
    %s333 = scalar_lea.vmem [#allocation2], 720
    %v334 = vld [vmem:[%s333] ss:$2 sm:$0xff]
    %s335 = scalar_lea.vmem [#allocation2], 768
    %v336 = vld [vmem:[%s335] ss:$2 sm:$0xff]
    %v337 = vpack.c.bf16 %v308, %v306
    %v338 = vpack.c.bf16 %v312, %v310
    %v339 = vpack.c.bf16 %v316, %v314
    %v340 = vpack.c.bf16 %v320, %v318
    %v341 = vpack.c.bf16 %v324, %v322
    %v342 = vpack.c.bf16 %v328, %v326
    %v343 = vpack.c.bf16 %v332, %v330
    %v344 = vpack.c.bf16 %v336, %v334
    %s345 = scalar_lea.vmem [#allocation2], 1
    %v346 = vld [vmem:[%s345] ss:$2 sm:$0xff]
    %s347 = scalar_lea.vmem [#allocation2], 49
    %v348 = vld [vmem:[%s347] ss:$2 sm:$0xff]
    %s349 = scalar_lea.vmem [#allocation2], 97
    %v350 = vld [vmem:[%s349] ss:$2 sm:$0xff]
    %s351 = scalar_lea.vmem [#allocation2], 145
    %v352 = vld [vmem:[%s351] ss:$2 sm:$0xff]
    %s353 = scalar_lea.vmem [#allocation2], 193
    %v354 = vld [vmem:[%s353] ss:$2 sm:$0xff]
    %s355 = scalar_lea.vmem [#allocation2], 241
    %v356 = vld [vmem:[%s355] ss:$2 sm:$0xff]
    %s357 = scalar_lea.vmem [#allocation2], 289
    %v358 = vld [vmem:[%s357] ss:$2 sm:$0xff]
    %s359 = scalar_lea.vmem [#allocation2], 337
    %v360 = vld [vmem:[%s359] ss:$2 sm:$0xff]
    %s361 = scalar_lea.vmem [#allocation2], 433
    %v362 = vld [vmem:[%s361] ss:$2 sm:$0xff]
    %s363 = scalar_lea.vmem [#allocation2], 481
    %v364 = vld [vmem:[%s363] ss:$2 sm:$0xff]
    %s365 = scalar_lea.vmem [#allocation2], 529
    %v366 = vld [vmem:[%s365] ss:$2 sm:$0xff]
    %s367 = scalar_lea.vmem [#allocation2], 577
    %v368 = vld [vmem:[%s367] ss:$2 sm:$0xff]
    %s369 = scalar_lea.vmem [#allocation2], 625
    %v370 = vld [vmem:[%s369] ss:$2 sm:$0xff]
    %s371 = scalar_lea.vmem [#allocation2], 673
    %v372 = vld [vmem:[%s371] ss:$2 sm:$0xff]
    %s373 = scalar_lea.vmem [#allocation2], 721
    %v374 = vld [vmem:[%s373] ss:$2 sm:$0xff]
    %s375 = scalar_lea.vmem [#allocation2], 769
    %v376 = vld [vmem:[%s375] ss:$2 sm:$0xff]
    %v377 = vpack.c.bf16 %v348, %v346
    %v378 = vpack.c.bf16 %v352, %v350
    %v379 = vpack.c.bf16 %v356, %v354
    %v380 = vpack.c.bf16 %v360, %v358
    %v381 = vpack.c.bf16 %v364, %v362
    %v382 = vpack.c.bf16 %v368, %v366
    %v383 = vpack.c.bf16 %v372, %v370
    %v384 = vpack.c.bf16 %v376, %v374
    %s385 = scalar_lea.vmem [#allocation2], 2
    %v386 = vld [vmem:[%s385] ss:$2 sm:$0xff]
    %s387 = scalar_lea.vmem [#allocation2], 50
    %v388 = vld [vmem:[%s387] ss:$2 sm:$0xff]
    %s389 = scalar_lea.vmem [#allocation2], 98
    %v390 = vld [vmem:[%s389] ss:$2 sm:$0xff]
    %s391 = scalar_lea.vmem [#allocation2], 146
    %v392 = vld [vmem:[%s391] ss:$2 sm:$0xff]
    %s393 = scalar_lea.vmem [#allocation2], 194
    %v394 = vld [vmem:[%s393] ss:$2 sm:$0xff]
    %s395 = scalar_lea.vmem [#allocation2], 242
    %v396 = vld [vmem:[%s395] ss:$2 sm:$0xff]
    %s397 = scalar_lea.vmem [#allocation2], 290
    %v398 = vld [vmem:[%s397] ss:$2 sm:$0xff]
    %s399 = scalar_lea.vmem [#allocation2], 338
    %v400 = vld [vmem:[%s399] ss:$2 sm:$0xff]
    %s401 = scalar_lea.vmem [#allocation2], 434
    %v402 = vld [vmem:[%s401] ss:$2 sm:$0xff]
    %s403 = scalar_lea.vmem [#allocation2], 482
    %v404 = vld [vmem:[%s403] ss:$2 sm:$0xff]
    %s405 = scalar_lea.vmem [#allocation2], 530
    %v406 = vld [vmem:[%s405] ss:$2 sm:$0xff]
    %s407 = scalar_lea.vmem [#allocation2], 578
    %v408 = vld [vmem:[%s407] ss:$2 sm:$0xff]
    %s409 = scalar_lea.vmem [#allocation2], 626
    %v410 = vld [vmem:[%s409] ss:$2 sm:$0xff]
    %s411 = scalar_lea.vmem [#allocation2], 674
    %v412 = vld [vmem:[%s411] ss:$2 sm:$0xff]
    %s413 = scalar_lea.vmem [#allocation2], 722
    %v414 = vld [vmem:[%s413] ss:$2 sm:$0xff]
    %s415 = scalar_lea.vmem [#allocation2], 770
    %v416 = vld [vmem:[%s415] ss:$2 sm:$0xff]
    %v417 = vpack.c.bf16 %v388, %v386
    %v418 = vpack.c.bf16 %v392, %v390
    %v419 = vpack.c.bf16 %v396, %v394
    %v420 = vpack.c.bf16 %v400, %v398
    %v421 = vpack.c.bf16 %v404, %v402
    %v422 = vpack.c.bf16 %v408, %v406
    %v423 = vpack.c.bf16 %v412, %v410
    %v424 = vpack.c.bf16 %v416, %v414
    %v425 = vld [vmem:[%s241] ss:$2 sm:$0xff]
    %s426 = scalar_lea.vmem %s241, 48 [#allocation2]
    %v427 = vld [vmem:[%s426] ss:$2 sm:$0xff]
    %s428 = scalar_lea.vmem %s241, 96 [#allocation2]
    %v429 = vld [vmem:[%s428] ss:$2 sm:$0xff]
    %s430 = scalar_lea.vmem %s241, 144 [#allocation2]
    %v431 = vld [vmem:[%s430] ss:$2 sm:$0xff]
    %s432 = scalar_lea.vmem %s241, 192 [#allocation2]
    %v433 = vld [vmem:[%s432] ss:$2 sm:$0xff]
    %s434 = scalar_lea.vmem %s241, 240 [#allocation2]
    %v435 = vld [vmem:[%s434] ss:$2 sm:$0xff]
    %s436 = scalar_lea.vmem %s241, 288 [#allocation2]
    %v437 = vld [vmem:[%s436] ss:$2 sm:$0xff]
    %s438 = scalar_lea.vmem %s241, 336 [#allocation2]
    %v439 = vld [vmem:[%s438] ss:$2 sm:$0xff]
    %s440 = scalar_lea.vmem %s241, 432 [#allocation2]
    %v441 = vld [vmem:[%s440] ss:$2 sm:$0xff]
    %s442 = scalar_lea.vmem %s241, 480 [#allocation2]
    %v443 = vld [vmem:[%s442] ss:$2 sm:$0xff]
    %s444 = scalar_lea.vmem %s241, 528 [#allocation2]
    %v445 = vld [vmem:[%s444] ss:$2 sm:$0xff]
    %s446 = scalar_lea.vmem %s241, 576 [#allocation2]
    %v447 = vld [vmem:[%s446] ss:$2 sm:$0xff]
    %s448 = scalar_lea.vmem %s241, 624 [#allocation2]
    %v449 = vld [vmem:[%s448] ss:$2 sm:$0xff]
    %s450 = scalar_lea.vmem %s241, 672 [#allocation2]
    %v451 = vld [vmem:[%s450] ss:$2 sm:$0xff]
    %s452 = scalar_lea.vmem %s241, 720 [#allocation2]
    %v453 = vld [vmem:[%s452] ss:$2 sm:$0xff]
    %s454 = scalar_lea.vmem %s241, 768 [#allocation2]
    %v455 = vld [vmem:[%s454] ss:$2 sm:$0xff]
    %v456 = vpack.c.bf16 %v427, %v425
    %v457 = vpack.c.bf16 %v431, %v429
    %v458 = vpack.c.bf16 %v435, %v433
    %v459 = vpack.c.bf16 %v439, %v437
    %v460 = vpack.c.bf16 %v443, %v441
    %v461 = vpack.c.bf16 %v447, %v445
    %v462 = vpack.c.bf16 %v451, %v449
    %v463 = vpack.c.bf16 %v455, %v453
    %s464 = scalar_lea.vmem %s241, 1 [#allocation2]
    %v465 = vld [vmem:[%s464] ss:$2 sm:$0xff]
    %s466 = scalar_lea.vmem %s241, 49 [#allocation2]
    %v467 = vld [vmem:[%s466] ss:$2 sm:$0xff]
    %s468 = scalar_lea.vmem %s241, 97 [#allocation2]
    %v469 = vld [vmem:[%s468] ss:$2 sm:$0xff]
    %s470 = scalar_lea.vmem %s241, 145 [#allocation2]
    %v471 = vld [vmem:[%s470] ss:$2 sm:$0xff]
    %s472 = scalar_lea.vmem %s241, 193 [#allocation2]
    %v473 = vld [vmem:[%s472] ss:$2 sm:$0xff]
    %s474 = scalar_lea.vmem %s241, 241 [#allocation2]
    %v475 = vld [vmem:[%s474] ss:$2 sm:$0xff]
    %s476 = scalar_lea.vmem %s241, 289 [#allocation2]
    %v477 = vld [vmem:[%s476] ss:$2 sm:$0xff]
    %s478 = scalar_lea.vmem %s241, 337 [#allocation2]
    %v479 = vld [vmem:[%s478] ss:$2 sm:$0xff]
    %s480 = scalar_lea.vmem %s241, 433 [#allocation2]
    %v481 = vld [vmem:[%s480] ss:$2 sm:$0xff]
    %s482 = scalar_lea.vmem %s241, 481 [#allocation2]
    %v483 = vld [vmem:[%s482] ss:$2 sm:$0xff]
    %s484 = scalar_lea.vmem %s241, 529 [#allocation2]
    %v485 = vld [vmem:[%s484] ss:$2 sm:$0xff]
    %s486 = scalar_lea.vmem %s241, 577 [#allocation2]
    %v487 = vld [vmem:[%s486] ss:$2 sm:$0xff]
    %s488 = scalar_lea.vmem %s241, 625 [#allocation2]
    %v489 = vld [vmem:[%s488] ss:$2 sm:$0xff]
    %s490 = scalar_lea.vmem %s241, 673 [#allocation2]
    %v491 = vld [vmem:[%s490] ss:$2 sm:$0xff]
    %s492 = scalar_lea.vmem %s241, 721 [#allocation2]
    %v493 = vld [vmem:[%s492] ss:$2 sm:$0xff]
    %s494 = scalar_lea.vmem %s241, 769 [#allocation2]
    %v495 = vld [vmem:[%s494] ss:$2 sm:$0xff]
    %v496 = vpack.c.bf16 %v467, %v465
    %v497 = vpack.c.bf16 %v471, %v469
    %v498 = vpack.c.bf16 %v475, %v473
    %v499 = vpack.c.bf16 %v479, %v477
    %v500 = vpack.c.bf16 %v483, %v481
    %v501 = vpack.c.bf16 %v487, %v485
    %v502 = vpack.c.bf16 %v491, %v489
    %v503 = vpack.c.bf16 %v495, %v493
    %s504 = scalar_lea.vmem %s241, 2 [#allocation2]
    %v505 = vld [vmem:[%s504] ss:$2 sm:$0xff]
    %s506 = scalar_lea.vmem %s241, 50 [#allocation2]
    %v507 = vld [vmem:[%s506] ss:$2 sm:$0xff]
    %s508 = scalar_lea.vmem %s241, 98 [#allocation2]
    %v509 = vld [vmem:[%s508] ss:$2 sm:$0xff]
    %s510 = scalar_lea.vmem %s241, 146 [#allocation2]
    %v511 = vld [vmem:[%s510] ss:$2 sm:$0xff]
    %s512 = scalar_lea.vmem %s241, 194 [#allocation2]
    %v513 = vld [vmem:[%s512] ss:$2 sm:$0xff]
    %s514 = scalar_lea.vmem %s241, 242 [#allocation2]
    %v515 = vld [vmem:[%s514] ss:$2 sm:$0xff]
    %s516 = scalar_lea.vmem %s241, 290 [#allocation2]
    %v517 = vld [vmem:[%s516] ss:$2 sm:$0xff]
    %s518 = scalar_lea.vmem %s241, 338 [#allocation2]
    %v519 = vld [vmem:[%s518] ss:$2 sm:$0xff]
    %s520 = scalar_lea.vmem %s241, 434 [#allocation2]
    %v521 = vld [vmem:[%s520] ss:$2 sm:$0xff]
    %s522 = scalar_lea.vmem %s241, 482 [#allocation2]
    %v523 = vld [vmem:[%s522] ss:$2 sm:$0xff]
    %s524 = scalar_lea.vmem %s241, 530 [#allocation2]
    %v525 = vld [vmem:[%s524] ss:$2 sm:$0xff]
    %s526 = scalar_lea.vmem %s241, 578 [#allocation2]
    %v527 = vld [vmem:[%s526] ss:$2 sm:$0xff]
    %s528 = scalar_lea.vmem %s241, 626 [#allocation2]
    %v529 = vld [vmem:[%s528] ss:$2 sm:$0xff]
    %s530 = scalar_lea.vmem %s241, 674 [#allocation2]
    %v531 = vld [vmem:[%s530] ss:$2 sm:$0xff]
    %s532 = scalar_lea.vmem %s241, 722 [#allocation2]
    %v533 = vld [vmem:[%s532] ss:$2 sm:$0xff]
    %s534 = scalar_lea.vmem %s241, 770 [#allocation2]
    %v535 = vld [vmem:[%s534] ss:$2 sm:$0xff]
    %v536 = vpack.c.bf16 %v507, %v505
    %v537 = vpack.c.bf16 %v511, %v509
    %v538 = vpack.c.bf16 %v515, %v513
    %v539 = vpack.c.bf16 %v519, %v517
    %v540 = vpack.c.bf16 %v523, %v521
    %v541 = vpack.c.bf16 %v527, %v525
    %v542 = vpack.c.bf16 %v531, %v529
    %v543 = vpack.c.bf16 %v535, %v533
    %s544 = scalar_lea.vmem [#allocation2], 48
    %v545 = vld [vmem:[%s544] ss:$2 sm:$0xff]
    %s546 = scalar_lea.vmem %s544, 48 [#allocation2]
    %v547 = vld [vmem:[%s546] ss:$2 sm:$0xff]
    %s548 = scalar_lea.vmem %s544, 96 [#allocation2]
    %v549 = vld [vmem:[%s548] ss:$2 sm:$0xff]
    %s550 = scalar_lea.vmem %s544, 144 [#allocation2]
    %v551 = vld [vmem:[%s550] ss:$2 sm:$0xff]
    %s552 = scalar_lea.vmem %s544, 192 [#allocation2]
    %v553 = vld [vmem:[%s552] ss:$2 sm:$0xff]
    %s554 = scalar_lea.vmem %s544, 240 [#allocation2]
    %v555 = vld [vmem:[%s554] ss:$2 sm:$0xff]
    %s556 = scalar_lea.vmem %s544, 288 [#allocation2]
    %v557 = vld [vmem:[%s556] ss:$2 sm:$0xff]
    %s558 = scalar_lea.vmem %s544, 336 [#allocation2]
    %v559 = vld [vmem:[%s558] ss:$2 sm:$0xff]
    %s560 = scalar_lea.vmem %s544, 432 [#allocation2]
    %v561 = vld [vmem:[%s560] ss:$2 sm:$0xff]
    %s562 = scalar_lea.vmem %s544, 480 [#allocation2]
    %v563 = vld [vmem:[%s562] ss:$2 sm:$0xff]
    %s564 = scalar_lea.vmem %s544, 528 [#allocation2]
    %v565 = vld [vmem:[%s564] ss:$2 sm:$0xff]
    %s566 = scalar_lea.vmem %s544, 576 [#allocation2]
    %v567 = vld [vmem:[%s566] ss:$2 sm:$0xff]
    %s568 = scalar_lea.vmem %s544, 624 [#allocation2]
    %v569 = vld [vmem:[%s568] ss:$2 sm:$0xff]
    %s570 = scalar_lea.vmem %s544, 672 [#allocation2]
    %v571 = vld [vmem:[%s570] ss:$2 sm:$0xff]
    %s572 = scalar_lea.vmem %s544, 720 [#allocation2]
    %v573 = vld [vmem:[%s572] ss:$2 sm:$0xff]
    %s574 = scalar_lea.vmem %s544, 768 [#allocation2]
    %v575 = vld [vmem:[%s574] ss:$2 sm:$0xff]
    %v576 = vpack.c.bf16 %v547, %v545
    %v577 = vpack.c.bf16 %v551, %v549
    %v578 = vpack.c.bf16 %v555, %v553
    %v579 = vpack.c.bf16 %v559, %v557
    %v580 = vpack.c.bf16 %v563, %v561
    %v581 = vpack.c.bf16 %v567, %v565
    %v582 = vpack.c.bf16 %v571, %v569
    %v583 = vpack.c.bf16 %v575, %v573
    %s584 = scalar_lea.vmem %s544, 1 [#allocation2]
    %v585 = vld [vmem:[%s584] ss:$2 sm:$0xff]
    %s586 = scalar_lea.vmem %s544, 49 [#allocation2]
    %v587 = vld [vmem:[%s586] ss:$2 sm:$0xff]
    %s588 = scalar_lea.vmem %s544, 97 [#allocation2]
    %v589 = vld [vmem:[%s588] ss:$2 sm:$0xff]
    %s590 = scalar_lea.vmem %s544, 145 [#allocation2]
    %v591 = vld [vmem:[%s590] ss:$2 sm:$0xff]
    %s592 = scalar_lea.vmem %s544, 193 [#allocation2]
    %v593 = vld [vmem:[%s592] ss:$2 sm:$0xff]
    %s594 = scalar_lea.vmem %s544, 241 [#allocation2]
    %v595 = vld [vmem:[%s594] ss:$2 sm:$0xff]
    %s596 = scalar_lea.vmem %s544, 289 [#allocation2]
    %v597 = vld [vmem:[%s596] ss:$2 sm:$0xff]
    %s598 = scalar_lea.vmem %s544, 337 [#allocation2]
    %v599 = vld [vmem:[%s598] ss:$2 sm:$0xff]
    %s600 = scalar_lea.vmem %s544, 433 [#allocation2]
    %v601 = vld [vmem:[%s600] ss:$2 sm:$0xff]
    %s602 = scalar_lea.vmem %s544, 481 [#allocation2]
    %v603 = vld [vmem:[%s602] ss:$2 sm:$0xff]
    %s604 = scalar_lea.vmem %s544, 529 [#allocation2]
    %v605 = vld [vmem:[%s604] ss:$2 sm:$0xff]
    %s606 = scalar_lea.vmem %s544, 577 [#allocation2]
    %v607 = vld [vmem:[%s606] ss:$2 sm:$0xff]
    %s608 = scalar_lea.vmem %s544, 625 [#allocation2]
    %v609 = vld [vmem:[%s608] ss:$2 sm:$0xff]
    %s610 = scalar_lea.vmem %s544, 673 [#allocation2]
    %v611 = vld [vmem:[%s610] ss:$2 sm:$0xff]
    %s612 = scalar_lea.vmem %s544, 721 [#allocation2]
    %v613 = vld [vmem:[%s612] ss:$2 sm:$0xff]
    %s614 = scalar_lea.vmem %s544, 769 [#allocation2]
    %v615 = vld [vmem:[%s614] ss:$2 sm:$0xff]
    %v616 = vpack.c.bf16 %v587, %v585
    %v617 = vpack.c.bf16 %v591, %v589
    %v618 = vpack.c.bf16 %v595, %v593
    %v619 = vpack.c.bf16 %v599, %v597
    %v620 = vpack.c.bf16 %v603, %v601
    %v621 = vpack.c.bf16 %v607, %v605
    %v622 = vpack.c.bf16 %v611, %v609
    %v623 = vpack.c.bf16 %v615, %v613
    %s624 = scalar_lea.vmem %s544, 2 [#allocation2]
    %v625 = vld [vmem:[%s624] ss:$2 sm:$0xff]
    %s626 = scalar_lea.vmem %s544, 50 [#allocation2]
    %v627 = vld [vmem:[%s626] ss:$2 sm:$0xff]
    %s628 = scalar_lea.vmem %s544, 98 [#allocation2]
    %v629 = vld [vmem:[%s628] ss:$2 sm:$0xff]
    %s630 = scalar_lea.vmem %s544, 146 [#allocation2]
    %v631 = vld [vmem:[%s630] ss:$2 sm:$0xff]
    %s632 = scalar_lea.vmem %s544, 194 [#allocation2]
    %v633 = vld [vmem:[%s632] ss:$2 sm:$0xff]
    %s634 = scalar_lea.vmem %s544, 242 [#allocation2]
    %v635 = vld [vmem:[%s634] ss:$2 sm:$0xff]
    %s636 = scalar_lea.vmem %s544, 290 [#allocation2]
    %v637 = vld [vmem:[%s636] ss:$2 sm:$0xff]
    %s638 = scalar_lea.vmem %s544, 338 [#allocation2]
    %v639 = vld [vmem:[%s638] ss:$2 sm:$0xff]
    %s640 = scalar_lea.vmem %s544, 434 [#allocation2]
    %v641 = vld [vmem:[%s640] ss:$2 sm:$0xff]
    %s642 = scalar_lea.vmem %s544, 482 [#allocation2]
    %v643 = vld [vmem:[%s642] ss:$2 sm:$0xff]
    %s644 = scalar_lea.vmem %s544, 530 [#allocation2]
    %v645 = vld [vmem:[%s644] ss:$2 sm:$0xff]
    %s646 = scalar_lea.vmem %s544, 578 [#allocation2]
    %v647 = vld [vmem:[%s646] ss:$2 sm:$0xff]
    %s648 = scalar_lea.vmem %s544, 626 [#allocation2]
    %v649 = vld [vmem:[%s648] ss:$2 sm:$0xff]
    %s650 = scalar_lea.vmem %s544, 674 [#allocation2]
    %v651 = vld [vmem:[%s650] ss:$2 sm:$0xff]
    %s652 = scalar_lea.vmem %s544, 722 [#allocation2]
    %v653 = vld [vmem:[%s652] ss:$2 sm:$0xff]
    %s654 = scalar_lea.vmem %s544, 770 [#allocation2]
    %v655 = vld [vmem:[%s654] ss:$2 sm:$0xff]
    %v656 = vpack.c.bf16 %v627, %v625
    %v657 = vpack.c.bf16 %v631, %v629
    %v658 = vpack.c.bf16 %v635, %v633
    %v659 = vpack.c.bf16 %v639, %v637
    %v660 = vpack.c.bf16 %v643, %v641
    %v661 = vpack.c.bf16 %v647, %v645
    %v662 = vpack.c.bf16 %v651, %v649
    %v663 = vpack.c.bf16 %v655, %v653
    %672 = vrot.lane.b32.xlu0 %v377, 4
    %v673 = vpop.permute.xlu0 %672
    %674 = vrot.lane.b32.xlu0 %v378, 4
    %v675 = vpop.permute.xlu0 %674
    %676 = vrot.lane.b32.xlu0 %v379, 4
    %v677 = vpop.permute.xlu0 %676
    %678 = vrot.lane.b32.xlu0 %v380, 4
    %v679 = vpop.permute.xlu0 %678
    %680 = vrot.lane.b32.xlu0 %v381, 4
    %v681 = vpop.permute.xlu0 %680
    %682 = vrot.lane.b32.xlu0 %v382, 4
    %v683 = vpop.permute.xlu0 %682
    %684 = vrot.lane.b32.xlu0 %v383, 4
    %v685 = vpop.permute.xlu0 %684
    %686 = vrot.lane.b32.xlu0 %v384, 4
    %v687 = vpop.permute.xlu0 %686
    %696 = vrot.lane.b32.xlu0 %v417, 8
    %v697 = vpop.permute.xlu0 %696
    %698 = vrot.lane.b32.xlu0 %v418, 8
    %v699 = vpop.permute.xlu0 %698
    %700 = vrot.lane.b32.xlu0 %v419, 8
    %v701 = vpop.permute.xlu0 %700
    %702 = vrot.lane.b32.xlu0 %v420, 8
    %v703 = vpop.permute.xlu0 %702
    %704 = vrot.lane.b32.xlu0 %v421, 8
    %v705 = vpop.permute.xlu0 %704
    %706 = vrot.lane.b32.xlu0 %v422, 8
    %v707 = vpop.permute.xlu0 %706
    %708 = vrot.lane.b32.xlu0 %v423, 8
    %v709 = vpop.permute.xlu0 %708
    %710 = vrot.lane.b32.xlu0 %v424, 8
    %v711 = vpop.permute.xlu0 %710
    %720 = vrot.lane.b32.xlu0 %v456, 12
    %v721 = vpop.permute.xlu0 %720
    %722 = vrot.lane.b32.xlu0 %v457, 12
    %v723 = vpop.permute.xlu0 %722
    %724 = vrot.lane.b32.xlu0 %v458, 12
    %v725 = vpop.permute.xlu0 %724
    %726 = vrot.lane.b32.xlu0 %v459, 12
    %v727 = vpop.permute.xlu0 %726
    %728 = vrot.lane.b32.xlu0 %v460, 12
    %v729 = vpop.permute.xlu0 %728
    %730 = vrot.lane.b32.xlu0 %v461, 12
    %v731 = vpop.permute.xlu0 %730
    %732 = vrot.lane.b32.xlu0 %v462, 12
    %v733 = vpop.permute.xlu0 %732
    %734 = vrot.lane.b32.xlu0 %v463, 12
    %v735 = vpop.permute.xlu0 %734
    %744 = vrot.lane.b32.xlu0 %v496, 16
    %v745 = vpop.permute.xlu0 %744
    %746 = vrot.lane.b32.xlu0 %v497, 16
    %v747 = vpop.permute.xlu0 %746
    %748 = vrot.lane.b32.xlu0 %v498, 16
    %v749 = vpop.permute.xlu0 %748
    %750 = vrot.lane.b32.xlu0 %v499, 16
    %v751 = vpop.permute.xlu0 %750
    %752 = vrot.lane.b32.xlu0 %v500, 16
    %v753 = vpop.permute.xlu0 %752
    %754 = vrot.lane.b32.xlu0 %v501, 16
    %v755 = vpop.permute.xlu0 %754
    %756 = vrot.lane.b32.xlu0 %v502, 16
    %v757 = vpop.permute.xlu0 %756
    %758 = vrot.lane.b32.xlu0 %v503, 16
    %v759 = vpop.permute.xlu0 %758
    %768 = vrot.lane.b32.xlu0 %v536, 20
    %v769 = vpop.permute.xlu0 %768
    %770 = vrot.lane.b32.xlu0 %v537, 20
    %v771 = vpop.permute.xlu0 %770
    %772 = vrot.lane.b32.xlu0 %v538, 20
    %v773 = vpop.permute.xlu0 %772
    %774 = vrot.lane.b32.xlu0 %v539, 20
    %v775 = vpop.permute.xlu0 %774
    %776 = vrot.lane.b32.xlu0 %v540, 20
    %v777 = vpop.permute.xlu0 %776
    %778 = vrot.lane.b32.xlu0 %v541, 20
    %v779 = vpop.permute.xlu0 %778
    %780 = vrot.lane.b32.xlu0 %v542, 20
    %v781 = vpop.permute.xlu0 %780
    %782 = vrot.lane.b32.xlu0 %v543, 20
    %v783 = vpop.permute.xlu0 %782
    %792 = vrot.lane.b32.xlu0 %v576, 24
    %v793 = vpop.permute.xlu0 %792
    %794 = vrot.lane.b32.xlu0 %v577, 24
    %v795 = vpop.permute.xlu0 %794
    %796 = vrot.lane.b32.xlu0 %v578, 24
    %v797 = vpop.permute.xlu0 %796
    %798 = vrot.lane.b32.xlu0 %v579, 24
    %v799 = vpop.permute.xlu0 %798
    %800 = vrot.lane.b32.xlu0 %v580, 24
    %v801 = vpop.permute.xlu0 %800
    %802 = vrot.lane.b32.xlu0 %v581, 24
    %v803 = vpop.permute.xlu0 %802
    %804 = vrot.lane.b32.xlu0 %v582, 24
    %v805 = vpop.permute.xlu0 %804
    %806 = vrot.lane.b32.xlu0 %v583, 24
    %v807 = vpop.permute.xlu0 %806
    %816 = vrot.lane.b32.xlu0 %v616, 28
    %v817 = vpop.permute.xlu0 %816
    %818 = vrot.lane.b32.xlu0 %v617, 28
    %v819 = vpop.permute.xlu0 %818
    %820 = vrot.lane.b32.xlu0 %v618, 28
    %v821 = vpop.permute.xlu0 %820
    %822 = vrot.lane.b32.xlu0 %v619, 28
    %v823 = vpop.permute.xlu0 %822
    %824 = vrot.lane.b32.xlu0 %v620, 28
    %v825 = vpop.permute.xlu0 %824
    %826 = vrot.lane.b32.xlu0 %v621, 28
    %v827 = vpop.permute.xlu0 %826
    %828 = vrot.lane.b32.xlu0 %v622, 28
    %v829 = vpop.permute.xlu0 %828
    %830 = vrot.lane.b32.xlu0 %v623, 28
    %v831 = vpop.permute.xlu0 %830
    %840 = vrot.lane.b32.xlu0 %v656, 32
    %v841 = vpop.permute.xlu0 %840
    %842 = vrot.lane.b32.xlu0 %v657, 32
    %v843 = vpop.permute.xlu0 %842
    %844 = vrot.lane.b32.xlu0 %v658, 32
    %v845 = vpop.permute.xlu0 %844
    %846 = vrot.lane.b32.xlu0 %v659, 32
    %v847 = vpop.permute.xlu0 %846
    %848 = vrot.lane.b32.xlu0 %v660, 32
    %v849 = vpop.permute.xlu0 %848
    %850 = vrot.lane.b32.xlu0 %v661, 32
    %v851 = vpop.permute.xlu0 %850
    %852 = vrot.lane.b32.xlu0 %v662, 32
    %v853 = vpop.permute.xlu0 %852
    %854 = vrot.lane.b32.xlu0 %v663, 32
    %v855 = vpop.permute.xlu0 %854
    %v858 = vsel %vm25, %v337, %v673
    %v861 = vsel %vm25, %v338, %v675
    %v864 = vsel %vm25, %v339, %v677
    %v867 = vsel %vm25, %v340, %v679
    %v870 = vsel %vm25, %v341, %v681
    %v873 = vsel %vm25, %v342, %v683
    %v876 = vsel %vm25, %v343, %v685
    %v879 = vsel %vm25, %v344, %v687
    %v881 = vsel %vm135, %v858, %v697
    %v883 = vsel %vm135, %v861, %v699
    %v885 = vsel %vm135, %v864, %v701
    %v887 = vsel %vm135, %v867, %v703
    %v889 = vsel %vm135, %v870, %v705
    %v891 = vsel %vm135, %v873, %v707
    %v893 = vsel %vm135, %v876, %v709
    %v895 = vsel %vm135, %v879, %v711
    %vm896 = vcmask 97280
    %v898 = vsel %vm896, %v881, %v721
    %v900 = vsel %vm896, %v883, %v723
    %v902 = vsel %vm896, %v885, %v725
    %v904 = vsel %vm896, %v887, %v727
    %v906 = vsel %vm896, %v889, %v729
    %v908 = vsel %vm896, %v891, %v731
    %v910 = vsel %vm896, %v893, %v733
    %v912 = vsel %vm896, %v895, %v735
    %vm913 = vcmask 130048
    %v915 = vsel %vm913, %v898, %v745
    %v917 = vsel %vm913, %v900, %v747
    %v919 = vsel %vm913, %v902, %v749
    %v921 = vsel %vm913, %v904, %v751
    %v923 = vsel %vm913, %v906, %v753
    %v925 = vsel %vm913, %v908, %v755
    %v927 = vsel %vm913, %v910, %v757
    %v929 = vsel %vm913, %v912, %v759
    %vm930 = vcmask 162816
    %v932 = vsel %vm930, %v915, %v769
    %v934 = vsel %vm930, %v917, %v771
    %v936 = vsel %vm930, %v919, %v773
    %v938 = vsel %vm930, %v921, %v775
    %v940 = vsel %vm930, %v923, %v777
    %v942 = vsel %vm930, %v925, %v779
    %v944 = vsel %vm930, %v927, %v781
    %v946 = vsel %vm930, %v929, %v783
    %vm947 = vcmask 195584
    %v949 = vsel %vm947, %v932, %v793
    %v951 = vsel %vm947, %v934, %v795
    %v953 = vsel %vm947, %v936, %v797
    %v955 = vsel %vm947, %v938, %v799
    %v957 = vsel %vm947, %v940, %v801
    %v959 = vsel %vm947, %v942, %v803
    %v961 = vsel %vm947, %v944, %v805
    %v963 = vsel %vm947, %v946, %v807
    %vm964 = vcmask 228352
    %v966 = vsel %vm964, %v949, %v817
    %v968 = vsel %vm964, %v951, %v819
    %v970 = vsel %vm964, %v953, %v821
    %v972 = vsel %vm964, %v955, %v823
    %v974 = vsel %vm964, %v957, %v825
    %v976 = vsel %vm964, %v959, %v827
    %v978 = vsel %vm964, %v961, %v829
    %v980 = vsel %vm964, %v963, %v831
    %vm981 = vcmask 261120
    %v983 = vsel %vm981, %v966, %v841
    %v985 = vsel %vm981, %v968, %v843
    %v987 = vsel %vm981, %v970, %v845
    %v989 = vsel %vm981, %v972, %v847
    %v991 = vsel %vm981, %v974, %v849
    %v993 = vsel %vm981, %v976, %v851
    %v995 = vsel %vm981, %v978, %v853
    %v997 = vsel %vm981, %v980, %v855
    %v998 = vld [vmem:[%s1] sm:$0xf]
    %v999 = vld [vmem:[%s1 + $0x4] sm:$0xf]
    %v1000 = vld [vmem:[%s1 + $0x8] sm:$0xf]
    %v1001 = vld [vmem:[%s1 + $0xc] sm:$0xf]
    %v1002 = vld [vmem:[%s1 + $0x10] sm:$0x3]
    %v1008 = vunpack.c.l.b16 %v998
    %v1009 = vunpack.c.l.b16 %v999
    %v1010 = vunpack.c.l.b16 %v1000
    %v1011 = vunpack.c.l.b16 %v1001
    %v1012 = vunpack.c.l.b16 %v1002
    %v1013 = vpack.c.b16 %v1009, %v1008
    %v1014 = vpack.c.b16 %v1011, %v1010
    %v1015 = vpack.c.b16 %v1012, %v1012
    %vm1018 = vcmask 293888
    %v1019 = vsel %vm1018, %v983, 0
    %v1021 = vsel %vm1018, %v985, 0
    %v1023 = vsel %vm1018, %v987, 0
    %v1025 = vsel %vm1018, %v989, 0
    %v1027 = vsel %vm1018, %v991, 0
    %v1029 = vsel %vm1018, %v993, 0
    %v1031 = vsel %vm1018, %v995, 0
    %v1033 = vsel %vm1018, %v997, 0
    %vm1035 = vcmask 1041408
    %v1037 = vsel %vm1035, %v1015, 0
    %1039 = vmatprep.subr.bf16.mxu0 0
    %1040 = vmatpush1.bf16.msra.mxu0 0
    %1041 = vmatprep.subr.bf16.mxu0 0
    %1042 = vmatpush1.bf16.msra.mxu0 0
    %1043 = vmatprep.subr.bf16.mxu0 0
    %1044 = vmatpush1.bf16.msra.mxu0 0
    %1045 = vmatprep.subr.bf16.mxu0 0
    %1046 = vmatpush1.bf16.msra.mxu0 0
    %1047 = vmatprep.subr.bf16.mxu0 0
    %1048 = vmatpush1.bf16.msra.mxu0 0
    %1049 = vmatprep.subr.bf16.mxu0 0
    %1050 = vmatpush1.bf16.msra.mxu0 %v1037
    %1051 = vmatprep.subr.bf16.mxu0 0
    %1052 = vmatpush1.bf16.msra.mxu0 %v1014
    %1053 = vmatprep.subr.bf16.mxu0 0
    %1054 = vmatpush1.bf16.msra.mxu0 %v1013
    %1055 = vmatprep.subr.bf16.mxu0 0
    %1056 = vmatpush2.bf16.msra.mxu0 0
    %1057 = vmatprep.subr.bf16.mxu0 0
    %1058 = vmatpush2.bf16.msra.mxu0 0
    %1059 = vmatprep.subr.bf16.mxu0 0
    %1060 = vmatpush2.bf16.msra.mxu0 0
    %1061 = vmatprep.subr.bf16.mxu0 0
    %1062 = vmatpush2.bf16.msra.mxu0 0
    %1063 = vmatprep.subr.bf16.mxu0 0
    %1064 = vmatpush2.bf16.msra.mxu0 0
    %1065 = vmatprep.subr.bf16.mxu0 0
    %1066 = vmatpush2.bf16.msra.mxu0 0
    %1067 = vmatprep.subr.bf16.mxu0 0
    %1068 = vmatpush2.bf16.msra.mxu0 0
    %1069 = vmatprep.subr.bf16.mxu0 0
    %1070 = vmatpush2.bf16.msra.mxu0 0
    %1071 = vmatprep.mubr.bf16.mxu0 0
    %1072 = vmatmul.mubr.bf16.gmra.mxu0 %v1019
    %v1073 = vpop.f32.mrf.mxu0
    %v1074 = vadd.f32 0.0, %v1073
    %v1075 = vpop.f32.mrf.mxu0
    %v1076 = vpop.f32.mrf.mxu0
    %v1077 = vadd.f32 0.0, %v1076
    %v1078 = vpop.f32.mrf.mxu0
    %1079 = vmatprep.mubr.bf16.mxu0 0
    %1080 = vmatmul.mubr.bf16.gmra.mxu0 %v1021
    %v1081 = vpop.f32.mrf.mxu0
    %v1082 = vadd.f32 0.0, %v1081
    %v1083 = vpop.f32.mrf.mxu0
    %v1084 = vpop.f32.mrf.mxu0
    %v1085 = vadd.f32 0.0, %v1084
    %v1086 = vpop.f32.mrf.mxu0
    %1087 = vmatprep.mubr.bf16.mxu0 0
    %1088 = vmatmul.mubr.bf16.gmra.mxu0 %v1023
    %v1089 = vpop.f32.mrf.mxu0
    %v1090 = vadd.f32 0.0, %v1089
    %v1091 = vpop.f32.mrf.mxu0
    %v1092 = vpop.f32.mrf.mxu0
    %v1093 = vadd.f32 0.0, %v1092
    %v1094 = vpop.f32.mrf.mxu0
    %1095 = vmatprep.mubr.bf16.mxu0 0
    %1096 = vmatmul.mubr.bf16.gmra.mxu0 %v1025
    %v1097 = vpop.f32.mrf.mxu0
    %v1098 = vadd.f32 0.0, %v1097
    %v1099 = vpop.f32.mrf.mxu0
    %v1100 = vpop.f32.mrf.mxu0
    %v1101 = vadd.f32 0.0, %v1100
    %v1102 = vpop.f32.mrf.mxu0
    %1103 = vmatprep.mubr.bf16.mxu0 0
    %1104 = vmatmul.mubr.bf16.gmra.mxu0 %v1027
    %v1105 = vpop.f32.mrf.mxu0
    %v1106 = vadd.f32 0.0, %v1105
    %v1107 = vpop.f32.mrf.mxu0
    %v1108 = vpop.f32.mrf.mxu0
    %v1109 = vadd.f32 0.0, %v1108
    %v1110 = vpop.f32.mrf.mxu0
    %1111 = vmatprep.mubr.bf16.mxu0 0
    %1112 = vmatmul.mubr.bf16.gmra.mxu0 %v1029
    %v1113 = vpop.f32.mrf.mxu0
    %v1114 = vadd.f32 0.0, %v1113
    %v1115 = vpop.f32.mrf.mxu0
    %v1116 = vpop.f32.mrf.mxu0
    %v1117 = vadd.f32 0.0, %v1116
    %v1118 = vpop.f32.mrf.mxu0
    %1119 = vmatprep.mubr.bf16.mxu0 0
    %1120 = vmatmul.mubr.bf16.gmra.mxu0 %v1031
    %v1121 = vpop.f32.mrf.mxu0
    %v1122 = vadd.f32 0.0, %v1121
    %v1123 = vpop.f32.mrf.mxu0
    %v1124 = vpop.f32.mrf.mxu0
    %v1125 = vadd.f32 0.0, %v1124
    %v1126 = vpop.f32.mrf.mxu0
    %1127 = vmatprep.mubr.bf16.mxu0 0
    %1128 = vmatmul.mubr.bf16.gmra.mxu0 %v1033
    %v1129 = vpop.f32.mrf.mxu0
    %v1130 = vadd.f32 0.0, %v1129
    %v1131 = vpop.f32.mrf.mxu0
    %v1132 = vpop.f32.mrf.mxu0
    %v1133 = vadd.f32 0.0, %v1132
    %v1134 = vpop.f32.mrf.mxu0
    %1135 = vdwg.mxu0
    %v1136 = vsel %vm135, %v1074, 0.0
    %v1137 = vsel %vm135, %v1077, 0.0
    %v1138 = vadd.f32 %v1136, %v1137
    %v1139 = vsel %vm135, %v1082, 0.0
    %v1140 = vadd.f32 %v1138, %v1139
    %v1141 = vsel %vm135, %v1085, 0.0
    %v1142 = vadd.f32 %v1140, %v1141
    %v1143 = vsel %vm135, %v1090, 0.0
    %v1144 = vadd.f32 %v1142, %v1143
    %v1145 = vsel %vm135, %v1093, 0.0
    %v1146 = vadd.f32 %v1144, %v1145
    %v1147 = vsel %vm135, %v1098, 0.0
    %v1148 = vadd.f32 %v1146, %v1147
    %v1149 = vsel %vm135, %v1101, 0.0
    %v1150 = vadd.f32 %v1148, %v1149
    %v1151 = vsel %vm135, %v1106, 0.0
    %v1152 = vadd.f32 %v1150, %v1151
    %v1153 = vsel %vm135, %v1109, 0.0
    %v1154 = vadd.f32 %v1152, %v1153
    %v1155 = vsel %vm135, %v1114, 0.0
    %v1156 = vadd.f32 %v1154, %v1155
    %v1157 = vsel %vm135, %v1117, 0.0
    %v1158 = vadd.f32 %v1156, %v1157
    %v1159 = vsel %vm135, %v1122, 0.0
    %v1160 = vadd.f32 %v1158, %v1159
    %v1161 = vsel %vm135, %v1125, 0.0
    %v1162 = vadd.f32 %v1160, %v1161
    %v1163 = vsel %vm135, %v1130, 0.0
    %v1164 = vadd.f32 %v1162, %v1163
    %v1165 = vsel %vm135, %v1133, 0.0
    %v1166 = vadd.f32 %v1164, %v1165
    %v1167 = vrot.slane %v1166, 4
    %v1168 = vadd.f32 %v1166, %v1167
    %v1169 = vrot.slane %v1168, 2
    %v1170 = vadd.f32 %v1168, %v1169
    %v1171 = vrot.slane %v1170, 1
    %v1172 = vadd.f32 %v1170, %v1171
    %v1173 = vmul.f32 %v1074, %v1074
    %v1174 = vmul.f32 %v1077, %v1077
    %v1175 = vmul.f32 %v1082, %v1082
    %v1176 = vmul.f32 %v1085, %v1085
    %v1177 = vmul.f32 %v1090, %v1090
    %v1178 = vmul.f32 %v1093, %v1093
    %v1179 = vmul.f32 %v1098, %v1098
    %v1180 = vmul.f32 %v1101, %v1101
    %v1181 = vmul.f32 %v1106, %v1106
    %v1182 = vmul.f32 %v1109, %v1109
    %v1183 = vmul.f32 %v1114, %v1114
    %v1184 = vmul.f32 %v1117, %v1117
    %v1185 = vmul.f32 %v1122, %v1122
    %v1186 = vmul.f32 %v1125, %v1125
    %v1187 = vmul.f32 %v1130, %v1130
    %v1188 = vmul.f32 %v1133, %v1133
    %v1189 = vsel %vm135, %v1173, 0.0
    %v1190 = vsel %vm135, %v1174, 0.0
    %v1191 = vadd.f32 %v1189, %v1190
    %v1192 = vsel %vm135, %v1175, 0.0
    %v1193 = vadd.f32 %v1191, %v1192
    %v1194 = vsel %vm135, %v1176, 0.0
    %v1195 = vadd.f32 %v1193, %v1194
    %v1196 = vsel %vm135, %v1177, 0.0
    %v1197 = vadd.f32 %v1195, %v1196
    %v1198 = vsel %vm135, %v1178, 0.0
    %v1199 = vadd.f32 %v1197, %v1198
    %v1200 = vsel %vm135, %v1179, 0.0
    %v1201 = vadd.f32 %v1199, %v1200
    %v1202 = vsel %vm135, %v1180, 0.0
    %v1203 = vadd.f32 %v1201, %v1202
    %v1204 = vsel %vm135, %v1181, 0.0
    %v1205 = vadd.f32 %v1203, %v1204
    %v1206 = vsel %vm135, %v1182, 0.0
    %v1207 = vadd.f32 %v1205, %v1206
    %v1208 = vsel %vm135, %v1183, 0.0
    %v1209 = vadd.f32 %v1207, %v1208
    %v1210 = vsel %vm135, %v1184, 0.0
    %v1211 = vadd.f32 %v1209, %v1210
    %v1212 = vsel %vm135, %v1185, 0.0
    %v1213 = vadd.f32 %v1211, %v1212
    %v1214 = vsel %vm135, %v1186, 0.0
    %v1215 = vadd.f32 %v1213, %v1214
    %v1216 = vsel %vm135, %v1187, 0.0
    %v1217 = vadd.f32 %v1215, %v1216
    %v1218 = vsel %vm135, %v1188, 0.0
    %v1219 = vadd.f32 %v1217, %v1218
    %v1220 = vrot.slane %v1219, 4
    %v1221 = vadd.f32 %v1219, %v1220
    %v1222 = vrot.slane %v1221, 2
    %v1223 = vadd.f32 %v1221, %v1222
    %v1224 = vrot.slane %v1223, 1
    %v1225 = vadd.f32 %v1223, %v1224
    %v1226 = vmul.f32 %v1172, 0.0078125
    %v1227 = vmul.f32 %v1225, 0.0078125
    %v1228 = vmul.f32 %v1226, %v1226
    %v1229 = vsub.f32 %v1227, %v1228
    %v1230 = vmax.f32 %v1229, 0.0
    %v1231 = vld [vmem:[%s4] sm:$0x1]
    %v1232 = vld [vmem:[%s5] sm:$0x1]
    %v1233 = vadd.f32 %v1230, 1e-05
    %v1234 = vrsqrt.pop %v1233
    %v1235 = vmul.f32 %v1231, %v1234
    %v1236 = vlaneseq
    %v1237 = vshrl.u32 %v1236, 7
    %v1238 = vsub.s32 0, %v1237
    %v1239 = vrot.slane %v1235, %v1238
    %v1240 = vmul.f32 %v1074, %v1239
    %v1241 = vmul.f32 %v1077, %v1239
    %v1242 = vmul.f32 %v1082, %v1239
    %v1243 = vmul.f32 %v1085, %v1239
    %v1244 = vmul.f32 %v1090, %v1239
    %v1245 = vmul.f32 %v1093, %v1239
    %v1246 = vmul.f32 %v1098, %v1239
    %v1247 = vmul.f32 %v1101, %v1239
    %v1248 = vmul.f32 %v1106, %v1239
    %v1249 = vmul.f32 %v1109, %v1239
    %v1250 = vmul.f32 %v1114, %v1239
    %v1251 = vmul.f32 %v1117, %v1239
    %v1252 = vmul.f32 %v1122, %v1239
    %v1253 = vmul.f32 %v1125, %v1239
    %v1254 = vmul.f32 %v1130, %v1239
    %v1255 = vmul.f32 %v1133, %v1239
    %v1256 = vmul.f32 %v1226, %v1235
    %v1257 = vsub.f32 %v1232, %v1256
    %v1258 = vlaneseq
    %v1259 = vshrl.u32 %v1258, 7
    %v1260 = vsub.s32 0, %v1259
    %v1261 = vrot.slane %v1257, %v1260
    %v1262 = vadd.f32 %v1240, %v1261
    %v1263 = vadd.f32 %v1241, %v1261
    %v1264 = vadd.f32 %v1242, %v1261
    %v1265 = vadd.f32 %v1243, %v1261
    %v1266 = vadd.f32 %v1244, %v1261
    %v1267 = vadd.f32 %v1245, %v1261
    %v1268 = vadd.f32 %v1246, %v1261
    %v1269 = vadd.f32 %v1247, %v1261
    %v1270 = vadd.f32 %v1248, %v1261
    %v1271 = vadd.f32 %v1249, %v1261
    %v1272 = vadd.f32 %v1250, %v1261
    %v1273 = vadd.f32 %v1251, %v1261
    %v1274 = vadd.f32 %v1252, %v1261
    %v1275 = vadd.f32 %v1253, %v1261
    %v1276 = vadd.f32 %v1254, %v1261
    %v1277 = vadd.f32 %v1255, %v1261
    %v1278 = vmax.f32 %v1262, 0.0
    %v1279 = vmax.f32 %v1263, 0.0
    %v1280 = vmax.f32 %v1264, 0.0
    %v1281 = vmax.f32 %v1265, 0.0
    %v1282 = vmax.f32 %v1266, 0.0
    %v1283 = vmax.f32 %v1267, 0.0
    %v1284 = vmax.f32 %v1268, 0.0
    %v1285 = vmax.f32 %v1269, 0.0
    %v1286 = vmax.f32 %v1270, 0.0
    %v1287 = vmax.f32 %v1271, 0.0
    %v1288 = vmax.f32 %v1272, 0.0
    %v1289 = vmax.f32 %v1273, 0.0
    %v1290 = vmax.f32 %v1274, 0.0
    %v1291 = vmax.f32 %v1275, 0.0
    %v1292 = vmax.f32 %v1276, 0.0
    %v1293 = vmax.f32 %v1277, 0.0
    %s1294 = scalar_lea.vmem [#allocation3], 16
    %1295 = vst.msk [vmem:[%s1294 + $0x1] sm:$0xff] %vm135, %v1278
    %1296 = vst.msk [vmem:[%s1294 + $0x11] sm:$0xff] %vm135, %v1279
    %1297 = vst.msk [vmem:[%s1294 + $0x21] sm:$0xff] %vm135, %v1280
    %1298 = vst.msk [vmem:[%s1294 + $0x31] sm:$0xff] %vm135, %v1281
    %1299 = vst.msk [vmem:[%s1294 + $0x41] sm:$0xff] %vm135, %v1282
    %1300 = vst.msk [vmem:[%s1294 + $0x51] sm:$0xff] %vm135, %v1283
    %1301 = vst.msk [vmem:[%s1294 + $0x61] sm:$0xff] %vm135, %v1284
    %1302 = vst.msk [vmem:[%s1294 + $0x71] sm:$0xff] %vm135, %v1285
    %1303 = vst.msk [vmem:[%s1294 + $0xa1] sm:$0xff] %vm135, %v1286
    %1304 = vst.msk [vmem:[%s1294 + $0xb1] sm:$0xff] %vm135, %v1287
    %1305 = vst.msk [vmem:[%s1294 + $0xc1] sm:$0xff] %vm135, %v1288
    %1306 = vst.msk [vmem:[%s1294 + $0xd1] sm:$0xff] %vm135, %v1289
    %1307 = vst.msk [vmem:[%s1294 + $0xe1] sm:$0xff] %vm135, %v1290
    %1308 = vst.msk [vmem:[%s1294 + $0xf1] sm:$0xff] %vm135, %v1291
    %1309 = vst.msk [vmem:[%s1294 + $0x101] sm:$0xff] %vm135, %v1292
    %1310 = vst.msk [vmem:[%s1294 + $0x111] sm:$0xff] %vm135, %v1293
    %v1311 = vld [vmem:[#allocation3] sm:$0xff]
    %v1312 = vld [vmem:[#allocation3 + $0x10] sm:$0xff]
    %v1313 = vld [vmem:[#allocation3 + $0x20] sm:$0xff]
    %v1314 = vld [vmem:[#allocation3 + $0x30] sm:$0xff]
    %v1315 = vld [vmem:[#allocation3 + $0x40] sm:$0xff]
    %v1316 = vld [vmem:[#allocation3 + $0x50] sm:$0xff]
    %v1317 = vld [vmem:[#allocation3 + $0x60] sm:$0xff]
    %v1318 = vld [vmem:[#allocation3 + $0x70] sm:$0xff]
    %v1319 = vld [vmem:[#allocation3 + $0xa0] sm:$0xff]
    %v1320 = vld [vmem:[#allocation3 + $0xb0] sm:$0xff]
    %v1321 = vld [vmem:[#allocation3 + $0xc0] sm:$0xff]
    %v1322 = vld [vmem:[#allocation3 + $0xd0] sm:$0xff]
    %v1323 = vld [vmem:[#allocation3 + $0xe0] sm:$0xff]
    %v1324 = vld [vmem:[#allocation3 + $0xf0] sm:$0xff]
    %v1325 = vld [vmem:[#allocation3 + $0x100] sm:$0xff]
    %v1326 = vld [vmem:[#allocation3 + $0x110] sm:$0xff]
    %v1327 = vpack.c.bf16 %v1312, %v1311
    %v1328 = vpack.c.bf16 %v1314, %v1313
    %v1329 = vpack.c.bf16 %v1316, %v1315
    %v1330 = vpack.c.bf16 %v1318, %v1317
    %v1331 = vpack.c.bf16 %v1320, %v1319
    %v1332 = vpack.c.bf16 %v1322, %v1321
    %v1333 = vpack.c.bf16 %v1324, %v1323
    %v1334 = vpack.c.bf16 %v1326, %v1325
    %v1335 = vld [vmem:[#allocation3 + $0x1] sm:$0xff]
    %v1336 = vld [vmem:[#allocation3 + $0x11] sm:$0xff]
    %v1337 = vld [vmem:[#allocation3 + $0x21] sm:$0xff]
    %v1338 = vld [vmem:[#allocation3 + $0x31] sm:$0xff]
    %v1339 = vld [vmem:[#allocation3 + $0x41] sm:$0xff]
    %v1340 = vld [vmem:[#allocation3 + $0x51] sm:$0xff]
    %v1341 = vld [vmem:[#allocation3 + $0x61] sm:$0xff]
    %v1342 = vld [vmem:[#allocation3 + $0x71] sm:$0xff]
    %v1343 = vld [vmem:[#allocation3 + $0xa1] sm:$0xff]
    %v1344 = vld [vmem:[#allocation3 + $0xb1] sm:$0xff]
    %v1345 = vld [vmem:[#allocation3 + $0xc1] sm:$0xff]
    %v1346 = vld [vmem:[#allocation3 + $0xd1] sm:$0xff]
    %v1347 = vld [vmem:[#allocation3 + $0xe1] sm:$0xff]
    %v1348 = vld [vmem:[#allocation3 + $0xf1] sm:$0xff]
    %v1349 = vld [vmem:[#allocation3 + $0x101] sm:$0xff]
    %v1350 = vld [vmem:[#allocation3 + $0x111] sm:$0xff]
    %v1351 = vpack.c.bf16 %v1336, %v1335
    %v1352 = vpack.c.bf16 %v1338, %v1337
    %v1353 = vpack.c.bf16 %v1340, %v1339
    %v1354 = vpack.c.bf16 %v1342, %v1341
    %v1355 = vpack.c.bf16 %v1344, %v1343
    %v1356 = vpack.c.bf16 %v1346, %v1345
    %v1357 = vpack.c.bf16 %v1348, %v1347
    %v1358 = vpack.c.bf16 %v1350, %v1349
    %v1359 = vld [vmem:[#allocation3 + $0x2] sm:$0xff]
    %v1360 = vld [vmem:[#allocation3 + $0x12] sm:$0xff]
    %v1361 = vld [vmem:[#allocation3 + $0x22] sm:$0xff]
    %v1362 = vld [vmem:[#allocation3 + $0x32] sm:$0xff]
    %v1363 = vld [vmem:[#allocation3 + $0x42] sm:$0xff]
    %v1364 = vld [vmem:[#allocation3 + $0x52] sm:$0xff]
    %v1365 = vld [vmem:[#allocation3 + $0x62] sm:$0xff]
    %v1366 = vld [vmem:[#allocation3 + $0x72] sm:$0xff]
    %v1367 = vld [vmem:[#allocation3 + $0xa2] sm:$0xff]
    %v1368 = vld [vmem:[#allocation3 + $0xb2] sm:$0xff]
    %v1369 = vld [vmem:[#allocation3 + $0xc2] sm:$0xff]
    %v1370 = vld [vmem:[#allocation3 + $0xd2] sm:$0xff]
    %v1371 = vld [vmem:[#allocation3 + $0xe2] sm:$0xff]
    %v1372 = vld [vmem:[#allocation3 + $0xf2] sm:$0xff]
    %v1373 = vld [vmem:[#allocation3 + $0x102] sm:$0xff]
    %v1374 = vld [vmem:[#allocation3 + $0x112] sm:$0xff]
    %v1375 = vpack.c.bf16 %v1360, %v1359
    %v1376 = vpack.c.bf16 %v1362, %v1361
    %v1377 = vpack.c.bf16 %v1364, %v1363
    %v1378 = vpack.c.bf16 %v1366, %v1365
    %v1379 = vpack.c.bf16 %v1368, %v1367
    %v1380 = vpack.c.bf16 %v1370, %v1369
    %v1381 = vpack.c.bf16 %v1372, %v1371
    %v1382 = vpack.c.bf16 %v1374, %v1373
    %v1383 = vld [vmem:[%s1294] sm:$0xff]
    %v1384 = vld [vmem:[%s1294 + $0x10] sm:$0xff]
    %v1385 = vld [vmem:[%s1294 + $0x20] sm:$0xff]
    %v1386 = vld [vmem:[%s1294 + $0x30] sm:$0xff]
    %v1387 = vld [vmem:[%s1294 + $0x40] sm:$0xff]
    %v1388 = vld [vmem:[%s1294 + $0x50] sm:$0xff]
    %v1389 = vld [vmem:[%s1294 + $0x60] sm:$0xff]
    %v1390 = vld [vmem:[%s1294 + $0x70] sm:$0xff]
    %v1391 = vld [vmem:[%s1294 + $0xa0] sm:$0xff]
    %v1392 = vld [vmem:[%s1294 + $0xb0] sm:$0xff]
    %v1393 = vld [vmem:[%s1294 + $0xc0] sm:$0xff]
    %v1394 = vld [vmem:[%s1294 + $0xd0] sm:$0xff]
    %v1395 = vld [vmem:[%s1294 + $0xe0] sm:$0xff]
    %v1396 = vld [vmem:[%s1294 + $0xf0] sm:$0xff]
    %v1397 = vld [vmem:[%s1294 + $0x100] sm:$0xff]
    %v1398 = vld [vmem:[%s1294 + $0x110] sm:$0xff]
    %v1399 = vpack.c.bf16 %v1384, %v1383
    %v1400 = vpack.c.bf16 %v1386, %v1385
    %v1401 = vpack.c.bf16 %v1388, %v1387
    %v1402 = vpack.c.bf16 %v1390, %v1389
    %v1403 = vpack.c.bf16 %v1392, %v1391
    %v1404 = vpack.c.bf16 %v1394, %v1393
    %v1405 = vpack.c.bf16 %v1396, %v1395
    %v1406 = vpack.c.bf16 %v1398, %v1397
    %v1407 = vld [vmem:[%s1294 + $0x1] sm:$0xff]
    %v1408 = vld [vmem:[%s1294 + $0x11] sm:$0xff]
    %v1409 = vld [vmem:[%s1294 + $0x21] sm:$0xff]
    %v1410 = vld [vmem:[%s1294 + $0x31] sm:$0xff]
    %v1411 = vld [vmem:[%s1294 + $0x41] sm:$0xff]
    %v1412 = vld [vmem:[%s1294 + $0x51] sm:$0xff]
    %v1413 = vld [vmem:[%s1294 + $0x61] sm:$0xff]
    %v1414 = vld [vmem:[%s1294 + $0x71] sm:$0xff]
    %v1415 = vld [vmem:[%s1294 + $0xa1] sm:$0xff]
    %v1416 = vld [vmem:[%s1294 + $0xb1] sm:$0xff]
    %v1417 = vld [vmem:[%s1294 + $0xc1] sm:$0xff]
    %v1418 = vld [vmem:[%s1294 + $0xd1] sm:$0xff]
    %v1419 = vld [vmem:[%s1294 + $0xe1] sm:$0xff]
    %v1420 = vld [vmem:[%s1294 + $0xf1] sm:$0xff]
    %v1421 = vld [vmem:[%s1294 + $0x101] sm:$0xff]
    %v1422 = vld [vmem:[%s1294 + $0x111] sm:$0xff]
    %v1423 = vpack.c.bf16 %v1408, %v1407
    %v1424 = vpack.c.bf16 %v1410, %v1409
    %v1425 = vpack.c.bf16 %v1412, %v1411
    %v1426 = vpack.c.bf16 %v1414, %v1413
    %v1427 = vpack.c.bf16 %v1416, %v1415
    %v1428 = vpack.c.bf16 %v1418, %v1417
    %v1429 = vpack.c.bf16 %v1420, %v1419
    %v1430 = vpack.c.bf16 %v1422, %v1421
    %v1431 = vld [vmem:[%s1294 + $0x2] sm:$0xff]
    %v1432 = vld [vmem:[%s1294 + $0x12] sm:$0xff]
    %v1433 = vld [vmem:[%s1294 + $0x22] sm:$0xff]
    %v1434 = vld [vmem:[%s1294 + $0x32] sm:$0xff]
    %v1435 = vld [vmem:[%s1294 + $0x42] sm:$0xff]
    %v1436 = vld [vmem:[%s1294 + $0x52] sm:$0xff]
    %v1437 = vld [vmem:[%s1294 + $0x62] sm:$0xff]
    %v1438 = vld [vmem:[%s1294 + $0x72] sm:$0xff]
    %v1439 = vld [vmem:[%s1294 + $0xa2] sm:$0xff]
    %v1440 = vld [vmem:[%s1294 + $0xb2] sm:$0xff]
    %v1441 = vld [vmem:[%s1294 + $0xc2] sm:$0xff]
    %v1442 = vld [vmem:[%s1294 + $0xd2] sm:$0xff]
    %v1443 = vld [vmem:[%s1294 + $0xe2] sm:$0xff]
    %v1444 = vld [vmem:[%s1294 + $0xf2] sm:$0xff]
    %v1445 = vld [vmem:[%s1294 + $0x102] sm:$0xff]
    %v1446 = vld [vmem:[%s1294 + $0x112] sm:$0xff]
    %v1447 = vpack.c.bf16 %v1432, %v1431
    %v1448 = vpack.c.bf16 %v1434, %v1433
    %v1449 = vpack.c.bf16 %v1436, %v1435
    %v1450 = vpack.c.bf16 %v1438, %v1437
    %v1451 = vpack.c.bf16 %v1440, %v1439
    %v1452 = vpack.c.bf16 %v1442, %v1441
    %v1453 = vpack.c.bf16 %v1444, %v1443
    %v1454 = vpack.c.bf16 %v1446, %v1445
    %s1455 = scalar_lea.vmem [#allocation3], 32
    %v1456 = vld [vmem:[%s1455] sm:$0xff]
    %v1457 = vld [vmem:[%s1455 + $0x10] sm:$0xff]
    %v1458 = vld [vmem:[%s1455 + $0x20] sm:$0xff]
    %v1459 = vld [vmem:[%s1455 + $0x30] sm:$0xff]
    %v1460 = vld [vmem:[%s1455 + $0x40] sm:$0xff]
    %v1461 = vld [vmem:[%s1455 + $0x50] sm:$0xff]
    %v1462 = vld [vmem:[%s1455 + $0x60] sm:$0xff]
    %v1463 = vld [vmem:[%s1455 + $0x70] sm:$0xff]
    %v1464 = vld [vmem:[%s1455 + $0xa0] sm:$0xff]
    %v1465 = vld [vmem:[%s1455 + $0xb0] sm:$0xff]
    %v1466 = vld [vmem:[%s1455 + $0xc0] sm:$0xff]
    %v1467 = vld [vmem:[%s1455 + $0xd0] sm:$0xff]
    %v1468 = vld [vmem:[%s1455 + $0xe0] sm:$0xff]
    %v1469 = vld [vmem:[%s1455 + $0xf0] sm:$0xff]
    %v1470 = vld [vmem:[%s1455 + $0x100] sm:$0xff]
    %v1471 = vld [vmem:[%s1455 + $0x110] sm:$0xff]
    %v1472 = vpack.c.bf16 %v1457, %v1456
    %v1473 = vpack.c.bf16 %v1459, %v1458
    %v1474 = vpack.c.bf16 %v1461, %v1460
    %v1475 = vpack.c.bf16 %v1463, %v1462
    %v1476 = vpack.c.bf16 %v1465, %v1464
    %v1477 = vpack.c.bf16 %v1467, %v1466
    %v1478 = vpack.c.bf16 %v1469, %v1468
    %v1479 = vpack.c.bf16 %v1471, %v1470
    %v1480 = vld [vmem:[%s1455 + $0x1] sm:$0xff]
    %v1481 = vld [vmem:[%s1455 + $0x11] sm:$0xff]
    %v1482 = vld [vmem:[%s1455 + $0x21] sm:$0xff]
    %v1483 = vld [vmem:[%s1455 + $0x31] sm:$0xff]
    %v1484 = vld [vmem:[%s1455 + $0x41] sm:$0xff]
    %v1485 = vld [vmem:[%s1455 + $0x51] sm:$0xff]
    %v1486 = vld [vmem:[%s1455 + $0x61] sm:$0xff]
    %v1487 = vld [vmem:[%s1455 + $0x71] sm:$0xff]
    %v1488 = vld [vmem:[%s1455 + $0xa1] sm:$0xff]
    %v1489 = vld [vmem:[%s1455 + $0xb1] sm:$0xff]
    %v1490 = vld [vmem:[%s1455 + $0xc1] sm:$0xff]
    %v1491 = vld [vmem:[%s1455 + $0xd1] sm:$0xff]
    %v1492 = vld [vmem:[%s1455 + $0xe1] sm:$0xff]
    %v1493 = vld [vmem:[%s1455 + $0xf1] sm:$0xff]
    %v1494 = vld [vmem:[%s1455 + $0x101] sm:$0xff]
    %v1495 = vld [vmem:[%s1455 + $0x111] sm:$0xff]
    %v1496 = vpack.c.bf16 %v1481, %v1480
    %v1497 = vpack.c.bf16 %v1483, %v1482
    %v1498 = vpack.c.bf16 %v1485, %v1484
    %v1499 = vpack.c.bf16 %v1487, %v1486
    %v1500 = vpack.c.bf16 %v1489, %v1488
    %v1501 = vpack.c.bf16 %v1491, %v1490
    %v1502 = vpack.c.bf16 %v1493, %v1492
    %v1503 = vpack.c.bf16 %v1495, %v1494
    %v1504 = vld [vmem:[%s1455 + $0x2] sm:$0xff]
    %v1505 = vld [vmem:[%s1455 + $0x12] sm:$0xff]
    %v1506 = vld [vmem:[%s1455 + $0x22] sm:$0xff]
    %v1507 = vld [vmem:[%s1455 + $0x32] sm:$0xff]
    %v1508 = vld [vmem:[%s1455 + $0x42] sm:$0xff]
    %v1509 = vld [vmem:[%s1455 + $0x52] sm:$0xff]
    %v1510 = vld [vmem:[%s1455 + $0x62] sm:$0xff]
    %v1511 = vld [vmem:[%s1455 + $0x72] sm:$0xff]
    %v1512 = vld [vmem:[%s1455 + $0xa2] sm:$0xff]
    %v1513 = vld [vmem:[%s1455 + $0xb2] sm:$0xff]
    %v1514 = vld [vmem:[%s1455 + $0xc2] sm:$0xff]
    %v1515 = vld [vmem:[%s1455 + $0xd2] sm:$0xff]
    %v1516 = vld [vmem:[%s1455 + $0xe2] sm:$0xff]
    %v1517 = vld [vmem:[%s1455 + $0xf2] sm:$0xff]
    %v1518 = vld [vmem:[%s1455 + $0x102] sm:$0xff]
    %v1519 = vld [vmem:[%s1455 + $0x112] sm:$0xff]
    %v1520 = vpack.c.bf16 %v1505, %v1504
    %v1521 = vpack.c.bf16 %v1507, %v1506
    %v1522 = vpack.c.bf16 %v1509, %v1508
    %v1523 = vpack.c.bf16 %v1511, %v1510
    %v1524 = vpack.c.bf16 %v1513, %v1512
    %v1525 = vpack.c.bf16 %v1515, %v1514
    %v1526 = vpack.c.bf16 %v1517, %v1516
    %v1527 = vpack.c.bf16 %v1519, %v1518
    %1536 = vrot.lane.b32.xlu0 %v1351, 8
    %v1537 = vpop.permute.xlu0 %1536
    %1538 = vrot.lane.b32.xlu0 %v1352, 8
    %v1539 = vpop.permute.xlu0 %1538
    %1540 = vrot.lane.b32.xlu0 %v1353, 8
    %v1541 = vpop.permute.xlu0 %1540
    %1542 = vrot.lane.b32.xlu0 %v1354, 8
    %v1543 = vpop.permute.xlu0 %1542
    %1544 = vrot.lane.b32.xlu0 %v1355, 8
    %v1545 = vpop.permute.xlu0 %1544
    %1546 = vrot.lane.b32.xlu0 %v1356, 8
    %v1547 = vpop.permute.xlu0 %1546
    %1548 = vrot.lane.b32.xlu0 %v1357, 8
    %v1549 = vpop.permute.xlu0 %1548
    %1550 = vrot.lane.b32.xlu0 %v1358, 8
    %v1551 = vpop.permute.xlu0 %1550
    %1560 = vrot.lane.b32.xlu0 %v1375, 16
    %v1561 = vpop.permute.xlu0 %1560
    %1562 = vrot.lane.b32.xlu0 %v1376, 16
    %v1563 = vpop.permute.xlu0 %1562
    %1564 = vrot.lane.b32.xlu0 %v1377, 16
    %v1565 = vpop.permute.xlu0 %1564
    %1566 = vrot.lane.b32.xlu0 %v1378, 16
    %v1567 = vpop.permute.xlu0 %1566
    %1568 = vrot.lane.b32.xlu0 %v1379, 16
    %v1569 = vpop.permute.xlu0 %1568
    %1570 = vrot.lane.b32.xlu0 %v1380, 16
    %v1571 = vpop.permute.xlu0 %1570
    %1572 = vrot.lane.b32.xlu0 %v1381, 16
    %v1573 = vpop.permute.xlu0 %1572
    %1574 = vrot.lane.b32.xlu0 %v1382, 16
    %v1575 = vpop.permute.xlu0 %1574
    %1584 = vrot.lane.b32.xlu0 %v1399, 24
    %v1585 = vpop.permute.xlu0 %1584
    %1586 = vrot.lane.b32.xlu0 %v1400, 24
    %v1587 = vpop.permute.xlu0 %1586
    %1588 = vrot.lane.b32.xlu0 %v1401, 24
    %v1589 = vpop.permute.xlu0 %1588
    %1590 = vrot.lane.b32.xlu0 %v1402, 24
    %v1591 = vpop.permute.xlu0 %1590
    %1592 = vrot.lane.b32.xlu0 %v1403, 24
    %v1593 = vpop.permute.xlu0 %1592
    %1594 = vrot.lane.b32.xlu0 %v1404, 24
    %v1595 = vpop.permute.xlu0 %1594
    %1596 = vrot.lane.b32.xlu0 %v1405, 24
    %v1597 = vpop.permute.xlu0 %1596
    %1598 = vrot.lane.b32.xlu0 %v1406, 24
    %v1599 = vpop.permute.xlu0 %1598
    %1608 = vrot.lane.b32.xlu0 %v1423, 32
    %v1609 = vpop.permute.xlu0 %1608
    %1610 = vrot.lane.b32.xlu0 %v1424, 32
    %v1611 = vpop.permute.xlu0 %1610
    %1612 = vrot.lane.b32.xlu0 %v1425, 32
    %v1613 = vpop.permute.xlu0 %1612
    %1614 = vrot.lane.b32.xlu0 %v1426, 32
    %v1615 = vpop.permute.xlu0 %1614
    %1616 = vrot.lane.b32.xlu0 %v1427, 32
    %v1617 = vpop.permute.xlu0 %1616
    %1618 = vrot.lane.b32.xlu0 %v1428, 32
    %v1619 = vpop.permute.xlu0 %1618
    %1620 = vrot.lane.b32.xlu0 %v1429, 32
    %v1621 = vpop.permute.xlu0 %1620
    %1622 = vrot.lane.b32.xlu0 %v1430, 32
    %v1623 = vpop.permute.xlu0 %1622
    %1632 = vrot.lane.b32.xlu0 %v1447, 40
    %v1633 = vpop.permute.xlu0 %1632
    %1634 = vrot.lane.b32.xlu0 %v1448, 40
    %v1635 = vpop.permute.xlu0 %1634
    %1636 = vrot.lane.b32.xlu0 %v1449, 40
    %v1637 = vpop.permute.xlu0 %1636
    %1638 = vrot.lane.b32.xlu0 %v1450, 40
    %v1639 = vpop.permute.xlu0 %1638
    %1640 = vrot.lane.b32.xlu0 %v1451, 40
    %v1641 = vpop.permute.xlu0 %1640
    %1642 = vrot.lane.b32.xlu0 %v1452, 40
    %v1643 = vpop.permute.xlu0 %1642
    %1644 = vrot.lane.b32.xlu0 %v1453, 40
    %v1645 = vpop.permute.xlu0 %1644
    %1646 = vrot.lane.b32.xlu0 %v1454, 40
    %v1647 = vpop.permute.xlu0 %1646
    %1656 = vrot.lane.b32.xlu0 %v1472, 48
    %v1657 = vpop.permute.xlu0 %1656
    %1658 = vrot.lane.b32.xlu0 %v1473, 48
    %v1659 = vpop.permute.xlu0 %1658
    %1660 = vrot.lane.b32.xlu0 %v1474, 48
    %v1661 = vpop.permute.xlu0 %1660
    %1662 = vrot.lane.b32.xlu0 %v1475, 48
    %v1663 = vpop.permute.xlu0 %1662
    %1664 = vrot.lane.b32.xlu0 %v1476, 48
    %v1665 = vpop.permute.xlu0 %1664
    %1666 = vrot.lane.b32.xlu0 %v1477, 48
    %v1667 = vpop.permute.xlu0 %1666
    %1668 = vrot.lane.b32.xlu0 %v1478, 48
    %v1669 = vpop.permute.xlu0 %1668
    %1670 = vrot.lane.b32.xlu0 %v1479, 48
    %v1671 = vpop.permute.xlu0 %1670
    %1680 = vrot.lane.b32.xlu0 %v1496, 56
    %v1681 = vpop.permute.xlu0 %1680
    %1682 = vrot.lane.b32.xlu0 %v1497, 56
    %v1683 = vpop.permute.xlu0 %1682
    %1684 = vrot.lane.b32.xlu0 %v1498, 56
    %v1685 = vpop.permute.xlu0 %1684
    %1686 = vrot.lane.b32.xlu0 %v1499, 56
    %v1687 = vpop.permute.xlu0 %1686
    %1688 = vrot.lane.b32.xlu0 %v1500, 56
    %v1689 = vpop.permute.xlu0 %1688
    %1690 = vrot.lane.b32.xlu0 %v1501, 56
    %v1691 = vpop.permute.xlu0 %1690
    %1692 = vrot.lane.b32.xlu0 %v1502, 56
    %v1693 = vpop.permute.xlu0 %1692
    %1694 = vrot.lane.b32.xlu0 %v1503, 56
    %v1695 = vpop.permute.xlu0 %1694
    %1704 = vrot.lane.b32.xlu0 %v1520, 64
    %v1705 = vpop.permute.xlu0 %1704
    %1706 = vrot.lane.b32.xlu0 %v1521, 64
    %v1707 = vpop.permute.xlu0 %1706
    %1708 = vrot.lane.b32.xlu0 %v1522, 64
    %v1709 = vpop.permute.xlu0 %1708
    %1710 = vrot.lane.b32.xlu0 %v1523, 64
    %v1711 = vpop.permute.xlu0 %1710
    %1712 = vrot.lane.b32.xlu0 %v1524, 64
    %v1713 = vpop.permute.xlu0 %1712
    %1714 = vrot.lane.b32.xlu0 %v1525, 64
    %v1715 = vpop.permute.xlu0 %1714
    %1716 = vrot.lane.b32.xlu0 %v1526, 64
    %v1717 = vpop.permute.xlu0 %1716
    %1718 = vrot.lane.b32.xlu0 %v1527, 64
    %v1719 = vpop.permute.xlu0 %1718
    %v1722 = vsel %vm135, %v1327, %v1537
    %v1725 = vsel %vm135, %v1328, %v1539
    %v1728 = vsel %vm135, %v1329, %v1541
    %v1731 = vsel %vm135, %v1330, %v1543
    %v1734 = vsel %vm135, %v1331, %v1545
    %v1737 = vsel %vm135, %v1332, %v1547
    %v1740 = vsel %vm135, %v1333, %v1549
    %v1743 = vsel %vm135, %v1334, %v1551
    %v1745 = vsel %vm913, %v1722, %v1561
    %v1747 = vsel %vm913, %v1725, %v1563
    %v1749 = vsel %vm913, %v1728, %v1565
    %v1751 = vsel %vm913, %v1731, %v1567
    %v1753 = vsel %vm913, %v1734, %v1569
    %v1755 = vsel %vm913, %v1737, %v1571
    %v1757 = vsel %vm913, %v1740, %v1573
    %v1759 = vsel %vm913, %v1743, %v1575
    %v1761 = vsel %vm947, %v1745, %v1585
    %v1763 = vsel %vm947, %v1747, %v1587
    %v1765 = vsel %vm947, %v1749, %v1589
    %v1767 = vsel %vm947, %v1751, %v1591
    %v1769 = vsel %vm947, %v1753, %v1593
    %v1771 = vsel %vm947, %v1755, %v1595
    %v1773 = vsel %vm947, %v1757, %v1597
    %v1775 = vsel %vm947, %v1759, %v1599
    %v1777 = vsel %vm981, %v1761, %v1609
    %v1779 = vsel %vm981, %v1763, %v1611
    %v1781 = vsel %vm981, %v1765, %v1613
    %v1783 = vsel %vm981, %v1767, %v1615
    %v1785 = vsel %vm981, %v1769, %v1617
    %v1787 = vsel %vm981, %v1771, %v1619
    %v1789 = vsel %vm981, %v1773, %v1621
    %v1791 = vsel %vm981, %v1775, %v1623
    %vm1792 = vcmask 326656
    %v1794 = vsel %vm1792, %v1777, %v1633
    %v1796 = vsel %vm1792, %v1779, %v1635
    %v1798 = vsel %vm1792, %v1781, %v1637
    %v1800 = vsel %vm1792, %v1783, %v1639
    %v1802 = vsel %vm1792, %v1785, %v1641
    %v1804 = vsel %vm1792, %v1787, %v1643
    %v1806 = vsel %vm1792, %v1789, %v1645
    %v1808 = vsel %vm1792, %v1791, %v1647
    %vm1809 = vcmask 392192
    %v1811 = vsel %vm1809, %v1794, %v1657
    %v1813 = vsel %vm1809, %v1796, %v1659
    %v1815 = vsel %vm1809, %v1798, %v1661
    %v1817 = vsel %vm1809, %v1800, %v1663
    %v1819 = vsel %vm1809, %v1802, %v1665
    %v1821 = vsel %vm1809, %v1804, %v1667
    %v1823 = vsel %vm1809, %v1806, %v1669
    %v1825 = vsel %vm1809, %v1808, %v1671
    %vm1826 = vcmask 457728
    %v1828 = vsel %vm1826, %v1811, %v1681
    %v1830 = vsel %vm1826, %v1813, %v1683
    %v1832 = vsel %vm1826, %v1815, %v1685
    %v1834 = vsel %vm1826, %v1817, %v1687
    %v1836 = vsel %vm1826, %v1819, %v1689
    %v1838 = vsel %vm1826, %v1821, %v1691
    %v1840 = vsel %vm1826, %v1823, %v1693
    %v1842 = vsel %vm1826, %v1825, %v1695
    %vm1843 = vcmask 523264
    %v1845 = vsel %vm1843, %v1828, %v1705
    %v1847 = vsel %vm1843, %v1830, %v1707
    %v1849 = vsel %vm1843, %v1832, %v1709
    %v1851 = vsel %vm1843, %v1834, %v1711
    %v1853 = vsel %vm1843, %v1836, %v1713
    %v1855 = vsel %vm1843, %v1838, %v1715
    %v1857 = vsel %vm1843, %v1840, %v1717
    %v1859 = vsel %vm1843, %v1842, %v1719
    %v1860 = vld [vmem:[%s2] sm:$0xf]
    %v1861 = vld [vmem:[%s2 + $0x4] sm:$0xf]
    %v1862 = vld [vmem:[%s2 + $0x8] sm:$0xf]
    %v1863 = vld [vmem:[%s2 + $0xc] sm:$0xf]
    %v1864 = vld [vmem:[%s2 + $0x10] sm:$0xf]
    %v1865 = vld [vmem:[%s2 + $0x14] sm:$0xf]
    %v1866 = vld [vmem:[%s2 + $0x18] sm:$0xf]
    %v1867 = vld [vmem:[%s2 + $0x1c] sm:$0xf]
    %v1868 = vld [vmem:[%s2 + $0x20] sm:$0xf]
    %v1878 = vunpack.c.l.b16 %v1860
    %v1879 = vunpack.c.l.b16 %v1861
    %v1880 = vunpack.c.l.b16 %v1862
    %v1881 = vunpack.c.l.b16 %v1863
    %v1882 = vunpack.c.l.b16 %v1864
    %v1883 = vunpack.c.l.b16 %v1865
    %v1884 = vunpack.c.l.b16 %v1866
    %v1885 = vunpack.c.l.b16 %v1867
    %v1886 = vunpack.c.l.b16 %v1868
    %v1887 = vpack.c.b16 %v1879, %v1878
    %v1888 = vpack.c.b16 %v1881, %v1880
    %v1889 = vpack.c.b16 %v1883, %v1882
    %v1890 = vpack.c.b16 %v1885, %v1884
    %v1891 = vpack.c.b16 %v1886, %v1886
    %vm1896 = vcmask 588800
    %v1897 = vsel %vm1896, %v1845, 0
    %v1899 = vsel %vm1896, %v1847, 0
    %v1901 = vsel %vm1896, %v1849, 0
    %v1903 = vsel %vm1896, %v1851, 0
    %v1905 = vsel %vm1896, %v1853, 0
    %v1907 = vsel %vm1896, %v1855, 0
    %v1909 = vsel %vm1896, %v1857, 0
    %v1911 = vsel %vm1896, %v1859, 0
    %vm1913 = vcmask 1043456
    %v1915 = vsel %vm1913, %v1891, 0
    %1917 = vmatprep.subr.bf16.mxu0 0
    %1918 = vmatpush1.bf16.msra.mxu0 0
    %1919 = vmatprep.subr.bf16.mxu0 0
    %1920 = vmatpush1.bf16.msra.mxu0 0
    %1921 = vmatprep.subr.bf16.mxu0 0
    %1922 = vmatpush1.bf16.msra.mxu0 0
    %1923 = vmatprep.subr.bf16.mxu0 0
    %1924 = vmatpush1.bf16.msra.mxu0 %v1915
    %1925 = vmatprep.subr.bf16.mxu0 0
    %1926 = vmatpush1.bf16.msra.mxu0 %v1890
    %1927 = vmatprep.subr.bf16.mxu0 0
    %1928 = vmatpush1.bf16.msra.mxu0 %v1889
    %1929 = vmatprep.subr.bf16.mxu0 0
    %1930 = vmatpush1.bf16.msra.mxu0 %v1888
    %1931 = vmatprep.subr.bf16.mxu0 0
    %1932 = vmatpush1.bf16.msra.mxu0 %v1887
    %1933 = vmatprep.subr.bf16.mxu0 0
    %1934 = vmatpush2.bf16.msra.mxu0 0
    %1935 = vmatprep.subr.bf16.mxu0 0
    %1936 = vmatpush2.bf16.msra.mxu0 0
    %1937 = vmatprep.subr.bf16.mxu0 0
    %1938 = vmatpush2.bf16.msra.mxu0 0
    %1939 = vmatprep.subr.bf16.mxu0 0
    %1940 = vmatpush2.bf16.msra.mxu0 0
    %1941 = vmatprep.subr.bf16.mxu0 0
    %1942 = vmatpush2.bf16.msra.mxu0 0
    %1943 = vmatprep.subr.bf16.mxu0 0
    %1944 = vmatpush2.bf16.msra.mxu0 0
    %1945 = vmatprep.subr.bf16.mxu0 0
    %1946 = vmatpush2.bf16.msra.mxu0 0
    %1947 = vmatprep.subr.bf16.mxu0 0
    %1948 = vmatpush2.bf16.msra.mxu0 0
    %1949 = vmatprep.mubr.bf16.mxu0 0
    %1950 = vmatmul.mubr.bf16.gmra.mxu0 %v1897
    %v1951 = vpop.f32.mrf.mxu0
    %v1952 = vadd.f32 0.0, %v1951
    %v1953 = vpop.f32.mrf.mxu0
    %v1954 = vpop.f32.mrf.mxu0
    %v1955 = vadd.f32 0.0, %v1954
    %v1956 = vpop.f32.mrf.mxu0
    %1957 = vmatprep.mubr.bf16.mxu0 0
    %1958 = vmatmul.mubr.bf16.gmra.mxu0 %v1899
    %v1959 = vpop.f32.mrf.mxu0
    %v1960 = vadd.f32 0.0, %v1959
    %v1961 = vpop.f32.mrf.mxu0
    %v1962 = vpop.f32.mrf.mxu0
    %v1963 = vadd.f32 0.0, %v1962
    %v1964 = vpop.f32.mrf.mxu0
    %1965 = vmatprep.mubr.bf16.mxu0 0
    %1966 = vmatmul.mubr.bf16.gmra.mxu0 %v1901
    %v1967 = vpop.f32.mrf.mxu0
    %v1968 = vadd.f32 0.0, %v1967
    %v1969 = vpop.f32.mrf.mxu0
    %v1970 = vpop.f32.mrf.mxu0
    %v1971 = vadd.f32 0.0, %v1970
    %v1972 = vpop.f32.mrf.mxu0
    %1973 = vmatprep.mubr.bf16.mxu0 0
    %1974 = vmatmul.mubr.bf16.gmra.mxu0 %v1903
    %v1975 = vpop.f32.mrf.mxu0
    %v1976 = vadd.f32 0.0, %v1975
    %v1977 = vpop.f32.mrf.mxu0
    %v1978 = vpop.f32.mrf.mxu0
    %v1979 = vadd.f32 0.0, %v1978
    %v1980 = vpop.f32.mrf.mxu0
    %1981 = vmatprep.mubr.bf16.mxu0 0
    %1982 = vmatmul.mubr.bf16.gmra.mxu0 %v1905
    %v1983 = vpop.f32.mrf.mxu0
    %v1984 = vadd.f32 0.0, %v1983
    %v1985 = vpop.f32.mrf.mxu0
    %v1986 = vpop.f32.mrf.mxu0
    %v1987 = vadd.f32 0.0, %v1986
    %v1988 = vpop.f32.mrf.mxu0
    %1989 = vmatprep.mubr.bf16.mxu0 0
    %1990 = vmatmul.mubr.bf16.gmra.mxu0 %v1907
    %v1991 = vpop.f32.mrf.mxu0
    %v1992 = vadd.f32 0.0, %v1991
    %v1993 = vpop.f32.mrf.mxu0
    %v1994 = vpop.f32.mrf.mxu0
    %v1995 = vadd.f32 0.0, %v1994
    %v1996 = vpop.f32.mrf.mxu0
    %1997 = vmatprep.mubr.bf16.mxu0 0
    %1998 = vmatmul.mubr.bf16.gmra.mxu0 %v1909
    %v1999 = vpop.f32.mrf.mxu0
    %v2000 = vadd.f32 0.0, %v1999
    %v2001 = vpop.f32.mrf.mxu0
    %v2002 = vpop.f32.mrf.mxu0
    %v2003 = vadd.f32 0.0, %v2002
    %v2004 = vpop.f32.mrf.mxu0
    %2005 = vmatprep.mubr.bf16.mxu0 0
    %2006 = vmatmul.mubr.bf16.gmra.mxu0 %v1911
    %v2007 = vpop.f32.mrf.mxu0
    %v2008 = vadd.f32 0.0, %v2007
    %v2009 = vpop.f32.mrf.mxu0
    %v2010 = vpop.f32.mrf.mxu0
    %v2011 = vadd.f32 0.0, %v2010
    %v2012 = vpop.f32.mrf.mxu0
    %2013 = vdwg.mxu0
    %v2014 = vsel %vm135, %v1952, 0.0
    %v2015 = vsel %vm135, %v1955, 0.0
    %v2016 = vadd.f32 %v2014, %v2015
    %v2017 = vsel %vm135, %v1960, 0.0
    %v2018 = vadd.f32 %v2016, %v2017
    %v2019 = vsel %vm135, %v1963, 0.0
    %v2020 = vadd.f32 %v2018, %v2019
    %v2021 = vsel %vm135, %v1968, 0.0
    %v2022 = vadd.f32 %v2020, %v2021
    %v2023 = vsel %vm135, %v1971, 0.0
    %v2024 = vadd.f32 %v2022, %v2023
    %v2025 = vsel %vm135, %v1976, 0.0
    %v2026 = vadd.f32 %v2024, %v2025
    %v2027 = vsel %vm135, %v1979, 0.0
    %v2028 = vadd.f32 %v2026, %v2027
    %v2029 = vsel %vm135, %v1984, 0.0
    %v2030 = vadd.f32 %v2028, %v2029
    %v2031 = vsel %vm135, %v1987, 0.0
    %v2032 = vadd.f32 %v2030, %v2031
    %v2033 = vsel %vm135, %v1992, 0.0
    %v2034 = vadd.f32 %v2032, %v2033
    %v2035 = vsel %vm135, %v1995, 0.0
    %v2036 = vadd.f32 %v2034, %v2035
    %v2037 = vsel %vm135, %v2000, 0.0
    %v2038 = vadd.f32 %v2036, %v2037
    %v2039 = vsel %vm135, %v2003, 0.0
    %v2040 = vadd.f32 %v2038, %v2039
    %v2041 = vsel %vm135, %v2008, 0.0
    %v2042 = vadd.f32 %v2040, %v2041
    %v2043 = vsel %vm135, %v2011, 0.0
    %v2044 = vadd.f32 %v2042, %v2043
    %v2045 = vrot.slane %v2044, 4
    %v2046 = vadd.f32 %v2044, %v2045
    %v2047 = vrot.slane %v2046, 2
    %v2048 = vadd.f32 %v2046, %v2047
    %v2049 = vrot.slane %v2048, 1
    %v2050 = vadd.f32 %v2048, %v2049
    %v2051 = vmul.f32 %v1952, %v1952
    %v2052 = vmul.f32 %v1955, %v1955
    %v2053 = vmul.f32 %v1960, %v1960
    %v2054 = vmul.f32 %v1963, %v1963
    %v2055 = vmul.f32 %v1968, %v1968
    %v2056 = vmul.f32 %v1971, %v1971
    %v2057 = vmul.f32 %v1976, %v1976
    %v2058 = vmul.f32 %v1979, %v1979
    %v2059 = vmul.f32 %v1984, %v1984
    %v2060 = vmul.f32 %v1987, %v1987
    %v2061 = vmul.f32 %v1992, %v1992
    %v2062 = vmul.f32 %v1995, %v1995
    %v2063 = vmul.f32 %v2000, %v2000
    %v2064 = vmul.f32 %v2003, %v2003
    %v2065 = vmul.f32 %v2008, %v2008
    %v2066 = vmul.f32 %v2011, %v2011
    %v2067 = vsel %vm135, %v2051, 0.0
    %v2068 = vsel %vm135, %v2052, 0.0
    %v2069 = vadd.f32 %v2067, %v2068
    %v2070 = vsel %vm135, %v2053, 0.0
    %v2071 = vadd.f32 %v2069, %v2070
    %v2072 = vsel %vm135, %v2054, 0.0
    %v2073 = vadd.f32 %v2071, %v2072
    %v2074 = vsel %vm135, %v2055, 0.0
    %v2075 = vadd.f32 %v2073, %v2074
    %v2076 = vsel %vm135, %v2056, 0.0
    %v2077 = vadd.f32 %v2075, %v2076
    %v2078 = vsel %vm135, %v2057, 0.0
    %v2079 = vadd.f32 %v2077, %v2078
    %v2080 = vsel %vm135, %v2058, 0.0
    %v2081 = vadd.f32 %v2079, %v2080
    %v2082 = vsel %vm135, %v2059, 0.0
    %v2083 = vadd.f32 %v2081, %v2082
    %v2084 = vsel %vm135, %v2060, 0.0
    %v2085 = vadd.f32 %v2083, %v2084
    %v2086 = vsel %vm135, %v2061, 0.0
    %v2087 = vadd.f32 %v2085, %v2086
    %v2088 = vsel %vm135, %v2062, 0.0
    %v2089 = vadd.f32 %v2087, %v2088
    %v2090 = vsel %vm135, %v2063, 0.0
    %v2091 = vadd.f32 %v2089, %v2090
    %v2092 = vsel %vm135, %v2064, 0.0
    %v2093 = vadd.f32 %v2091, %v2092
    %v2094 = vsel %vm135, %v2065, 0.0
    %v2095 = vadd.f32 %v2093, %v2094
    %v2096 = vsel %vm135, %v2066, 0.0
    %v2097 = vadd.f32 %v2095, %v2096
    %v2098 = vrot.slane %v2097, 4
    %v2099 = vadd.f32 %v2097, %v2098
    %v2100 = vrot.slane %v2099, 2
    %v2101 = vadd.f32 %v2099, %v2100
    %v2102 = vrot.slane %v2101, 1
    %v2103 = vadd.f32 %v2101, %v2102
    %v2104 = vmul.f32 %v2050, 0.0078125
    %v2105 = vmul.f32 %v2103, 0.0078125
    %v2106 = vmul.f32 %v2104, %v2104
    %v2107 = vsub.f32 %v2105, %v2106
    %v2108 = vmax.f32 %v2107, 0.0
    %v2109 = vld [vmem:[%s4 + $0x1] sm:$0x1]
    %v2110 = vld [vmem:[%s5 + $0x1] sm:$0x1]
    %v2111 = vadd.f32 %v2108, 1e-05
    %v2112 = vrsqrt.pop %v2111
    %v2113 = vmul.f32 %v2109, %v2112
    %v2114 = vlaneseq
    %v2115 = vshrl.u32 %v2114, 7
    %v2116 = vsub.s32 0, %v2115
    %v2117 = vrot.slane %v2113, %v2116
    %v2118 = vmul.f32 %v1952, %v2117
    %v2119 = vmul.f32 %v1955, %v2117
    %v2120 = vmul.f32 %v1960, %v2117
    %v2121 = vmul.f32 %v1963, %v2117
    %v2122 = vmul.f32 %v1968, %v2117
    %v2123 = vmul.f32 %v1971, %v2117
    %v2124 = vmul.f32 %v1976, %v2117
    %v2125 = vmul.f32 %v1979, %v2117
    %v2126 = vmul.f32 %v1984, %v2117
    %v2127 = vmul.f32 %v1987, %v2117
    %v2128 = vmul.f32 %v1992, %v2117
    %v2129 = vmul.f32 %v1995, %v2117
    %v2130 = vmul.f32 %v2000, %v2117
    %v2131 = vmul.f32 %v2003, %v2117
    %v2132 = vmul.f32 %v2008, %v2117
    %v2133 = vmul.f32 %v2011, %v2117
    %v2134 = vmul.f32 %v2104, %v2113
    %v2135 = vsub.f32 %v2110, %v2134
    %v2136 = vlaneseq
    %v2137 = vshrl.u32 %v2136, 7
    %v2138 = vsub.s32 0, %v2137
    %v2139 = vrot.slane %v2135, %v2138
    %v2140 = vadd.f32 %v2118, %v2139
    %v2141 = vadd.f32 %v2119, %v2139
    %v2142 = vadd.f32 %v2120, %v2139
    %v2143 = vadd.f32 %v2121, %v2139
    %v2144 = vadd.f32 %v2122, %v2139
    %v2145 = vadd.f32 %v2123, %v2139
    %v2146 = vadd.f32 %v2124, %v2139
    %v2147 = vadd.f32 %v2125, %v2139
    %v2148 = vadd.f32 %v2126, %v2139
    %v2149 = vadd.f32 %v2127, %v2139
    %v2150 = vadd.f32 %v2128, %v2139
    %v2151 = vadd.f32 %v2129, %v2139
    %v2152 = vadd.f32 %v2130, %v2139
    %v2153 = vadd.f32 %v2131, %v2139
    %v2154 = vadd.f32 %v2132, %v2139
    %v2155 = vadd.f32 %v2133, %v2139
    %v2156 = vmax.f32 %v2140, 0.0
    %v2157 = vmax.f32 %v2141, 0.0
    %v2158 = vmax.f32 %v2142, 0.0
    %v2159 = vmax.f32 %v2143, 0.0
    %v2160 = vmax.f32 %v2144, 0.0
    %v2161 = vmax.f32 %v2145, 0.0
    %v2162 = vmax.f32 %v2146, 0.0
    %v2163 = vmax.f32 %v2147, 0.0
    %v2164 = vmax.f32 %v2148, 0.0
    %v2165 = vmax.f32 %v2149, 0.0
    %v2166 = vmax.f32 %v2150, 0.0
    %v2167 = vmax.f32 %v2151, 0.0
    %v2168 = vmax.f32 %v2152, 0.0
    %v2169 = vmax.f32 %v2153, 0.0
    %v2170 = vmax.f32 %v2154, 0.0
    %v2171 = vmax.f32 %v2155, 0.0
    %2172 = vst.msk [vmem:[%s1294 + $0x1] sm:$0xff] %vm135, %v2156
    %2173 = vst.msk [vmem:[%s1294 + $0x11] sm:$0xff] %vm135, %v2157
    %2174 = vst.msk [vmem:[%s1294 + $0x21] sm:$0xff] %vm135, %v2158
    %2175 = vst.msk [vmem:[%s1294 + $0x31] sm:$0xff] %vm135, %v2159
    %2176 = vst.msk [vmem:[%s1294 + $0x41] sm:$0xff] %vm135, %v2160
    %2177 = vst.msk [vmem:[%s1294 + $0x51] sm:$0xff] %vm135, %v2161
    %2178 = vst.msk [vmem:[%s1294 + $0x61] sm:$0xff] %vm135, %v2162
    %2179 = vst.msk [vmem:[%s1294 + $0x71] sm:$0xff] %vm135, %v2163
    %2180 = vst.msk [vmem:[%s1294 + $0xa1] sm:$0xff] %vm135, %v2164
    %2181 = vst.msk [vmem:[%s1294 + $0xb1] sm:$0xff] %vm135, %v2165
    %2182 = vst.msk [vmem:[%s1294 + $0xc1] sm:$0xff] %vm135, %v2166
    %2183 = vst.msk [vmem:[%s1294 + $0xd1] sm:$0xff] %vm135, %v2167
    %2184 = vst.msk [vmem:[%s1294 + $0xe1] sm:$0xff] %vm135, %v2168
    %2185 = vst.msk [vmem:[%s1294 + $0xf1] sm:$0xff] %vm135, %v2169
    %2186 = vst.msk [vmem:[%s1294 + $0x101] sm:$0xff] %vm135, %v2170
    %2187 = vst.msk [vmem:[%s1294 + $0x111] sm:$0xff] %vm135, %v2171
    %v2188 = vld [vmem:[#allocation3] sm:$0xff]
    %v2189 = vld [vmem:[#allocation3 + $0x10] sm:$0xff]
    %v2190 = vld [vmem:[#allocation3 + $0x20] sm:$0xff]
    %v2191 = vld [vmem:[#allocation3 + $0x30] sm:$0xff]
    %v2192 = vld [vmem:[#allocation3 + $0x40] sm:$0xff]
    %v2193 = vld [vmem:[#allocation3 + $0x50] sm:$0xff]
    %v2194 = vld [vmem:[#allocation3 + $0x60] sm:$0xff]
    %v2195 = vld [vmem:[#allocation3 + $0x70] sm:$0xff]
    %v2196 = vld [vmem:[#allocation3 + $0xa0] sm:$0xff]
    %v2197 = vld [vmem:[#allocation3 + $0xb0] sm:$0xff]
    %v2198 = vld [vmem:[#allocation3 + $0xc0] sm:$0xff]
    %v2199 = vld [vmem:[#allocation3 + $0xd0] sm:$0xff]
    %v2200 = vld [vmem:[#allocation3 + $0xe0] sm:$0xff]
    %v2201 = vld [vmem:[#allocation3 + $0xf0] sm:$0xff]
    %v2202 = vld [vmem:[#allocation3 + $0x100] sm:$0xff]
    %v2203 = vld [vmem:[#allocation3 + $0x110] sm:$0xff]
    %v2204 = vpack.c.bf16 %v2189, %v2188
    %v2205 = vpack.c.bf16 %v2191, %v2190
    %v2206 = vpack.c.bf16 %v2193, %v2192
    %v2207 = vpack.c.bf16 %v2195, %v2194
    %v2208 = vpack.c.bf16 %v2197, %v2196
    %v2209 = vpack.c.bf16 %v2199, %v2198
    %v2210 = vpack.c.bf16 %v2201, %v2200
    %v2211 = vpack.c.bf16 %v2203, %v2202
    %v2212 = vld [vmem:[#allocation3 + $0x1] sm:$0xff]
    %v2213 = vld [vmem:[#allocation3 + $0x11] sm:$0xff]
    %v2214 = vld [vmem:[#allocation3 + $0x21] sm:$0xff]
    %v2215 = vld [vmem:[#allocation3 + $0x31] sm:$0xff]
    %v2216 = vld [vmem:[#allocation3 + $0x41] sm:$0xff]
    %v2217 = vld [vmem:[#allocation3 + $0x51] sm:$0xff]
    %v2218 = vld [vmem:[#allocation3 + $0x61] sm:$0xff]
    %v2219 = vld [vmem:[#allocation3 + $0x71] sm:$0xff]
    %v2220 = vld [vmem:[#allocation3 + $0xa1] sm:$0xff]
    %v2221 = vld [vmem:[#allocation3 + $0xb1] sm:$0xff]
    %v2222 = vld [vmem:[#allocation3 + $0xc1] sm:$0xff]
    %v2223 = vld [vmem:[#allocation3 + $0xd1] sm:$0xff]
    %v2224 = vld [vmem:[#allocation3 + $0xe1] sm:$0xff]
    %v2225 = vld [vmem:[#allocation3 + $0xf1] sm:$0xff]
    %v2226 = vld [vmem:[#allocation3 + $0x101] sm:$0xff]
    %v2227 = vld [vmem:[#allocation3 + $0x111] sm:$0xff]
    %v2228 = vpack.c.bf16 %v2213, %v2212
    %v2229 = vpack.c.bf16 %v2215, %v2214
    %v2230 = vpack.c.bf16 %v2217, %v2216
    %v2231 = vpack.c.bf16 %v2219, %v2218
    %v2232 = vpack.c.bf16 %v2221, %v2220
    %v2233 = vpack.c.bf16 %v2223, %v2222
    %v2234 = vpack.c.bf16 %v2225, %v2224
    %v2235 = vpack.c.bf16 %v2227, %v2226
    %v2236 = vld [vmem:[#allocation3 + $0x2] sm:$0xff]
    %v2237 = vld [vmem:[#allocation3 + $0x12] sm:$0xff]
    %v2238 = vld [vmem:[#allocation3 + $0x22] sm:$0xff]
    %v2239 = vld [vmem:[#allocation3 + $0x32] sm:$0xff]
    %v2240 = vld [vmem:[#allocation3 + $0x42] sm:$0xff]
    %v2241 = vld [vmem:[#allocation3 + $0x52] sm:$0xff]
    %v2242 = vld [vmem:[#allocation3 + $0x62] sm:$0xff]
    %v2243 = vld [vmem:[#allocation3 + $0x72] sm:$0xff]
    %v2244 = vld [vmem:[#allocation3 + $0xa2] sm:$0xff]
    %v2245 = vld [vmem:[#allocation3 + $0xb2] sm:$0xff]
    %v2246 = vld [vmem:[#allocation3 + $0xc2] sm:$0xff]
    %v2247 = vld [vmem:[#allocation3 + $0xd2] sm:$0xff]
    %v2248 = vld [vmem:[#allocation3 + $0xe2] sm:$0xff]
    %v2249 = vld [vmem:[#allocation3 + $0xf2] sm:$0xff]
    %v2250 = vld [vmem:[#allocation3 + $0x102] sm:$0xff]
    %v2251 = vld [vmem:[#allocation3 + $0x112] sm:$0xff]
    %v2252 = vpack.c.bf16 %v2237, %v2236
    %v2253 = vpack.c.bf16 %v2239, %v2238
    %v2254 = vpack.c.bf16 %v2241, %v2240
    %v2255 = vpack.c.bf16 %v2243, %v2242
    %v2256 = vpack.c.bf16 %v2245, %v2244
    %v2257 = vpack.c.bf16 %v2247, %v2246
    %v2258 = vpack.c.bf16 %v2249, %v2248
    %v2259 = vpack.c.bf16 %v2251, %v2250
    %v2260 = vld [vmem:[%s1294] sm:$0xff]
    %v2261 = vld [vmem:[%s1294 + $0x10] sm:$0xff]
    %v2262 = vld [vmem:[%s1294 + $0x20] sm:$0xff]
    %v2263 = vld [vmem:[%s1294 + $0x30] sm:$0xff]
    %v2264 = vld [vmem:[%s1294 + $0x40] sm:$0xff]
    %v2265 = vld [vmem:[%s1294 + $0x50] sm:$0xff]
    %v2266 = vld [vmem:[%s1294 + $0x60] sm:$0xff]
    %v2267 = vld [vmem:[%s1294 + $0x70] sm:$0xff]
    %v2268 = vld [vmem:[%s1294 + $0xa0] sm:$0xff]
    %v2269 = vld [vmem:[%s1294 + $0xb0] sm:$0xff]
    %v2270 = vld [vmem:[%s1294 + $0xc0] sm:$0xff]
    %v2271 = vld [vmem:[%s1294 + $0xd0] sm:$0xff]
    %v2272 = vld [vmem:[%s1294 + $0xe0] sm:$0xff]
    %v2273 = vld [vmem:[%s1294 + $0xf0] sm:$0xff]
    %v2274 = vld [vmem:[%s1294 + $0x100] sm:$0xff]
    %v2275 = vld [vmem:[%s1294 + $0x110] sm:$0xff]
    %v2276 = vpack.c.bf16 %v2261, %v2260
    %v2277 = vpack.c.bf16 %v2263, %v2262
    %v2278 = vpack.c.bf16 %v2265, %v2264
    %v2279 = vpack.c.bf16 %v2267, %v2266
    %v2280 = vpack.c.bf16 %v2269, %v2268
    %v2281 = vpack.c.bf16 %v2271, %v2270
    %v2282 = vpack.c.bf16 %v2273, %v2272
    %v2283 = vpack.c.bf16 %v2275, %v2274
    %v2284 = vld [vmem:[%s1294 + $0x1] sm:$0xff]
    %v2285 = vld [vmem:[%s1294 + $0x11] sm:$0xff]
    %v2286 = vld [vmem:[%s1294 + $0x21] sm:$0xff]
    %v2287 = vld [vmem:[%s1294 + $0x31] sm:$0xff]
    %v2288 = vld [vmem:[%s1294 + $0x41] sm:$0xff]
    %v2289 = vld [vmem:[%s1294 + $0x51] sm:$0xff]
    %v2290 = vld [vmem:[%s1294 + $0x61] sm:$0xff]
    %v2291 = vld [vmem:[%s1294 + $0x71] sm:$0xff]
    %v2292 = vld [vmem:[%s1294 + $0xa1] sm:$0xff]
    %v2293 = vld [vmem:[%s1294 + $0xb1] sm:$0xff]
    %v2294 = vld [vmem:[%s1294 + $0xc1] sm:$0xff]
    %v2295 = vld [vmem:[%s1294 + $0xd1] sm:$0xff]
    %v2296 = vld [vmem:[%s1294 + $0xe1] sm:$0xff]
    %v2297 = vld [vmem:[%s1294 + $0xf1] sm:$0xff]
    %v2298 = vld [vmem:[%s1294 + $0x101] sm:$0xff]
    %v2299 = vld [vmem:[%s1294 + $0x111] sm:$0xff]
    %v2300 = vpack.c.bf16 %v2285, %v2284
    %v2301 = vpack.c.bf16 %v2287, %v2286
    %v2302 = vpack.c.bf16 %v2289, %v2288
    %v2303 = vpack.c.bf16 %v2291, %v2290
    %v2304 = vpack.c.bf16 %v2293, %v2292
    %v2305 = vpack.c.bf16 %v2295, %v2294
    %v2306 = vpack.c.bf16 %v2297, %v2296
    %v2307 = vpack.c.bf16 %v2299, %v2298
    %v2308 = vld [vmem:[%s1294 + $0x2] sm:$0xff]
    %v2309 = vld [vmem:[%s1294 + $0x12] sm:$0xff]
    %v2310 = vld [vmem:[%s1294 + $0x22] sm:$0xff]
    %v2311 = vld [vmem:[%s1294 + $0x32] sm:$0xff]
    %v2312 = vld [vmem:[%s1294 + $0x42] sm:$0xff]
    %v2313 = vld [vmem:[%s1294 + $0x52] sm:$0xff]
    %v2314 = vld [vmem:[%s1294 + $0x62] sm:$0xff]
    %v2315 = vld [vmem:[%s1294 + $0x72] sm:$0xff]
    %v2316 = vld [vmem:[%s1294 + $0xa2] sm:$0xff]
    %v2317 = vld [vmem:[%s1294 + $0xb2] sm:$0xff]
    %v2318 = vld [vmem:[%s1294 + $0xc2] sm:$0xff]
    %v2319 = vld [vmem:[%s1294 + $0xd2] sm:$0xff]
    %v2320 = vld [vmem:[%s1294 + $0xe2] sm:$0xff]
    %v2321 = vld [vmem:[%s1294 + $0xf2] sm:$0xff]
    %v2322 = vld [vmem:[%s1294 + $0x102] sm:$0xff]
    %v2323 = vld [vmem:[%s1294 + $0x112] sm:$0xff]
    %v2324 = vpack.c.bf16 %v2309, %v2308
    %v2325 = vpack.c.bf16 %v2311, %v2310
    %v2326 = vpack.c.bf16 %v2313, %v2312
    %v2327 = vpack.c.bf16 %v2315, %v2314
    %v2328 = vpack.c.bf16 %v2317, %v2316
    %v2329 = vpack.c.bf16 %v2319, %v2318
    %v2330 = vpack.c.bf16 %v2321, %v2320
    %v2331 = vpack.c.bf16 %v2323, %v2322
    %v2332 = vld [vmem:[%s1455] sm:$0xff]
    %v2333 = vld [vmem:[%s1455 + $0x10] sm:$0xff]
    %v2334 = vld [vmem:[%s1455 + $0x20] sm:$0xff]
    %v2335 = vld [vmem:[%s1455 + $0x30] sm:$0xff]
    %v2336 = vld [vmem:[%s1455 + $0x40] sm:$0xff]
    %v2337 = vld [vmem:[%s1455 + $0x50] sm:$0xff]
    %v2338 = vld [vmem:[%s1455 + $0x60] sm:$0xff]
    %v2339 = vld [vmem:[%s1455 + $0x70] sm:$0xff]
    %v2340 = vld [vmem:[%s1455 + $0xa0] sm:$0xff]
    %v2341 = vld [vmem:[%s1455 + $0xb0] sm:$0xff]
    %v2342 = vld [vmem:[%s1455 + $0xc0] sm:$0xff]
    %v2343 = vld [vmem:[%s1455 + $0xd0] sm:$0xff]
    %v2344 = vld [vmem:[%s1455 + $0xe0] sm:$0xff]
    %v2345 = vld [vmem:[%s1455 + $0xf0] sm:$0xff]
    %v2346 = vld [vmem:[%s1455 + $0x100] sm:$0xff]
    %v2347 = vld [vmem:[%s1455 + $0x110] sm:$0xff]
    %v2348 = vpack.c.bf16 %v2333, %v2332
    %v2349 = vpack.c.bf16 %v2335, %v2334
    %v2350 = vpack.c.bf16 %v2337, %v2336
    %v2351 = vpack.c.bf16 %v2339, %v2338
    %v2352 = vpack.c.bf16 %v2341, %v2340
    %v2353 = vpack.c.bf16 %v2343, %v2342
    %v2354 = vpack.c.bf16 %v2345, %v2344
    %v2355 = vpack.c.bf16 %v2347, %v2346
    %v2356 = vld [vmem:[%s1455 + $0x1] sm:$0xff]
    %v2357 = vld [vmem:[%s1455 + $0x11] sm:$0xff]
    %v2358 = vld [vmem:[%s1455 + $0x21] sm:$0xff]
    %v2359 = vld [vmem:[%s1455 + $0x31] sm:$0xff]
    %v2360 = vld [vmem:[%s1455 + $0x41] sm:$0xff]
    %v2361 = vld [vmem:[%s1455 + $0x51] sm:$0xff]
    %v2362 = vld [vmem:[%s1455 + $0x61] sm:$0xff]
    %v2363 = vld [vmem:[%s1455 + $0x71] sm:$0xff]
    %v2364 = vld [vmem:[%s1455 + $0xa1] sm:$0xff]
    %v2365 = vld [vmem:[%s1455 + $0xb1] sm:$0xff]
    %v2366 = vld [vmem:[%s1455 + $0xc1] sm:$0xff]
    %v2367 = vld [vmem:[%s1455 + $0xd1] sm:$0xff]
    %v2368 = vld [vmem:[%s1455 + $0xe1] sm:$0xff]
    %v2369 = vld [vmem:[%s1455 + $0xf1] sm:$0xff]
    %v2370 = vld [vmem:[%s1455 + $0x101] sm:$0xff]
    %v2371 = vld [vmem:[%s1455 + $0x111] sm:$0xff]
    %v2372 = vpack.c.bf16 %v2357, %v2356
    %v2373 = vpack.c.bf16 %v2359, %v2358
    %v2374 = vpack.c.bf16 %v2361, %v2360
    %v2375 = vpack.c.bf16 %v2363, %v2362
    %v2376 = vpack.c.bf16 %v2365, %v2364
    %v2377 = vpack.c.bf16 %v2367, %v2366
    %v2378 = vpack.c.bf16 %v2369, %v2368
    %v2379 = vpack.c.bf16 %v2371, %v2370
    %v2380 = vld [vmem:[%s1455 + $0x2] sm:$0xff]
    %v2381 = vld [vmem:[%s1455 + $0x12] sm:$0xff]
    %v2382 = vld [vmem:[%s1455 + $0x22] sm:$0xff]
    %v2383 = vld [vmem:[%s1455 + $0x32] sm:$0xff]
    %v2384 = vld [vmem:[%s1455 + $0x42] sm:$0xff]
    %v2385 = vld [vmem:[%s1455 + $0x52] sm:$0xff]
    %v2386 = vld [vmem:[%s1455 + $0x62] sm:$0xff]
    %v2387 = vld [vmem:[%s1455 + $0x72] sm:$0xff]
    %v2388 = vld [vmem:[%s1455 + $0xa2] sm:$0xff]
    %v2389 = vld [vmem:[%s1455 + $0xb2] sm:$0xff]
    %v2390 = vld [vmem:[%s1455 + $0xc2] sm:$0xff]
    %v2391 = vld [vmem:[%s1455 + $0xd2] sm:$0xff]
    %v2392 = vld [vmem:[%s1455 + $0xe2] sm:$0xff]
    %v2393 = vld [vmem:[%s1455 + $0xf2] sm:$0xff]
    %v2394 = vld [vmem:[%s1455 + $0x102] sm:$0xff]
    %v2395 = vld [vmem:[%s1455 + $0x112] sm:$0xff]
    %v2396 = vpack.c.bf16 %v2381, %v2380
    %v2397 = vpack.c.bf16 %v2383, %v2382
    %v2398 = vpack.c.bf16 %v2385, %v2384
    %v2399 = vpack.c.bf16 %v2387, %v2386
    %v2400 = vpack.c.bf16 %v2389, %v2388
    %v2401 = vpack.c.bf16 %v2391, %v2390
    %v2402 = vpack.c.bf16 %v2393, %v2392
    %v2403 = vpack.c.bf16 %v2395, %v2394
    %2412 = vrot.lane.b32.xlu0 %v2228, 8
    %v2413 = vpop.permute.xlu0 %2412
    %2414 = vrot.lane.b32.xlu0 %v2229, 8
    %v2415 = vpop.permute.xlu0 %2414
    %2416 = vrot.lane.b32.xlu0 %v2230, 8
    %v2417 = vpop.permute.xlu0 %2416
    %2418 = vrot.lane.b32.xlu0 %v2231, 8
    %v2419 = vpop.permute.xlu0 %2418
    %2420 = vrot.lane.b32.xlu0 %v2232, 8
    %v2421 = vpop.permute.xlu0 %2420
    %2422 = vrot.lane.b32.xlu0 %v2233, 8
    %v2423 = vpop.permute.xlu0 %2422
    %2424 = vrot.lane.b32.xlu0 %v2234, 8
    %v2425 = vpop.permute.xlu0 %2424
    %2426 = vrot.lane.b32.xlu0 %v2235, 8
    %v2427 = vpop.permute.xlu0 %2426
    %2436 = vrot.lane.b32.xlu0 %v2252, 16
    %v2437 = vpop.permute.xlu0 %2436
    %2438 = vrot.lane.b32.xlu0 %v2253, 16
    %v2439 = vpop.permute.xlu0 %2438
    %2440 = vrot.lane.b32.xlu0 %v2254, 16
    %v2441 = vpop.permute.xlu0 %2440
    %2442 = vrot.lane.b32.xlu0 %v2255, 16
    %v2443 = vpop.permute.xlu0 %2442
    %2444 = vrot.lane.b32.xlu0 %v2256, 16
    %v2445 = vpop.permute.xlu0 %2444
    %2446 = vrot.lane.b32.xlu0 %v2257, 16
    %v2447 = vpop.permute.xlu0 %2446
    %2448 = vrot.lane.b32.xlu0 %v2258, 16
    %v2449 = vpop.permute.xlu0 %2448
    %2450 = vrot.lane.b32.xlu0 %v2259, 16
    %v2451 = vpop.permute.xlu0 %2450
    %2460 = vrot.lane.b32.xlu0 %v2276, 24
    %v2461 = vpop.permute.xlu0 %2460
    %2462 = vrot.lane.b32.xlu0 %v2277, 24
    %v2463 = vpop.permute.xlu0 %2462
    %2464 = vrot.lane.b32.xlu0 %v2278, 24
    %v2465 = vpop.permute.xlu0 %2464
    %2466 = vrot.lane.b32.xlu0 %v2279, 24
    %v2467 = vpop.permute.xlu0 %2466
    %2468 = vrot.lane.b32.xlu0 %v2280, 24
    %v2469 = vpop.permute.xlu0 %2468
    %2470 = vrot.lane.b32.xlu0 %v2281, 24
    %v2471 = vpop.permute.xlu0 %2470
    %2472 = vrot.lane.b32.xlu0 %v2282, 24
    %v2473 = vpop.permute.xlu0 %2472
    %2474 = vrot.lane.b32.xlu0 %v2283, 24
    %v2475 = vpop.permute.xlu0 %2474
    %2484 = vrot.lane.b32.xlu0 %v2300, 32
    %v2485 = vpop.permute.xlu0 %2484
    %2486 = vrot.lane.b32.xlu0 %v2301, 32
    %v2487 = vpop.permute.xlu0 %2486
    %2488 = vrot.lane.b32.xlu0 %v2302, 32
    %v2489 = vpop.permute.xlu0 %2488
    %2490 = vrot.lane.b32.xlu0 %v2303, 32
    %v2491 = vpop.permute.xlu0 %2490
    %2492 = vrot.lane.b32.xlu0 %v2304, 32
    %v2493 = vpop.permute.xlu0 %2492
    %2494 = vrot.lane.b32.xlu0 %v2305, 32
    %v2495 = vpop.permute.xlu0 %2494
    %2496 = vrot.lane.b32.xlu0 %v2306, 32
    %v2497 = vpop.permute.xlu0 %2496
    %2498 = vrot.lane.b32.xlu0 %v2307, 32
    %v2499 = vpop.permute.xlu0 %2498
    %2508 = vrot.lane.b32.xlu0 %v2324, 40
    %v2509 = vpop.permute.xlu0 %2508
    %2510 = vrot.lane.b32.xlu0 %v2325, 40
    %v2511 = vpop.permute.xlu0 %2510
    %2512 = vrot.lane.b32.xlu0 %v2326, 40
    %v2513 = vpop.permute.xlu0 %2512
    %2514 = vrot.lane.b32.xlu0 %v2327, 40
    %v2515 = vpop.permute.xlu0 %2514
    %2516 = vrot.lane.b32.xlu0 %v2328, 40
    %v2517 = vpop.permute.xlu0 %2516
    %2518 = vrot.lane.b32.xlu0 %v2329, 40
    %v2519 = vpop.permute.xlu0 %2518
    %2520 = vrot.lane.b32.xlu0 %v2330, 40
    %v2521 = vpop.permute.xlu0 %2520
    %2522 = vrot.lane.b32.xlu0 %v2331, 40
    %v2523 = vpop.permute.xlu0 %2522
    %2532 = vrot.lane.b32.xlu0 %v2348, 48
    %v2533 = vpop.permute.xlu0 %2532
    %2534 = vrot.lane.b32.xlu0 %v2349, 48
    %v2535 = vpop.permute.xlu0 %2534
    %2536 = vrot.lane.b32.xlu0 %v2350, 48
    %v2537 = vpop.permute.xlu0 %2536
    %2538 = vrot.lane.b32.xlu0 %v2351, 48
    %v2539 = vpop.permute.xlu0 %2538
    %2540 = vrot.lane.b32.xlu0 %v2352, 48
    %v2541 = vpop.permute.xlu0 %2540
    %2542 = vrot.lane.b32.xlu0 %v2353, 48
    %v2543 = vpop.permute.xlu0 %2542
    %2544 = vrot.lane.b32.xlu0 %v2354, 48
    %v2545 = vpop.permute.xlu0 %2544
    %2546 = vrot.lane.b32.xlu0 %v2355, 48
    %v2547 = vpop.permute.xlu0 %2546
    %2556 = vrot.lane.b32.xlu0 %v2372, 56
    %v2557 = vpop.permute.xlu0 %2556
    %2558 = vrot.lane.b32.xlu0 %v2373, 56
    %v2559 = vpop.permute.xlu0 %2558
    %2560 = vrot.lane.b32.xlu0 %v2374, 56
    %v2561 = vpop.permute.xlu0 %2560
    %2562 = vrot.lane.b32.xlu0 %v2375, 56
    %v2563 = vpop.permute.xlu0 %2562
    %2564 = vrot.lane.b32.xlu0 %v2376, 56
    %v2565 = vpop.permute.xlu0 %2564
    %2566 = vrot.lane.b32.xlu0 %v2377, 56
    %v2567 = vpop.permute.xlu0 %2566
    %2568 = vrot.lane.b32.xlu0 %v2378, 56
    %v2569 = vpop.permute.xlu0 %2568
    %2570 = vrot.lane.b32.xlu0 %v2379, 56
    %v2571 = vpop.permute.xlu0 %2570
    %2580 = vrot.lane.b32.xlu0 %v2396, 64
    %v2581 = vpop.permute.xlu0 %2580
    %2582 = vrot.lane.b32.xlu0 %v2397, 64
    %v2583 = vpop.permute.xlu0 %2582
    %2584 = vrot.lane.b32.xlu0 %v2398, 64
    %v2585 = vpop.permute.xlu0 %2584
    %2586 = vrot.lane.b32.xlu0 %v2399, 64
    %v2587 = vpop.permute.xlu0 %2586
    %2588 = vrot.lane.b32.xlu0 %v2400, 64
    %v2589 = vpop.permute.xlu0 %2588
    %2590 = vrot.lane.b32.xlu0 %v2401, 64
    %v2591 = vpop.permute.xlu0 %2590
    %2592 = vrot.lane.b32.xlu0 %v2402, 64
    %v2593 = vpop.permute.xlu0 %2592
    %2594 = vrot.lane.b32.xlu0 %v2403, 64
    %v2595 = vpop.permute.xlu0 %2594
    %v2598 = vsel %vm135, %v2204, %v2413
    %v2601 = vsel %vm135, %v2205, %v2415
    %v2604 = vsel %vm135, %v2206, %v2417
    %v2607 = vsel %vm135, %v2207, %v2419
    %v2610 = vsel %vm135, %v2208, %v2421
    %v2613 = vsel %vm135, %v2209, %v2423
    %v2616 = vsel %vm135, %v2210, %v2425
    %v2619 = vsel %vm135, %v2211, %v2427
    %v2621 = vsel %vm913, %v2598, %v2437
    %v2623 = vsel %vm913, %v2601, %v2439
    %v2625 = vsel %vm913, %v2604, %v2441
    %v2627 = vsel %vm913, %v2607, %v2443
    %v2629 = vsel %vm913, %v2610, %v2445
    %v2631 = vsel %vm913, %v2613, %v2447
    %v2633 = vsel %vm913, %v2616, %v2449
    %v2635 = vsel %vm913, %v2619, %v2451
    %v2637 = vsel %vm947, %v2621, %v2461
    %v2639 = vsel %vm947, %v2623, %v2463
    %v2641 = vsel %vm947, %v2625, %v2465
    %v2643 = vsel %vm947, %v2627, %v2467
    %v2645 = vsel %vm947, %v2629, %v2469
    %v2647 = vsel %vm947, %v2631, %v2471
    %v2649 = vsel %vm947, %v2633, %v2473
    %v2651 = vsel %vm947, %v2635, %v2475
    %v2653 = vsel %vm981, %v2637, %v2485
    %v2655 = vsel %vm981, %v2639, %v2487
    %v2657 = vsel %vm981, %v2641, %v2489
    %v2659 = vsel %vm981, %v2643, %v2491
    %v2661 = vsel %vm981, %v2645, %v2493
    %v2663 = vsel %vm981, %v2647, %v2495
    %v2665 = vsel %vm981, %v2649, %v2497
    %v2667 = vsel %vm981, %v2651, %v2499
    %v2669 = vsel %vm1792, %v2653, %v2509
    %v2671 = vsel %vm1792, %v2655, %v2511
    %v2673 = vsel %vm1792, %v2657, %v2513
    %v2675 = vsel %vm1792, %v2659, %v2515
    %v2677 = vsel %vm1792, %v2661, %v2517
    %v2679 = vsel %vm1792, %v2663, %v2519
    %v2681 = vsel %vm1792, %v2665, %v2521
    %v2683 = vsel %vm1792, %v2667, %v2523
    %v2685 = vsel %vm1809, %v2669, %v2533
    %v2687 = vsel %vm1809, %v2671, %v2535
    %v2689 = vsel %vm1809, %v2673, %v2537
    %v2691 = vsel %vm1809, %v2675, %v2539
    %v2693 = vsel %vm1809, %v2677, %v2541
    %v2695 = vsel %vm1809, %v2679, %v2543
    %v2697 = vsel %vm1809, %v2681, %v2545
    %v2699 = vsel %vm1809, %v2683, %v2547
    %v2701 = vsel %vm1826, %v2685, %v2557
    %v2703 = vsel %vm1826, %v2687, %v2559
    %v2705 = vsel %vm1826, %v2689, %v2561
    %v2707 = vsel %vm1826, %v2691, %v2563
    %v2709 = vsel %vm1826, %v2693, %v2565
    %v2711 = vsel %vm1826, %v2695, %v2567
    %v2713 = vsel %vm1826, %v2697, %v2569
    %v2715 = vsel %vm1826, %v2699, %v2571
    %v2717 = vsel %vm1843, %v2701, %v2581
    %v2719 = vsel %vm1843, %v2703, %v2583
    %v2721 = vsel %vm1843, %v2705, %v2585
    %v2723 = vsel %vm1843, %v2707, %v2587
    %v2725 = vsel %vm1843, %v2709, %v2589
    %v2727 = vsel %vm1843, %v2711, %v2591
    %v2729 = vsel %vm1843, %v2713, %v2593
    %v2731 = vsel %vm1843, %v2715, %v2595
    %v2732 = vld [vmem:[%s3] sm:$0xf]
    %v2733 = vld [vmem:[%s3 + $0x4] sm:$0xf]
    %v2734 = vld [vmem:[%s3 + $0x8] sm:$0xf]
    %v2735 = vld [vmem:[%s3 + $0xc] sm:$0xf]
    %v2736 = vld [vmem:[%s3 + $0x10] sm:$0xf]
    %v2737 = vld [vmem:[%s3 + $0x14] sm:$0xf]
    %v2738 = vld [vmem:[%s3 + $0x18] sm:$0xf]
    %v2739 = vld [vmem:[%s3 + $0x1c] sm:$0xf]
    %v2740 = vld [vmem:[%s3 + $0x20] sm:$0xf]
    %v2750 = vunpack.c.l.b16 %v2732
    %v2751 = vunpack.c.l.b16 %v2733
    %v2752 = vunpack.c.l.b16 %v2734
    %v2753 = vunpack.c.l.b16 %v2735
    %v2754 = vunpack.c.l.b16 %v2736
    %v2755 = vunpack.c.l.b16 %v2737
    %v2756 = vunpack.c.l.b16 %v2738
    %v2757 = vunpack.c.l.b16 %v2739
    %v2758 = vunpack.c.l.b16 %v2740
    %v2759 = vpack.c.b16 %v2751, %v2750
    %v2760 = vpack.c.b16 %v2753, %v2752
    %v2761 = vpack.c.b16 %v2755, %v2754
    %v2762 = vpack.c.b16 %v2757, %v2756
    %v2763 = vpack.c.b16 %v2758, %v2758
    %v2768 = vsel %vm1896, %v2717, 0
    %v2770 = vsel %vm1896, %v2719, 0
    %v2772 = vsel %vm1896, %v2721, 0
    %v2774 = vsel %vm1896, %v2723, 0
    %v2776 = vsel %vm1896, %v2725, 0
    %v2778 = vsel %vm1896, %v2727, 0
    %v2780 = vsel %vm1896, %v2729, 0
    %v2782 = vsel %vm1896, %v2731, 0
    %v2785 = vsel %vm1913, %v2763, 0
    %2787 = vmatprep.subr.bf16.mxu0 0
    %2788 = vmatpush1.bf16.msra.mxu0 0
    %2789 = vmatprep.subr.bf16.mxu0 0
    %2790 = vmatpush1.bf16.msra.mxu0 0
    %2791 = vmatprep.subr.bf16.mxu0 0
    %2792 = vmatpush1.bf16.msra.mxu0 0
    %2793 = vmatprep.subr.bf16.mxu0 0
    %2794 = vmatpush1.bf16.msra.mxu0 %v2785
    %2795 = vmatprep.subr.bf16.mxu0 0
    %2796 = vmatpush1.bf16.msra.mxu0 %v2762
    %2797 = vmatprep.subr.bf16.mxu0 0
    %2798 = vmatpush1.bf16.msra.mxu0 %v2761
    %2799 = vmatprep.subr.bf16.mxu0 0
    %2800 = vmatpush1.bf16.msra.mxu0 %v2760
    %2801 = vmatprep.subr.bf16.mxu0 0
    %2802 = vmatpush1.bf16.msra.mxu0 %v2759
    %2803 = vmatprep.subr.bf16.mxu0 0
    %2804 = vmatpush2.bf16.msra.mxu0 0
    %2805 = vmatprep.subr.bf16.mxu0 0
    %2806 = vmatpush2.bf16.msra.mxu0 0
    %2807 = vmatprep.subr.bf16.mxu0 0
    %2808 = vmatpush2.bf16.msra.mxu0 0
    %2809 = vmatprep.subr.bf16.mxu0 0
    %2810 = vmatpush2.bf16.msra.mxu0 0
    %2811 = vmatprep.subr.bf16.mxu0 0
    %2812 = vmatpush2.bf16.msra.mxu0 0
    %2813 = vmatprep.subr.bf16.mxu0 0
    %2814 = vmatpush2.bf16.msra.mxu0 0
    %2815 = vmatprep.subr.bf16.mxu0 0
    %2816 = vmatpush2.bf16.msra.mxu0 0
    %2817 = vmatprep.subr.bf16.mxu0 0
    %2818 = vmatpush2.bf16.msra.mxu0 0
    %2819 = vmatprep.mubr.bf16.mxu0 0
    %2820 = vmatmul.mubr.bf16.gmra.mxu0 %v2768
    %v2821 = vpop.f32.mrf.mxu0
    %v2822 = vadd.f32 0.0, %v2821
    %v2823 = vpop.f32.mrf.mxu0
    %v2824 = vpop.f32.mrf.mxu0
    %v2825 = vadd.f32 0.0, %v2824
    %v2826 = vpop.f32.mrf.mxu0
    %2827 = vmatprep.mubr.bf16.mxu0 0
    %2828 = vmatmul.mubr.bf16.gmra.mxu0 %v2770
    %v2829 = vpop.f32.mrf.mxu0
    %v2830 = vadd.f32 0.0, %v2829
    %v2831 = vpop.f32.mrf.mxu0
    %v2832 = vpop.f32.mrf.mxu0
    %v2833 = vadd.f32 0.0, %v2832
    %v2834 = vpop.f32.mrf.mxu0
    %2835 = vmatprep.mubr.bf16.mxu0 0
    %2836 = vmatmul.mubr.bf16.gmra.mxu0 %v2772
    %v2837 = vpop.f32.mrf.mxu0
    %v2838 = vadd.f32 0.0, %v2837
    %v2839 = vpop.f32.mrf.mxu0
    %v2840 = vpop.f32.mrf.mxu0
    %v2841 = vadd.f32 0.0, %v2840
    %v2842 = vpop.f32.mrf.mxu0
    %2843 = vmatprep.mubr.bf16.mxu0 0
    %2844 = vmatmul.mubr.bf16.gmra.mxu0 %v2774
    %v2845 = vpop.f32.mrf.mxu0
    %v2846 = vadd.f32 0.0, %v2845
    %v2847 = vpop.f32.mrf.mxu0
    %v2848 = vpop.f32.mrf.mxu0
    %v2849 = vadd.f32 0.0, %v2848
    %v2850 = vpop.f32.mrf.mxu0
    %2851 = vmatprep.mubr.bf16.mxu0 0
    %2852 = vmatmul.mubr.bf16.gmra.mxu0 %v2776
    %v2853 = vpop.f32.mrf.mxu0
    %v2854 = vadd.f32 0.0, %v2853
    %v2855 = vpop.f32.mrf.mxu0
    %v2856 = vpop.f32.mrf.mxu0
    %v2857 = vadd.f32 0.0, %v2856
    %v2858 = vpop.f32.mrf.mxu0
    %2859 = vmatprep.mubr.bf16.mxu0 0
    %2860 = vmatmul.mubr.bf16.gmra.mxu0 %v2778
    %v2861 = vpop.f32.mrf.mxu0
    %v2862 = vadd.f32 0.0, %v2861
    %v2863 = vpop.f32.mrf.mxu0
    %v2864 = vpop.f32.mrf.mxu0
    %v2865 = vadd.f32 0.0, %v2864
    %v2866 = vpop.f32.mrf.mxu0
    %2867 = vmatprep.mubr.bf16.mxu0 0
    %2868 = vmatmul.mubr.bf16.gmra.mxu0 %v2780
    %v2869 = vpop.f32.mrf.mxu0
    %v2870 = vadd.f32 0.0, %v2869
    %v2871 = vpop.f32.mrf.mxu0
    %v2872 = vpop.f32.mrf.mxu0
    %v2873 = vadd.f32 0.0, %v2872
    %v2874 = vpop.f32.mrf.mxu0
    %2875 = vmatprep.mubr.bf16.mxu0 0
    %2876 = vmatmul.mubr.bf16.gmra.mxu0 %v2782
    %v2877 = vpop.f32.mrf.mxu0
    %v2878 = vadd.f32 0.0, %v2877
    %v2879 = vpop.f32.mrf.mxu0
    %v2880 = vpop.f32.mrf.mxu0
    %v2881 = vadd.f32 0.0, %v2880
    %v2882 = vpop.f32.mrf.mxu0
    %2883 = vdwg.mxu0
    %v2884 = vsel %vm135, %v2822, 0.0
    %v2885 = vsel %vm135, %v2825, 0.0
    %v2886 = vadd.f32 %v2884, %v2885
    %v2887 = vsel %vm135, %v2830, 0.0
    %v2888 = vadd.f32 %v2886, %v2887
    %v2889 = vsel %vm135, %v2833, 0.0
    %v2890 = vadd.f32 %v2888, %v2889
    %v2891 = vsel %vm135, %v2838, 0.0
    %v2892 = vadd.f32 %v2890, %v2891
    %v2893 = vsel %vm135, %v2841, 0.0
    %v2894 = vadd.f32 %v2892, %v2893
    %v2895 = vsel %vm135, %v2846, 0.0
    %v2896 = vadd.f32 %v2894, %v2895
    %v2897 = vsel %vm135, %v2849, 0.0
    %v2898 = vadd.f32 %v2896, %v2897
    %v2899 = vsel %vm135, %v2854, 0.0
    %v2900 = vadd.f32 %v2898, %v2899
    %v2901 = vsel %vm135, %v2857, 0.0
    %v2902 = vadd.f32 %v2900, %v2901
    %v2903 = vsel %vm135, %v2862, 0.0
    %v2904 = vadd.f32 %v2902, %v2903
    %v2905 = vsel %vm135, %v2865, 0.0
    %v2906 = vadd.f32 %v2904, %v2905
    %v2907 = vsel %vm135, %v2870, 0.0
    %v2908 = vadd.f32 %v2906, %v2907
    %v2909 = vsel %vm135, %v2873, 0.0
    %v2910 = vadd.f32 %v2908, %v2909
    %v2911 = vsel %vm135, %v2878, 0.0
    %v2912 = vadd.f32 %v2910, %v2911
    %v2913 = vsel %vm135, %v2881, 0.0
    %v2914 = vadd.f32 %v2912, %v2913
    %v2915 = vrot.slane %v2914, 4
    %v2916 = vadd.f32 %v2914, %v2915
    %v2917 = vrot.slane %v2916, 2
    %v2918 = vadd.f32 %v2916, %v2917
    %v2919 = vrot.slane %v2918, 1
    %v2920 = vadd.f32 %v2918, %v2919
    %v2921 = vmul.f32 %v2822, %v2822
    %v2922 = vmul.f32 %v2825, %v2825
    %v2923 = vmul.f32 %v2830, %v2830
    %v2924 = vmul.f32 %v2833, %v2833
    %v2925 = vmul.f32 %v2838, %v2838
    %v2926 = vmul.f32 %v2841, %v2841
    %v2927 = vmul.f32 %v2846, %v2846
    %v2928 = vmul.f32 %v2849, %v2849
    %v2929 = vmul.f32 %v2854, %v2854
    %v2930 = vmul.f32 %v2857, %v2857
    %v2931 = vmul.f32 %v2862, %v2862
    %v2932 = vmul.f32 %v2865, %v2865
    %v2933 = vmul.f32 %v2870, %v2870
    %v2934 = vmul.f32 %v2873, %v2873
    %v2935 = vmul.f32 %v2878, %v2878
    %v2936 = vmul.f32 %v2881, %v2881
    %v2937 = vsel %vm135, %v2921, 0.0
    %v2938 = vsel %vm135, %v2922, 0.0
    %v2939 = vadd.f32 %v2937, %v2938
    %v2940 = vsel %vm135, %v2923, 0.0
    %v2941 = vadd.f32 %v2939, %v2940
    %v2942 = vsel %vm135, %v2924, 0.0
    %v2943 = vadd.f32 %v2941, %v2942
    %v2944 = vsel %vm135, %v2925, 0.0
    %v2945 = vadd.f32 %v2943, %v2944
    %v2946 = vsel %vm135, %v2926, 0.0
    %v2947 = vadd.f32 %v2945, %v2946
    %v2948 = vsel %vm135, %v2927, 0.0
    %v2949 = vadd.f32 %v2947, %v2948
    %v2950 = vsel %vm135, %v2928, 0.0
    %v2951 = vadd.f32 %v2949, %v2950
    %v2952 = vsel %vm135, %v2929, 0.0
    %v2953 = vadd.f32 %v2951, %v2952
    %v2954 = vsel %vm135, %v2930, 0.0
    %v2955 = vadd.f32 %v2953, %v2954
    %v2956 = vsel %vm135, %v2931, 0.0
    %v2957 = vadd.f32 %v2955, %v2956
    %v2958 = vsel %vm135, %v2932, 0.0
    %v2959 = vadd.f32 %v2957, %v2958
    %v2960 = vsel %vm135, %v2933, 0.0
    %v2961 = vadd.f32 %v2959, %v2960
    %v2962 = vsel %vm135, %v2934, 0.0
    %v2963 = vadd.f32 %v2961, %v2962
    %v2964 = vsel %vm135, %v2935, 0.0
    %v2965 = vadd.f32 %v2963, %v2964
    %v2966 = vsel %vm135, %v2936, 0.0
    %v2967 = vadd.f32 %v2965, %v2966
    %v2968 = vrot.slane %v2967, 4
    %v2969 = vadd.f32 %v2967, %v2968
    %v2970 = vrot.slane %v2969, 2
    %v2971 = vadd.f32 %v2969, %v2970
    %v2972 = vrot.slane %v2971, 1
    %v2973 = vadd.f32 %v2971, %v2972
    %v2974 = vmul.f32 %v2920, 0.0078125
    %v2975 = vmul.f32 %v2973, 0.0078125
    %v2976 = vmul.f32 %v2974, %v2974
    %v2977 = vsub.f32 %v2975, %v2976
    %v2978 = vmax.f32 %v2977, 0.0
    %v2979 = vld [vmem:[%s4 + $0x2] sm:$0x1]
    %v2980 = vld [vmem:[%s5 + $0x2] sm:$0x1]
    %v2981 = vadd.f32 %v2978, 1e-05
    %v2982 = vrsqrt.pop %v2981
    %v2983 = vmul.f32 %v2979, %v2982
    %v2984 = vlaneseq
    %v2985 = vshrl.u32 %v2984, 7
    %v2986 = vsub.s32 0, %v2985
    %v2987 = vrot.slane %v2983, %v2986
    %v2988 = vmul.f32 %v2822, %v2987
    %v2989 = vmul.f32 %v2825, %v2987
    %v2990 = vmul.f32 %v2830, %v2987
    %v2991 = vmul.f32 %v2833, %v2987
    %v2992 = vmul.f32 %v2838, %v2987
    %v2993 = vmul.f32 %v2841, %v2987
    %v2994 = vmul.f32 %v2846, %v2987
    %v2995 = vmul.f32 %v2849, %v2987
    %v2996 = vmul.f32 %v2854, %v2987
    %v2997 = vmul.f32 %v2857, %v2987
    %v2998 = vmul.f32 %v2862, %v2987
    %v2999 = vmul.f32 %v2865, %v2987
    %v3000 = vmul.f32 %v2870, %v2987
    %v3001 = vmul.f32 %v2873, %v2987
    %v3002 = vmul.f32 %v2878, %v2987
    %v3003 = vmul.f32 %v2881, %v2987
    %v3004 = vmul.f32 %v2974, %v2983
    %v3005 = vsub.f32 %v2980, %v3004
    %v3006 = vlaneseq
    %v3007 = vshrl.u32 %v3006, 7
    %v3008 = vsub.s32 0, %v3007
    %v3009 = vrot.slane %v3005, %v3008
    %v3010 = vadd.f32 %v2988, %v3009
    %v3011 = vadd.f32 %v2989, %v3009
    %v3012 = vadd.f32 %v2990, %v3009
    %v3013 = vadd.f32 %v2991, %v3009
    %v3014 = vadd.f32 %v2992, %v3009
    %v3015 = vadd.f32 %v2993, %v3009
    %v3016 = vadd.f32 %v2994, %v3009
    %v3017 = vadd.f32 %v2995, %v3009
    %v3018 = vadd.f32 %v2996, %v3009
    %v3019 = vadd.f32 %v2997, %v3009
    %v3020 = vadd.f32 %v2998, %v3009
    %v3021 = vadd.f32 %v2999, %v3009
    %v3022 = vadd.f32 %v3000, %v3009
    %v3023 = vadd.f32 %v3001, %v3009
    %v3024 = vadd.f32 %v3002, %v3009
    %v3025 = vadd.f32 %v3003, %v3009
    %v3026 = vmax.f32 %v3010, 0.0
    %v3027 = vmax.f32 %v3011, 0.0
    %v3028 = vmax.f32 %v3012, 0.0
    %v3029 = vmax.f32 %v3013, 0.0
    %v3030 = vmax.f32 %v3014, 0.0
    %v3031 = vmax.f32 %v3015, 0.0
    %v3032 = vmax.f32 %v3016, 0.0
    %v3033 = vmax.f32 %v3017, 0.0
    %v3034 = vmax.f32 %v3018, 0.0
    %v3035 = vmax.f32 %v3019, 0.0
    %v3036 = vmax.f32 %v3020, 0.0
    %v3037 = vmax.f32 %v3021, 0.0
    %v3038 = vmax.f32 %v3022, 0.0
    %v3039 = vmax.f32 %v3023, 0.0
    %v3040 = vmax.f32 %v3024, 0.0
    %v3041 = vmax.f32 %v3025, 0.0
    %3042 = vxpose.xlu0.b32.start [1/16] %v3026, 128
    %3043 = vxpose.xlu0.b32.cont [2/16] %v3027, 128
    %3044 = vxpose.xlu0.b32.cont [3/16] %v3028, 128
    %3045 = vxpose.xlu0.b32.cont [4/16] %v3029, 128
    %3046 = vxpose.xlu0.b32.cont [5/16] %v3030, 128
    %3047 = vxpose.xlu0.b32.cont [6/16] %v3031, 128
    %3048 = vxpose.xlu0.b32.cont [7/16] %v3032, 128
    %3049 = vxpose.xlu0.b32.cont [8/16] %v3033, 128
    %3050 = vxpose.xlu0.b32.cont [9/16] %v3034, 128
    %3051 = vxpose.xlu0.b32.cont [10/16] %v3035, 128
    %3052 = vxpose.xlu0.b32.cont [11/16] %v3036, 128
    %3053 = vxpose.xlu0.b32.cont [12/16] %v3037, 128
    %3054 = vxpose.xlu0.b32.cont [13/16] %v3038, 128
    %3055 = vxpose.xlu0.b32.cont [14/16] %v3039, 128
    %3056 = vxpose.xlu0.b32.cont [15/16] %v3040, 128
    %3057 = vxpose.xlu0.b32.end [16/16] %v3041, 128
    %v3058 = vpop.trf.xlu0
    %v3059 = vpop.trf.xlu0
    %v3060 = vpop.trf.xlu0
    %v3061 = vpop.trf.xlu0
    %v3062 = vpop.trf.xlu0
    %v3063 = vpop.trf.xlu0
    %v3064 = vpop.trf.xlu0
    %v3065 = vpop.trf.xlu0
    %v3066 = vpop.trf.xlu0
    %v3067 = vpop.trf.xlu0
    %v3068 = vpop.trf.xlu0
    %v3069 = vpop.trf.xlu0
    %v3070 = vpop.trf.xlu0
    %v3071 = vpop.trf.xlu0
    %v3072 = vpop.trf.xlu0
    %v3073 = vpop.trf.xlu0
    %3074 = vst [vmem:[#allocation4] sm:$0xff] %v3058
    // Predicated region
    $region26: #{tpu_custom_call.1} parent=1 // pred_check
      _
    $region27: #{tpu_custom_call.1} parent=1 // pred_check_branch
      %3076 = sbr.rel (0) target = $region29
    $region28: #{tpu_custom_call.1} parent=1 // pred_region
      %s3078 = ssub.s32 128, 128
      %3079 = vsyncadd [#allocation5], %s3078
      %s3081 = sshll.u32 [#allocation4], 4
      %s3082 = int_to_ptr.vmem [resolvable:$true] %s3081
      %3084 = dma.vmem_to_hbm [thread:$0]  %s3082, 128, %s6, [#allocation5]
    $region29: #{tpu_custom_call.1} parent=1 // pred_fallthru
      _
    // Predicated region
    $region30: #{tpu_custom_call.1} parent=1 // pred_check
      _
    $region31: #{tpu_custom_call.1} parent=1 // pred_check_branch
      %3086 = sbr.rel (0) target = $region33
    $region32: #{tpu_custom_call.1} parent=1 // pred_region
      %3087 = dma.done [#allocation5], 128
    $region33: #{tpu_custom_call.1} parent=1 // pred_fallthru
      _
    %3088 = vsyncpa [#allocation5], 1

</llo_original>
